<compile_context>
chip_gen: v7x
topology: tpu7x:2x2x1
jax: 0.10.0
libtpu: 0.0.40
codegen_flags: <defaults>
</compile_context>

<pallas_src>
import numpy as np
import jax
import jax.numpy as jnp
from jax import lax
from jax.experimental import pallas as pl
from jax.experimental.pallas import tpu as pltpu

# ---- Model hyperparameters (small, consistent with ConvE.forward) ----------
NUM_ENTITIES = 64
NUM_RELATIONS = 16
D1 = 200                  # entity embedding dim (reshaped to 10x20)
D2 = 200                  # relation embedding dim (reshaped to 10x20)
IN_CH = 1                 # forced by .view(-1, 1, 10, 20)
OUT_CH = 8
FILT_H = 3
FILT_W = 3
N_TAPS = FILT_H * FILT_W  # 9
H_IN, W_IN = 20, 20       # after torch.cat([e1, r], dim=2)
OH = H_IN - FILT_H + 1    # 18
OW = W_IN - FILT_W + 1    # 18
P = OH * OW               # 324 valid positions per channel
PPAD = OH * W_IN          # 360 positions per channel in padded (18 x 20) order
FC_LEN = P * OUT_CH       # 2592
BN_EPS = 1e-5
BATCH = 2

TILE_B = 8                # batch tile (sublane-full); raise for large batches
XPAD = 512                # flat image width 400, padded to 4*128 lanes
TAP_OFFSETS = [fh * W_IN + fw for fh in range(FILT_H) for fw in range(FILT_W)]


# ---------------------------------------------------------------------------
# Fused kernel (one grid step = one batch tile of TILE_B rows)
#   e1_ref, ridx_ref : SMEM (B_pad,) int32          scalar-prefetched indices
#   cw_ref           : SMEM (80,) f32               [folded conv w | per-ch shift]
#   ew_ref           : VMEM (NUM_ENT, D1) f32       E.weight (for gather)
#   rw_ref           : VMEM (NUM_REL, D2) f32       R.weight (for gather)
#   fcw_ref          : VMEM (OUT_CH, 360, D1) bf16  fc_w^T * bn2_scale, padded order
#   fcb_ref          : VMEM (1, D1) f32             fc_b*bn2_scale + bn2_shift
#   ewt_ref          : VMEM (D1, NUM_ENT) bf16      E.weight^T
#   b_ref            : VMEM (1, NUM_ENT) f32
#   o_ref            : VMEM (TILE_B, NUM_ENT) f32
#   x_scratch        : VMEM (TILE_B, 512) f32       flat concatenated image
# ---------------------------------------------------------------------------
def conve_fused_kernel(e1_ref, ridx_ref, cw_ref, ew_ref, rw_ref, fcw_ref,
                       fcb_ref, ewt_ref, b_ref, o_ref, x_scratch):
    bt = pl.program_id(0)

    # --- embedding gather (exact one-hot MXU gather) + concat ---------------
    # Flat row-major 20x20 image == [E[e1] (200) ; R[r] (200)]  (cat along height)
    row_e = lax.broadcasted_iota(jnp.int32, (TILE_B, NUM_ENTITIES), 0)
    col_e = lax.broadcasted_iota(jnp.int32, (TILE_B, NUM_ENTITIES), 1)
    row_r = lax.broadcasted_iota(jnp.int32, (TILE_B, NUM_RELATIONS), 0)
    col_r = lax.broadcasted_iota(jnp.int32, (TILE_B, NUM_RELATIONS), 1)
    onehot_e = jnp.zeros((TILE_B, NUM_ENTITIES), jnp.float32)
    onehot_r = jnp.zeros((TILE_B, NUM_RELATIONS), jnp.float32)
    for b in range(TILE_B):
        eidx = e1_ref[bt * TILE_B + b]
        ridx = ridx_ref[bt * TILE_B + b]
        onehot_e = jnp.where((row_e == b) & (col_e == eidx), 1.0, onehot_e)
        onehot_r = jnp.where((row_r == b) & (col_r == ridx), 1.0, onehot_r)
    e_rows = jnp.dot(onehot_e, ew_ref[...], preferred_element_type=jnp.float32)
    r_rows = jnp.dot(onehot_r, rw_ref[...], preferred_element_type=jnp.float32)

    x_scratch[...] = jnp.zeros_like(x_scratch)     # well-defined padded tail
    x_scratch[:, 0:D1] = e_rows
    x_scratch[:, D1:2 * D1] = r_rows
    xv = x_scratch[...]                            # (TILE_B, 512) f32

    # --- 9 conv taps: contiguous 360-wide lane slices of the flat image -----
    # Positions per channel are laid out as p' = oh*20 + ow' (ow' 18,19 are
    # dummy columns whose fc rows are zero), so tap (fh,fw) is just the slice
    # starting at offset fh*20 + fw.
    slabs = [xv[:, off:off + PPAD] for off in TAP_OFFSETS]

    # --- conv (bn0/bias/bn1 folded) -> relu -> FC accumulation (bn2 folded) --
    h = jnp.zeros((TILE_B, D1), jnp.float32)
    for c in range(OUT_CH):
        acc = slabs[0] * cw_ref[c * N_TAPS + 0]
        for t in range(1, N_TAPS):
            acc = acc + slabs[t] * cw_ref[c * N_TAPS + t]
        # folded conv-bias + bn0/bn1 shift, relu (feature_map_drop = id in eval)
        y = jnp.maximum(acc + cw_ref[OUT_CH * N_TAPS + c], 0.0)   # (TILE_B, 360)
        h = h + jnp.dot(y.astype(jnp.bfloat16), fcw_ref[c],
                        preferred_element_type=jnp.float32)

    # fc bias + bn2 (folded), hidden_drop = id in eval, relu
    h = jnp.maximum(h + fcb_ref[...], 0.0)
    logits = jnp.dot(h.astype(jnp.bfloat16), ewt_ref[...],
                     preferred_element_type=jnp.float32) + b_ref[...]
    o_ref[...] = jax.nn.sigmoid(logits)


def conve_pallas(prep, e1_idx, r_idx):
    B = e1_idx.shape[0]
    n_tiles = (B + TILE_B - 1) // TILE_B
    B_pad = n_tiles * TILE_B
    # pad indices with 0 (padding_idx rows are all-zero); padded rows sliced off
    e1p = jnp.zeros((B_pad,), jnp.int32).at[:B].set(e1_idx.astype(jnp.int32))
    rp = jnp.zeros((B_pad,), jnp.int32).at[:B].set(r_idx.astype(jnp.int32))

    out = pl.pallas_call(
        conve_fused_kernel,
        out_shape=jax.ShapeDtypeStruct((B_pad, NUM_ENTITIES), jnp.float32),
        grid_spec=pltpu.PrefetchScalarGridSpec(
            num_scalar_prefetch=2,
            grid=(n_tiles,),
            in_specs=[
                pl.BlockSpec(memory_space=pltpu.MemorySpace.SMEM),            # conv_smem
                pl.BlockSpec((NUM_ENTITIES, D1), lambda i, e1, r: (0, 0)),    # E_w (f32)
                pl.BlockSpec((NUM_RELATIONS, D2), lambda i, e1, r: (0, 0)),   # R_w (f32)
                pl.BlockSpec((OUT_CH, PPAD, D1), lambda i, e1, r: (0, 0, 0)), # fc_w3 (bf16)
                pl.BlockSpec((1, D1), lambda i, e1, r: (0, 0)),               # fc_b2
                pl.BlockSpec((D1, NUM_ENTITIES), lambda i, e1, r: (0, 0)),    # E_w^T (bf16)
                pl.BlockSpec((1, NUM_ENTITIES), lambda i, e1, r: (0, 0)),     # b
            ],
            out_specs=pl.BlockSpec((TILE_B, NUM_ENTITIES), lambda i, e1, r: (i, 0)),
            scratch_shapes=[pltpu.VMEM((TILE_B, XPAD), jnp.float32)],
        ),
        compiler_params=pltpu.CompilerParams(
            dimension_semantics=("parallel",)),
    )(e1p, rp, prep["conv_smem"], prep["E_w"], prep["R_w"],
      prep["fc_w3"], prep["fc_b2"], prep["E_w_t"], prep["b2"])
    return out[:B]


@jax.jit
def conve_forward(prep, e1_idx, r_idx):
    return conve_pallas(prep, e1_idx, r_idx)


# ---------------------------------------------------------------------------
# Parameter setup (deterministic, synthetic) + one-time host-side preparation
# ---------------------------------------------------------------------------
def init_params(key):
    ks = jax.random.split(key, 16)
    E_w = 0.1 * jax.random.normal(ks[0], (NUM_ENTITIES, D1), jnp.float32)
    E_w = E_w.at[0].set(0.0)    # padding_idx=0
    R_w = 0.1 * jax.random.normal(ks[1], (NUM_RELATIONS, D2), jnp.float32)
    R_w = R_w.at[0].set(0.0)    # padding_idx=0
    conv_w = 0.1 * jax.random.normal(ks[2], (OUT_CH, IN_CH, FILT_H, FILT_W), jnp.float32)
    conv_b = 0.01 * jax.random.normal(ks[3], (OUT_CH,), jnp.float32)
    fc_w = 0.02 * jax.random.normal(ks[4], (D1, FC_LEN), jnp.float32)
    fc_b = 0.01 * jax.random.normal(ks[5], (D1,), jnp.float32)

    def bn(gk, bk, mk, n):
        return dict(
            gamma=1.0 + 0.1 * jax.random.normal(gk, (n,), jnp.float32),
            beta=0.1 * jax.random.normal(bk, (n,), jnp.float32),
            mean=0.05 * jax.random.normal(mk, (n,), jnp.float32),
            var=1.2 * jnp.ones((n,), jnp.float32),
        )

    return dict(
        E_w=E_w, R_w=R_w, conv_w=conv_w, conv_b=conv_b, fc_w=fc_w, fc_b=fc_b,
        bn0=bn(ks[6], ks[7], ks[8], IN_CH),
        bn1=bn(ks[9], ks[10], ks[11], OUT_CH),
        bn2=bn(ks[12], ks[13], ks[14], D1),
        b=jnp.zeros((NUM_ENTITIES,), jnp.float32),   # Parameter(torch.zeros(...))
    )


def _bn_scale_shift(bn):
    scale = bn["gamma"] / jnp.sqrt(bn["var"] + BN_EPS)
    shift = bn["beta"] - bn["mean"] * scale
    return scale, shift


def prepare_params(p):
    """One-time (outside jit) BN folding, weight re-layout and bf16 casts."""
    s0, t0 = _bn_scale_shift(p["bn0"])          # (1,)   (in_channels == 1)
    s1, t1 = _bn_scale_shift(p["bn1"])          # (OUT_CH,)
    s2, t2 = _bn_scale_shift(p["bn2"])          # (D1,)

    w = p["conv_w"].reshape(OUT_CH, N_TAPS)                              # (8, 9)
    # bn0 scale * bn1 scale folded into conv weights (exact for eval BN)
    w_fold = w * (s0[0] * s1)[:, None]
    # bn0 shift + conv bias + bn1 folded into one per-channel shift
    shift = (p["conv_b"] + t0[0] * jnp.sum(w, axis=1)) * s1 + t1         # (8,)
    conv_smem = jnp.concatenate([w_fold.reshape(-1), shift]).astype(jnp.float32)

    # fc (pre-transposed) with bn2 scale folded, re-laid-out to the kernel's
    # padded per-channel position order p' = oh*20 + ow' (zero rows for ow'>=18).
    fc_w_t = p["fc_w"].T * s2[None, :]                                   # (2592, D1)
    fc4 = fc_w_t.reshape(OUT_CH, OH, OW, D1)                             # (8,18,18,D1)
    fc_pad = jnp.pad(fc4, ((0, 0), (0, 0), (0, W_IN - OW), (0, 0)))      # (8,18,20,D1)
    fc_w3 = fc_pad.reshape(OUT_CH, PPAD, D1).astype(jnp.bfloat16)        # (8,360,D1)
    fc_b2 = (p["fc_b"] * s2 + t2)[None, :].astype(jnp.float32)           # (1, D1)

    return dict(
        E_w=p["E_w"].astype(jnp.float32),
        R_w=p["R_w"].astype(jnp.float32),
        conv_smem=conv_smem,
        fc_w3=fc_w3, fc_b2=fc_b2,
        E_w_t=p["E_w"].T.astype(jnp.bfloat16),                           # (D1, NUM_ENT)
        b2=p["b"][None, :].astype(jnp.float32),                          # (1, NUM_ENT)
    )


# Pure-JAX reference on the RAW (unfolded) f32 params — validates BN folding,
# the in-kernel gather/tap layout and the bf16 weight storage.
def conve_forward_ref(params, e1_idx, r_idx):
    e1 = params["E_w"][e1_idx].reshape(-1, 1, 10, 20)
    r = params["R_w"][r_idx].reshape(-1, 1, 10, 20)
    x = jnp.concatenate([e1, r], axis=2)
    s0, t0 = _bn_scale_shift(params["bn0"])
    x = x * s0[None, :, None, None] + t0[None, :, None, None]
    x = lax.conv_general_dilated(x, params["conv_w"], (1, 1), "VALID",
                                 dimension_numbers=("NCHW", "OIHW", "NCHW"))
    x = x + params["conv_b"][None, :, None, None]
    s1, t1 = _bn_scale_shift(params["bn1"])
    x = x * s1[None, :, None, None] + t1[None, :, None, None]
    x = jnp.maximum(x, 0.0)
    x = x.reshape(x.shape[0], -1)
    x = x @ params["fc_w"].T + params["fc_b"]
    s2, t2 = _bn_scale_shift(params["bn2"])
    x = x * s2 + t2
    x = jnp.maximum(x, 0.0)
    x = x @ params["E_w"].T + params["b"]
    return jax.nn.sigmoid(x)


if __name__ == "__main__":
    key = jax.random.PRNGKey(0)
    pkey, ikey = jax.random.split(key)
    params = init_params(pkey)
    prep = prepare_params(params)   # one-time host-side folding / re-layout

    e1_idx = jax.random.randint(jax.random.fold_in(ikey, 0), (BATCH,), 0, NUM_ENTITIES)
    r_idx = jax.random.randint(jax.random.fold_in(ikey, 1), (BATCH,), 0, NUM_RELATIONS)

    pred = jax.block_until_ready(conve_forward(prep, e1_idx, r_idx))
    assert pred.shape == (BATCH, NUM_ENTITIES) and pred.dtype == jnp.float32

    ref = jax.block_until_ready(conve_forward_ref(params, e1_idx, r_idx))
    # bf16 weight storage -> slightly looser tolerance than the pure-f32 version
    np.testing.assert_allclose(np.asarray(pred), np.asarray(ref), rtol=2e-2, atol=5e-3)

    print("KERNEL_OK")
</pallas_src>

<mosaic_0001>
module attributes {stable_mosaic.version = 11 : i64} {
  func.func @conve_fused_kernel(%arg0: i32, %arg1: memref<8xi32, #tpu.memory_space<smem>>, %arg2: memref<8xi32, #tpu.memory_space<smem>>, %arg3: memref<80xf32, #tpu.memory_space<smem>>, %arg4: memref<64x200xf32, #tpu.memory_space<vmem>>, %arg5: memref<16x200xf32, #tpu.memory_space<vmem>>, %arg6: memref<8x360x200xbf16, #tpu.memory_space<vmem>>, %arg7: memref<1x200xf32, #tpu.memory_space<vmem>>, %arg8: memref<200x64xbf16, #tpu.memory_space<vmem>>, %arg9: memref<1x64xf32, #tpu.memory_space<vmem>>, %arg10: memref<8x64xf32, #tpu.memory_space<vmem>>, %arg11: memref<8x512xf32, #tpu.memory_space<vmem>>) attributes {dimension_semantics = [#tpu.dimension_semantics<parallel>], iteration_bounds = array<i64: 1>, scalar_prefetch = 2 : i64, scratch_operands = 1 : i64, tpu.core_type = #tpu.core_type<tc>, window_params = [{transform_indices = @transform_0, window_bounds = array<i64: 80>}, {pipeline_mode = #tpu.pipeline_mode<synchronous>, transform_indices = @transform_1, window_bounds = array<i64: 64, 200>}, {pipeline_mode = #tpu.pipeline_mode<synchronous>, transform_indices = @transform_2, window_bounds = array<i64: 16, 200>}, {pipeline_mode = #tpu.pipeline_mode<synchronous>, transform_indices = @transform_3, window_bounds = array<i64: 8, 360, 200>}, {pipeline_mode = #tpu.pipeline_mode<synchronous>, transform_indices = @transform_4, window_bounds = array<i64: 1, 200>}, {pipeline_mode = #tpu.pipeline_mode<synchronous>, transform_indices = @transform_5, window_bounds = array<i64: 200, 64>}, {pipeline_mode = #tpu.pipeline_mode<synchronous>, transform_indices = @transform_6, window_bounds = array<i64: 1, 64>}, {transform_indices = @transform_7, window_bounds = array<i64: 8, 64>}]} {
    %0 = tpu.iota {dimensions = array<i32: 0>} : vector<8x64xi32>
    %1 = tpu.iota {dimensions = array<i32: 1>} : vector<8x64xi32>
    %2 = tpu.iota {dimensions = array<i32: 0>} : vector<8x16xi32>
    %3 = tpu.iota {dimensions = array<i32: 1>} : vector<8x16xi32>
    %cst = arith.constant 0.000000e+00 : f32
    %4 = vector.broadcast %cst : f32 to vector<8x64xf32>
    %cst_0 = arith.constant 0.000000e+00 : f32
    %5 = vector.broadcast %cst_0 : f32 to vector<8x16xf32>
    %c8_i32 = arith.constant 8 : i32
    %6 = arith.muli %arg0, %c8_i32 : i32
    %c0_i32 = arith.constant 0 : i32
    %7 = arith.addi %6, %c0_i32 : i32
    %8 = arith.index_cast %7 : i32 to index
    %9 = memref.load %arg1[%8] : memref<8xi32, #tpu.memory_space<smem>>
    %c8_i32_1 = arith.constant 8 : i32
    %10 = arith.muli %arg0, %c8_i32_1 : i32
    %c0_i32_2 = arith.constant 0 : i32
    %11 = arith.addi %10, %c0_i32_2 : i32
    %12 = arith.index_cast %11 : i32 to index
    %13 = memref.load %arg2[%12] : memref<8xi32, #tpu.memory_space<smem>>
    %c0_i32_3 = arith.constant 0 : i32
    %14 = vector.broadcast %c0_i32_3 : i32 to vector<8x64xi32>
    %15 = arith.cmpi eq, %0, %14 : vector<8x64xi32>
    %16 = vector.broadcast %9 : i32 to vector<8x64xi32>
    %17 = arith.cmpi eq, %1, %16 : vector<8x64xi32>
    %18 = arith.andi %15, %17 : vector<8x64xi1>
    %cst_4 = arith.constant 1.000000e+00 : f32
    %19 = vector.broadcast %cst_4 : f32 to vector<8x64xf32>
    %20 = arith.select %18, %19, %4 : vector<8x64xi1>, vector<8x64xf32>
    %c0_i32_5 = arith.constant 0 : i32
    %21 = vector.broadcast %c0_i32_5 : i32 to vector<8x16xi32>
    %22 = arith.cmpi eq, %2, %21 : vector<8x16xi32>
    %23 = vector.broadcast %13 : i32 to vector<8x16xi32>
    %24 = arith.cmpi eq, %3, %23 : vector<8x16xi32>
    %25 = arith.andi %22, %24 : vector<8x16xi1>
    %cst_6 = arith.constant 1.000000e+00 : f32
    %26 = vector.broadcast %cst_6 : f32 to vector<8x16xf32>
    %27 = arith.select %25, %26, %5 : vector<8x16xi1>, vector<8x16xf32>
    %c8_i32_7 = arith.constant 8 : i32
    %28 = arith.muli %arg0, %c8_i32_7 : i32
    %c1_i32 = arith.constant 1 : i32
    %29 = arith.addi %28, %c1_i32 : i32
    %30 = arith.index_cast %29 : i32 to index
    %31 = memref.load %arg1[%30] : memref<8xi32, #tpu.memory_space<smem>>
    %c8_i32_8 = arith.constant 8 : i32
    %32 = arith.muli %arg0, %c8_i32_8 : i32
    %c1_i32_9 = arith.constant 1 : i32
    %33 = arith.addi %32, %c1_i32_9 : i32
    %34 = arith.index_cast %33 : i32 to index
    %35 = memref.load %arg2[%34] : memref<8xi32, #tpu.memory_space<smem>>
    %c1_i32_10 = arith.constant 1 : i32
    %36 = vector.broadcast %c1_i32_10 : i32 to vector<8x64xi32>
    %37 = arith.cmpi eq, %0, %36 : vector<8x64xi32>
    %38 = vector.broadcast %31 : i32 to vector<8x64xi32>
    %39 = arith.cmpi eq, %1, %38 : vector<8x64xi32>
    %40 = arith.andi %37, %39 : vector<8x64xi1>
    %cst_11 = arith.constant 1.000000e+00 : f32
    %41 = vector.broadcast %cst_11 : f32 to vector<8x64xf32>
    %42 = arith.select %40, %41, %20 : vector<8x64xi1>, vector<8x64xf32>
    %c1_i32_12 = arith.constant 1 : i32
    %43 = vector.broadcast %c1_i32_12 : i32 to vector<8x16xi32>
    %44 = arith.cmpi eq, %2, %43 : vector<8x16xi32>
    %45 = vector.broadcast %35 : i32 to vector<8x16xi32>
    %46 = arith.cmpi eq, %3, %45 : vector<8x16xi32>
    %47 = arith.andi %44, %46 : vector<8x16xi1>
    %cst_13 = arith.constant 1.000000e+00 : f32
    %48 = vector.broadcast %cst_13 : f32 to vector<8x16xf32>
    %49 = arith.select %47, %48, %27 : vector<8x16xi1>, vector<8x16xf32>
    %c8_i32_14 = arith.constant 8 : i32
    %50 = arith.muli %arg0, %c8_i32_14 : i32
    %c2_i32 = arith.constant 2 : i32
    %51 = arith.addi %50, %c2_i32 : i32
    %52 = arith.index_cast %51 : i32 to index
    %53 = memref.load %arg1[%52] : memref<8xi32, #tpu.memory_space<smem>>
    %c8_i32_15 = arith.constant 8 : i32
    %54 = arith.muli %arg0, %c8_i32_15 : i32
    %c2_i32_16 = arith.constant 2 : i32
    %55 = arith.addi %54, %c2_i32_16 : i32
    %56 = arith.index_cast %55 : i32 to index
    %57 = memref.load %arg2[%56] : memref<8xi32, #tpu.memory_space<smem>>
    %c2_i32_17 = arith.constant 2 : i32
    %58 = vector.broadcast %c2_i32_17 : i32 to vector<8x64xi32>
    %59 = arith.cmpi eq, %0, %58 : vector<8x64xi32>
    %60 = vector.broadcast %53 : i32 to vector<8x64xi32>
    %61 = arith.cmpi eq, %1, %60 : vector<8x64xi32>
    %62 = arith.andi %59, %61 : vector<8x64xi1>
    %cst_18 = arith.constant 1.000000e+00 : f32
    %63 = vector.broadcast %cst_18 : f32 to vector<8x64xf32>
    %64 = arith.select %62, %63, %42 : vector<8x64xi1>, vector<8x64xf32>
    %c2_i32_19 = arith.constant 2 : i32
    %65 = vector.broadcast %c2_i32_19 : i32 to vector<8x16xi32>
    %66 = arith.cmpi eq, %2, %65 : vector<8x16xi32>
    %67 = vector.broadcast %57 : i32 to vector<8x16xi32>
    %68 = arith.cmpi eq, %3, %67 : vector<8x16xi32>
    %69 = arith.andi %66, %68 : vector<8x16xi1>
    %cst_20 = arith.constant 1.000000e+00 : f32
    %70 = vector.broadcast %cst_20 : f32 to vector<8x16xf32>
    %71 = arith.select %69, %70, %49 : vector<8x16xi1>, vector<8x16xf32>
    %c8_i32_21 = arith.constant 8 : i32
    %72 = arith.muli %arg0, %c8_i32_21 : i32
    %c3_i32 = arith.constant 3 : i32
    %73 = arith.addi %72, %c3_i32 : i32
    %74 = arith.index_cast %73 : i32 to index
    %75 = memref.load %arg1[%74] : memref<8xi32, #tpu.memory_space<smem>>
    %c8_i32_22 = arith.constant 8 : i32
    %76 = arith.muli %arg0, %c8_i32_22 : i32
    %c3_i32_23 = arith.constant 3 : i32
    %77 = arith.addi %76, %c3_i32_23 : i32
    %78 = arith.index_cast %77 : i32 to index
    %79 = memref.load %arg2[%78] : memref<8xi32, #tpu.memory_space<smem>>
    %c3_i32_24 = arith.constant 3 : i32
    %80 = vector.broadcast %c3_i32_24 : i32 to vector<8x64xi32>
    %81 = arith.cmpi eq, %0, %80 : vector<8x64xi32>
    %82 = vector.broadcast %75 : i32 to vector<8x64xi32>
    %83 = arith.cmpi eq, %1, %82 : vector<8x64xi32>
    %84 = arith.andi %81, %83 : vector<8x64xi1>
    %cst_25 = arith.constant 1.000000e+00 : f32
    %85 = vector.broadcast %cst_25 : f32 to vector<8x64xf32>
    %86 = arith.select %84, %85, %64 : vector<8x64xi1>, vector<8x64xf32>
    %c3_i32_26 = arith.constant 3 : i32
    %87 = vector.broadcast %c3_i32_26 : i32 to vector<8x16xi32>
    %88 = arith.cmpi eq, %2, %87 : vector<8x16xi32>
    %89 = vector.broadcast %79 : i32 to vector<8x16xi32>
    %90 = arith.cmpi eq, %3, %89 : vector<8x16xi32>
    %91 = arith.andi %88, %90 : vector<8x16xi1>
    %cst_27 = arith.constant 1.000000e+00 : f32
    %92 = vector.broadcast %cst_27 : f32 to vector<8x16xf32>
    %93 = arith.select %91, %92, %71 : vector<8x16xi1>, vector<8x16xf32>
    %c8_i32_28 = arith.constant 8 : i32
    %94 = arith.muli %arg0, %c8_i32_28 : i32
    %c4_i32 = arith.constant 4 : i32
    %95 = arith.addi %94, %c4_i32 : i32
    %96 = arith.index_cast %95 : i32 to index
    %97 = memref.load %arg1[%96] : memref<8xi32, #tpu.memory_space<smem>>
    %c8_i32_29 = arith.constant 8 : i32
    %98 = arith.muli %arg0, %c8_i32_29 : i32
    %c4_i32_30 = arith.constant 4 : i32
    %99 = arith.addi %98, %c4_i32_30 : i32
    %100 = arith.index_cast %99 : i32 to index
    %101 = memref.load %arg2[%100] : memref<8xi32, #tpu.memory_space<smem>>
    %c4_i32_31 = arith.constant 4 : i32
    %102 = vector.broadcast %c4_i32_31 : i32 to vector<8x64xi32>
    %103 = arith.cmpi eq, %0, %102 : vector<8x64xi32>
    %104 = vector.broadcast %97 : i32 to vector<8x64xi32>
    %105 = arith.cmpi eq, %1, %104 : vector<8x64xi32>
    %106 = arith.andi %103, %105 : vector<8x64xi1>
    %cst_32 = arith.constant 1.000000e+00 : f32
    %107 = vector.broadcast %cst_32 : f32 to vector<8x64xf32>
    %108 = arith.select %106, %107, %86 : vector<8x64xi1>, vector<8x64xf32>
    %c4_i32_33 = arith.constant 4 : i32
    %109 = vector.broadcast %c4_i32_33 : i32 to vector<8x16xi32>
    %110 = arith.cmpi eq, %2, %109 : vector<8x16xi32>
    %111 = vector.broadcast %101 : i32 to vector<8x16xi32>
    %112 = arith.cmpi eq, %3, %111 : vector<8x16xi32>
    %113 = arith.andi %110, %112 : vector<8x16xi1>
    %cst_34 = arith.constant 1.000000e+00 : f32
    %114 = vector.broadcast %cst_34 : f32 to vector<8x16xf32>
    %115 = arith.select %113, %114, %93 : vector<8x16xi1>, vector<8x16xf32>
    %c8_i32_35 = arith.constant 8 : i32
    %116 = arith.muli %arg0, %c8_i32_35 : i32
    %c5_i32 = arith.constant 5 : i32
    %117 = arith.addi %116, %c5_i32 : i32
    %118 = arith.index_cast %117 : i32 to index
    %119 = memref.load %arg1[%118] : memref<8xi32, #tpu.memory_space<smem>>
    %c8_i32_36 = arith.constant 8 : i32
    %120 = arith.muli %arg0, %c8_i32_36 : i32
    %c5_i32_37 = arith.constant 5 : i32
    %121 = arith.addi %120, %c5_i32_37 : i32
    %122 = arith.index_cast %121 : i32 to index
    %123 = memref.load %arg2[%122] : memref<8xi32, #tpu.memory_space<smem>>
    %c5_i32_38 = arith.constant 5 : i32
    %124 = vector.broadcast %c5_i32_38 : i32 to vector<8x64xi32>
    %125 = arith.cmpi eq, %0, %124 : vector<8x64xi32>
    %126 = vector.broadcast %119 : i32 to vector<8x64xi32>
    %127 = arith.cmpi eq, %1, %126 : vector<8x64xi32>
    %128 = arith.andi %125, %127 : vector<8x64xi1>
    %cst_39 = arith.constant 1.000000e+00 : f32
    %129 = vector.broadcast %cst_39 : f32 to vector<8x64xf32>
    %130 = arith.select %128, %129, %108 : vector<8x64xi1>, vector<8x64xf32>
    %c5_i32_40 = arith.constant 5 : i32
    %131 = vector.broadcast %c5_i32_40 : i32 to vector<8x16xi32>
    %132 = arith.cmpi eq, %2, %131 : vector<8x16xi32>
    %133 = vector.broadcast %123 : i32 to vector<8x16xi32>
    %134 = arith.cmpi eq, %3, %133 : vector<8x16xi32>
    %135 = arith.andi %132, %134 : vector<8x16xi1>
    %cst_41 = arith.constant 1.000000e+00 : f32
    %136 = vector.broadcast %cst_41 : f32 to vector<8x16xf32>
    %137 = arith.select %135, %136, %115 : vector<8x16xi1>, vector<8x16xf32>
    %c8_i32_42 = arith.constant 8 : i32
    %138 = arith.muli %arg0, %c8_i32_42 : i32
    %c6_i32 = arith.constant 6 : i32
    %139 = arith.addi %138, %c6_i32 : i32
    %140 = arith.index_cast %139 : i32 to index
    %141 = memref.load %arg1[%140] : memref<8xi32, #tpu.memory_space<smem>>
    %c8_i32_43 = arith.constant 8 : i32
    %142 = arith.muli %arg0, %c8_i32_43 : i32
    %c6_i32_44 = arith.constant 6 : i32
    %143 = arith.addi %142, %c6_i32_44 : i32
    %144 = arith.index_cast %143 : i32 to index
    %145 = memref.load %arg2[%144] : memref<8xi32, #tpu.memory_space<smem>>
    %c6_i32_45 = arith.constant 6 : i32
    %146 = vector.broadcast %c6_i32_45 : i32 to vector<8x64xi32>
    %147 = arith.cmpi eq, %0, %146 : vector<8x64xi32>
    %148 = vector.broadcast %141 : i32 to vector<8x64xi32>
    %149 = arith.cmpi eq, %1, %148 : vector<8x64xi32>
    %150 = arith.andi %147, %149 : vector<8x64xi1>
    %cst_46 = arith.constant 1.000000e+00 : f32
    %151 = vector.broadcast %cst_46 : f32 to vector<8x64xf32>
    %152 = arith.select %150, %151, %130 : vector<8x64xi1>, vector<8x64xf32>
    %c6_i32_47 = arith.constant 6 : i32
    %153 = vector.broadcast %c6_i32_47 : i32 to vector<8x16xi32>
    %154 = arith.cmpi eq, %2, %153 : vector<8x16xi32>
    %155 = vector.broadcast %145 : i32 to vector<8x16xi32>
    %156 = arith.cmpi eq, %3, %155 : vector<8x16xi32>
    %157 = arith.andi %154, %156 : vector<8x16xi1>
    %cst_48 = arith.constant 1.000000e+00 : f32
    %158 = vector.broadcast %cst_48 : f32 to vector<8x16xf32>
    %159 = arith.select %157, %158, %137 : vector<8x16xi1>, vector<8x16xf32>
    %c8_i32_49 = arith.constant 8 : i32
    %160 = arith.muli %arg0, %c8_i32_49 : i32
    %c7_i32 = arith.constant 7 : i32
    %161 = arith.addi %160, %c7_i32 : i32
    %162 = arith.index_cast %161 : i32 to index
    %163 = memref.load %arg1[%162] : memref<8xi32, #tpu.memory_space<smem>>
    %c8_i32_50 = arith.constant 8 : i32
    %164 = arith.muli %arg0, %c8_i32_50 : i32
    %c7_i32_51 = arith.constant 7 : i32
    %165 = arith.addi %164, %c7_i32_51 : i32
    %166 = arith.index_cast %165 : i32 to index
    %167 = memref.load %arg2[%166] : memref<8xi32, #tpu.memory_space<smem>>
    %c7_i32_52 = arith.constant 7 : i32
    %168 = vector.broadcast %c7_i32_52 : i32 to vector<8x64xi32>
    %169 = arith.cmpi eq, %0, %168 : vector<8x64xi32>
    %170 = vector.broadcast %163 : i32 to vector<8x64xi32>
    %171 = arith.cmpi eq, %1, %170 : vector<8x64xi32>
    %172 = arith.andi %169, %171 : vector<8x64xi1>
    %cst_53 = arith.constant 1.000000e+00 : f32
    %173 = vector.broadcast %cst_53 : f32 to vector<8x64xf32>
    %174 = arith.select %172, %173, %152 : vector<8x64xi1>, vector<8x64xf32>
    %c7_i32_54 = arith.constant 7 : i32
    %175 = vector.broadcast %c7_i32_54 : i32 to vector<8x16xi32>
    %176 = arith.cmpi eq, %2, %175 : vector<8x16xi32>
    %177 = vector.broadcast %167 : i32 to vector<8x16xi32>
    %178 = arith.cmpi eq, %3, %177 : vector<8x16xi32>
    %179 = arith.andi %176, %178 : vector<8x16xi1>
    %cst_55 = arith.constant 1.000000e+00 : f32
    %180 = vector.broadcast %cst_55 : f32 to vector<8x16xf32>
    %181 = arith.select %179, %180, %159 : vector<8x16xi1>, vector<8x16xf32>
    %c0 = arith.constant 0 : index
    %c0_56 = arith.constant 0 : index
    %182 = vector.load %arg4[%c0, %c0_56] : memref<64x200xf32, #tpu.memory_space<vmem>>, vector<64x200xf32>
    %cst_57 = arith.constant dense<0.000000e+00> : vector<8x200xf32>
    %183 = tpu.matmul %174, %182, %cst_57 {dimension_numbers = #tpu.dot_dimension_numbers<[1], [0], [0], [1], [0, 0, 1, 1], [], []>} : vector<8x64xf32>, vector<64x200xf32>, vector<8x200xf32> -> vector<8x200xf32>
    %c0_58 = arith.constant 0 : index
    %c0_59 = arith.constant 0 : index
    %184 = vector.load %arg5[%c0_58, %c0_59] : memref<16x200xf32, #tpu.memory_space<vmem>>, vector<16x200xf32>
    %cst_60 = arith.constant dense<0.000000e+00> : vector<8x200xf32>
    %185 = tpu.matmul %181, %184, %cst_60 {dimension_numbers = #tpu.dot_dimension_numbers<[1], [0], [0], [1], [0, 0, 1, 1], [], []>} : vector<8x16xf32>, vector<16x200xf32>, vector<8x200xf32> -> vector<8x200xf32>
    %cst_61 = arith.constant 0.000000e+00 : f32
    %186 = vector.broadcast %cst_61 : f32 to vector<8x512xf32>
    %c0_62 = arith.constant 0 : index
    %c0_63 = arith.constant 0 : index
    %187 = vector.load %arg11[%c0_62, %c0_63] : memref<8x512xf32, #tpu.memory_space<vmem>>, vector<8x512xf32>
    tpu.vector_store %arg11[%c0_62, %c0_63], %186 {strides = array<i32>} : memref<8x512xf32, #tpu.memory_space<vmem>>, vector<8x512xf32>,
    %c0_64 = arith.constant 0 : index
    %c0_65 = arith.constant 0 : index
    %188 = vector.load %arg11[%c0_64, %c0_65] : memref<8x512xf32, #tpu.memory_space<vmem>>, vector<8x200xf32>
    tpu.vector_store %arg11[%c0_64, %c0_65], %183 {strides = array<i32>} : memref<8x512xf32, #tpu.memory_space<vmem>>, vector<8x200xf32>,
    %c0_66 = arith.constant 0 : index
    %c200 = arith.constant 200 : index
    %189 = vector.load %arg11[%c0_66, %c200] : memref<8x512xf32, #tpu.memory_space<vmem>>, vector<8x200xf32>
    tpu.vector_store %arg11[%c0_66, %c200], %185 {strides = array<i32>} : memref<8x512xf32, #tpu.memory_space<vmem>>, vector<8x200xf32>,
    %c0_67 = arith.constant 0 : index
    %c0_68 = arith.constant 0 : index
    %190 = vector.load %arg11[%c0_67, %c0_68] : memref<8x512xf32, #tpu.memory_space<vmem>>, vector<8x512xf32>
    %191 = vector.extract_strided_slice %190 {offsets = [0, 0], sizes = [8, 360], strides = [1, 1]} : vector<8x512xf32> to vector<8x360xf32>
    %192 = vector.extract_strided_slice %190 {offsets = [0, 1], sizes = [8, 360], strides = [1, 1]} : vector<8x512xf32> to vector<8x360xf32>
    %193 = vector.extract_strided_slice %190 {offsets = [0, 2], sizes = [8, 360], strides = [1, 1]} : vector<8x512xf32> to vector<8x360xf32>
    %194 = vector.extract_strided_slice %190 {offsets = [0, 20], sizes = [8, 360], strides = [1, 1]} : vector<8x512xf32> to vector<8x360xf32>
    %195 = vector.extract_strided_slice %190 {offsets = [0, 21], sizes = [8, 360], strides = [1, 1]} : vector<8x512xf32> to vector<8x360xf32>
    %196 = vector.extract_strided_slice %190 {offsets = [0, 22], sizes = [8, 360], strides = [1, 1]} : vector<8x512xf32> to vector<8x360xf32>
    %197 = vector.extract_strided_slice %190 {offsets = [0, 40], sizes = [8, 360], strides = [1, 1]} : vector<8x512xf32> to vector<8x360xf32>
    %198 = vector.extract_strided_slice %190 {offsets = [0, 41], sizes = [8, 360], strides = [1, 1]} : vector<8x512xf32> to vector<8x360xf32>
    %199 = vector.extract_strided_slice %190 {offsets = [0, 42], sizes = [8, 360], strides = [1, 1]} : vector<8x512xf32> to vector<8x360xf32>
    %cst_69 = arith.constant 0.000000e+00 : f32
    %200 = vector.broadcast %cst_69 : f32 to vector<8x200xf32>
    %c0_70 = arith.constant 0 : index
    %201 = memref.load %arg3[%c0_70] : memref<80xf32, #tpu.memory_space<smem>>
    %202 = vector.broadcast %201 : f32 to vector<8x360xf32>
    %203 = arith.mulf %191, %202 : vector<8x360xf32>
    %c1 = arith.constant 1 : index
    %204 = memref.load %arg3[%c1] : memref<80xf32, #tpu.memory_space<smem>>
    %205 = vector.broadcast %204 : f32 to vector<8x360xf32>
    %206 = arith.mulf %192, %205 : vector<8x360xf32>
    %207 = arith.addf %203, %206 : vector<8x360xf32>
    %c2 = arith.constant 2 : index
    %208 = memref.load %arg3[%c2] : memref<80xf32, #tpu.memory_space<smem>>
    %209 = vector.broadcast %208 : f32 to vector<8x360xf32>
    %210 = arith.mulf %193, %209 : vector<8x360xf32>
    %211 = arith.addf %207, %210 : vector<8x360xf32>
    %c3 = arith.constant 3 : index
    %212 = memref.load %arg3[%c3] : memref<80xf32, #tpu.memory_space<smem>>
    %213 = vector.broadcast %212 : f32 to vector<8x360xf32>
    %214 = arith.mulf %194, %213 : vector<8x360xf32>
    %215 = arith.addf %211, %214 : vector<8x360xf32>
    %c4 = arith.constant 4 : index
    %216 = memref.load %arg3[%c4] : memref<80xf32, #tpu.memory_space<smem>>
    %217 = vector.broadcast %216 : f32 to vector<8x360xf32>
    %218 = arith.mulf %195, %217 : vector<8x360xf32>
    %219 = arith.addf %215, %218 : vector<8x360xf32>
    %c5 = arith.constant 5 : index
    %220 = memref.load %arg3[%c5] : memref<80xf32, #tpu.memory_space<smem>>
    %221 = vector.broadcast %220 : f32 to vector<8x360xf32>
    %222 = arith.mulf %196, %221 : vector<8x360xf32>
    %223 = arith.addf %219, %222 : vector<8x360xf32>
    %c6 = arith.constant 6 : index
    %224 = memref.load %arg3[%c6] : memref<80xf32, #tpu.memory_space<smem>>
    %225 = vector.broadcast %224 : f32 to vector<8x360xf32>
    %226 = arith.mulf %197, %225 : vector<8x360xf32>
    %227 = arith.addf %223, %226 : vector<8x360xf32>
    %c7 = arith.constant 7 : index
    %228 = memref.load %arg3[%c7] : memref<80xf32, #tpu.memory_space<smem>>
    %229 = vector.broadcast %228 : f32 to vector<8x360xf32>
    %230 = arith.mulf %198, %229 : vector<8x360xf32>
    %231 = arith.addf %227, %230 : vector<8x360xf32>
    %c8 = arith.constant 8 : index
    %232 = memref.load %arg3[%c8] : memref<80xf32, #tpu.memory_space<smem>>
    %233 = vector.broadcast %232 : f32 to vector<8x360xf32>
    %234 = arith.mulf %199, %233 : vector<8x360xf32>
    %235 = arith.addf %231, %234 : vector<8x360xf32>
    %c72 = arith.constant 72 : index
    %236 = memref.load %arg3[%c72] : memref<80xf32, #tpu.memory_space<smem>>
    %237 = vector.broadcast %236 : f32 to vector<8x360xf32>
    %238 = arith.addf %235, %237 : vector<8x360xf32>
    %cst_71 = arith.constant 0.000000e+00 : f32
    %239 = vector.broadcast %cst_71 : f32 to vector<8x360xf32>
    %240 = arith.maximumf %238, %239 : vector<8x360xf32>
    %241 = arith.truncf %240 : vector<8x360xf32> to vector<8x360xbf16>
    %c0_72 = arith.constant 0 : index
    %c0_73 = arith.constant 0 : index
    %c0_74 = arith.constant 0 : index
    %242 = vector.load %arg6[%c0_72, %c0_73, %c0_74] : memref<8x360x200xbf16, #tpu.memory_space<vmem>>, vector<1x360x200xbf16>
    %243 = vector.shape_cast %242 : vector<1x360x200xbf16> to vector<360x200xbf16>
    %cst_75 = arith.constant dense<0.000000e+00> : vector<8x200xf32>
    %244 = tpu.matmul %241, %243, %cst_75 {dimension_numbers = #tpu.dot_dimension_numbers<[1], [0], [0], [1], [0, 0, 1, 1], [], []>} : vector<8x360xbf16>, vector<360x200xbf16>, vector<8x200xf32> -> vector<8x200xf32>
    %245 = arith.addf %200, %244 : vector<8x200xf32>
    %c9 = arith.constant 9 : index
    %246 = memref.load %arg3[%c9] : memref<80xf32, #tpu.memory_space<smem>>
    %247 = vector.broadcast %246 : f32 to vector<8x360xf32>
    %248 = arith.mulf %191, %247 : vector<8x360xf32>
    %c10 = arith.constant 10 : index
    %249 = memref.load %arg3[%c10] : memref<80xf32, #tpu.memory_space<smem>>
    %250 = vector.broadcast %249 : f32 to vector<8x360xf32>
    %251 = arith.mulf %192, %250 : vector<8x360xf32>
    %252 = arith.addf %248, %251 : vector<8x360xf32>
    %c11 = arith.constant 11 : index
    %253 = memref.load %arg3[%c11] : memref<80xf32, #tpu.memory_space<smem>>
    %254 = vector.broadcast %253 : f32 to vector<8x360xf32>
    %255 = arith.mulf %193, %254 : vector<8x360xf32>
    %256 = arith.addf %252, %255 : vector<8x360xf32>
    %c12 = arith.constant 12 : index
    %257 = memref.load %arg3[%c12] : memref<80xf32, #tpu.memory_space<smem>>
    %258 = vector.broadcast %257 : f32 to vector<8x360xf32>
    %259 = arith.mulf %194, %258 : vector<8x360xf32>
    %260 = arith.addf %256, %259 : vector<8x360xf32>
    %c13 = arith.constant 13 : index
    %261 = memref.load %arg3[%c13] : memref<80xf32, #tpu.memory_space<smem>>
    %262 = vector.broadcast %261 : f32 to vector<8x360xf32>
    %263 = arith.mulf %195, %262 : vector<8x360xf32>
    %264 = arith.addf %260, %263 : vector<8x360xf32>
    %c14 = arith.constant 14 : index
    %265 = memref.load %arg3[%c14] : memref<80xf32, #tpu.memory_space<smem>>
    %266 = vector.broadcast %265 : f32 to vector<8x360xf32>
    %267 = arith.mulf %196, %266 : vector<8x360xf32>
    %268 = arith.addf %264, %267 : vector<8x360xf32>
    %c15 = arith.constant 15 : index
    %269 = memref.load %arg3[%c15] : memref<80xf32, #tpu.memory_space<smem>>
    %270 = vector.broadcast %269 : f32 to vector<8x360xf32>
    %271 = arith.mulf %197, %270 : vector<8x360xf32>
    %272 = arith.addf %268, %271 : vector<8x360xf32>
    %c16 = arith.constant 16 : index
    %273 = memref.load %arg3[%c16] : memref<80xf32, #tpu.memory_space<smem>>
    %274 = vector.broadcast %273 : f32 to vector<8x360xf32>
    %275 = arith.mulf %198, %274 : vector<8x360xf32>
    %276 = arith.addf %272, %275 : vector<8x360xf32>
    %c17 = arith.constant 17 : index
    %277 = memref.load %arg3[%c17] : memref<80xf32, #tpu.memory_space<smem>>
    %278 = vector.broadcast %277 : f32 to vector<8x360xf32>
    %279 = arith.mulf %199, %278 : vector<8x360xf32>
    %280 = arith.addf %276, %279 : vector<8x360xf32>
    %c73 = arith.constant 73 : index
    %281 = memref.load %arg3[%c73] : memref<80xf32, #tpu.memory_space<smem>>
    %282 = vector.broadcast %281 : f32 to vector<8x360xf32>
    %283 = arith.addf %280, %282 : vector<8x360xf32>
    %cst_76 = arith.constant 0.000000e+00 : f32
    %284 = vector.broadcast %cst_76 : f32 to vector<8x360xf32>
    %285 = arith.maximumf %283, %284 : vector<8x360xf32>
    %286 = arith.truncf %285 : vector<8x360xf32> to vector<8x360xbf16>
    %c1_77 = arith.constant 1 : index
    %c0_78 = arith.constant 0 : index
    %c0_79 = arith.constant 0 : index
    %287 = vector.load %arg6[%c1_77, %c0_78, %c0_79] : memref<8x360x200xbf16, #tpu.memory_space<vmem>>, vector<1x360x200xbf16>
    %288 = vector.shape_cast %287 : vector<1x360x200xbf16> to vector<360x200xbf16>
    %cst_80 = arith.constant dense<0.000000e+00> : vector<8x200xf32>
    %289 = tpu.matmul %286, %288, %cst_80 {dimension_numbers = #tpu.dot_dimension_numbers<[1], [0], [0], [1], [0, 0, 1, 1], [], []>} : vector<8x360xbf16>, vector<360x200xbf16>, vector<8x200xf32> -> vector<8x200xf32>
    %290 = arith.addf %245, %289 : vector<8x200xf32>
    %c18 = arith.constant 18 : index
    %291 = memref.load %arg3[%c18] : memref<80xf32, #tpu.memory_space<smem>>
    %292 = vector.broadcast %291 : f32 to vector<8x360xf32>
    %293 = arith.mulf %191, %292 : vector<8x360xf32>
    %c19 = arith.constant 19 : index
    %294 = memref.load %arg3[%c19] : memref<80xf32, #tpu.memory_space<smem>>
    %295 = vector.broadcast %294 : f32 to vector<8x360xf32>
    %296 = arith.mulf %192, %295 : vector<8x360xf32>
    %297 = arith.addf %293, %296 : vector<8x360xf32>
    %c20 = arith.constant 20 : index
    %298 = memref.load %arg3[%c20] : memref<80xf32, #tpu.memory_space<smem>>
    %299 = vector.broadcast %298 : f32 to vector<8x360xf32>
    %300 = arith.mulf %193, %299 : vector<8x360xf32>
    %301 = arith.addf %297, %300 : vector<8x360xf32>
    %c21 = arith.constant 21 : index
    %302 = memref.load %arg3[%c21] : memref<80xf32, #tpu.memory_space<smem>>
    %303 = vector.broadcast %302 : f32 to vector<8x360xf32>
    %304 = arith.mulf %194, %303 : vector<8x360xf32>
    %305 = arith.addf %301, %304 : vector<8x360xf32>
    %c22 = arith.constant 22 : index
    %306 = memref.load %arg3[%c22] : memref<80xf32, #tpu.memory_space<smem>>
    %307 = vector.broadcast %306 : f32 to vector<8x360xf32>
    %308 = arith.mulf %195, %307 : vector<8x360xf32>
    %309 = arith.addf %305, %308 : vector<8x360xf32>
    %c23 = arith.constant 23 : index
    %310 = memref.load %arg3[%c23] : memref<80xf32, #tpu.memory_space<smem>>
    %311 = vector.broadcast %310 : f32 to vector<8x360xf32>
    %312 = arith.mulf %196, %311 : vector<8x360xf32>
    %313 = arith.addf %309, %312 : vector<8x360xf32>
    %c24 = arith.constant 24 : index
    %314 = memref.load %arg3[%c24] : memref<80xf32, #tpu.memory_space<smem>>
    %315 = vector.broadcast %314 : f32 to vector<8x360xf32>
    %316 = arith.mulf %197, %315 : vector<8x360xf32>
    %317 = arith.addf %313, %316 : vector<8x360xf32>
    %c25 = arith.constant 25 : index
    %318 = memref.load %arg3[%c25] : memref<80xf32, #tpu.memory_space<smem>>
    %319 = vector.broadcast %318 : f32 to vector<8x360xf32>
    %320 = arith.mulf %198, %319 : vector<8x360xf32>
    %321 = arith.addf %317, %320 : vector<8x360xf32>
    %c26 = arith.constant 26 : index
    %322 = memref.load %arg3[%c26] : memref<80xf32, #tpu.memory_space<smem>>
    %323 = vector.broadcast %322 : f32 to vector<8x360xf32>
    %324 = arith.mulf %199, %323 : vector<8x360xf32>
    %325 = arith.addf %321, %324 : vector<8x360xf32>
    %c74 = arith.constant 74 : index
    %326 = memref.load %arg3[%c74] : memref<80xf32, #tpu.memory_space<smem>>
    %327 = vector.broadcast %326 : f32 to vector<8x360xf32>
    %328 = arith.addf %325, %327 : vector<8x360xf32>
    %cst_81 = arith.constant 0.000000e+00 : f32
    %329 = vector.broadcast %cst_81 : f32 to vector<8x360xf32>
    %330 = arith.maximumf %328, %329 : vector<8x360xf32>
    %331 = arith.truncf %330 : vector<8x360xf32> to vector<8x360xbf16>
    %c2_82 = arith.constant 2 : index
    %c0_83 = arith.constant 0 : index
    %c0_84 = arith.constant 0 : index
    %332 = vector.load %arg6[%c2_82, %c0_83, %c0_84] : memref<8x360x200xbf16, #tpu.memory_space<vmem>>, vector<1x360x200xbf16>
    %333 = vector.shape_cast %332 : vector<1x360x200xbf16> to vector<360x200xbf16>
    %cst_85 = arith.constant dense<0.000000e+00> : vector<8x200xf32>
    %334 = tpu.matmul %331, %333, %cst_85 {dimension_numbers = #tpu.dot_dimension_numbers<[1], [0], [0], [1], [0, 0, 1, 1], [], []>} : vector<8x360xbf16>, vector<360x200xbf16>, vector<8x200xf32> -> vector<8x200xf32>
    %335 = arith.addf %290, %334 : vector<8x200xf32>
    %c27 = arith.constant 27 : index
    %336 = memref.load %arg3[%c27] : memref<80xf32, #tpu.memory_space<smem>>
    %337 = vector.broadcast %336 : f32 to vector<8x360xf32>
    %338 = arith.mulf %191, %337 : vector<8x360xf32>
    %c28 = arith.constant 28 : index
    %339 = memref.load %arg3[%c28] : memref<80xf32, #tpu.memory_space<smem>>
    %340 = vector.broadcast %339 : f32 to vector<8x360xf32>
    %341 = arith.mulf %192, %340 : vector<8x360xf32>
    %342 = arith.addf %338, %341 : vector<8x360xf32>
    %c29 = arith.constant 29 : index
    %343 = memref.load %arg3[%c29] : memref<80xf32, #tpu.memory_space<smem>>
    %344 = vector.broadcast %343 : f32 to vector<8x360xf32>
    %345 = arith.mulf %193, %344 : vector<8x360xf32>
    %346 = arith.addf %342, %345 : vector<8x360xf32>
    %c30 = arith.constant 30 : index
    %347 = memref.load %arg3[%c30] : memref<80xf32, #tpu.memory_space<smem>>
    %348 = vector.broadcast %347 : f32 to vector<8x360xf32>
    %349 = arith.mulf %194, %348 : vector<8x360xf32>
    %350 = arith.addf %346, %349 : vector<8x360xf32>
    %c31 = arith.constant 31 : index
    %351 = memref.load %arg3[%c31] : memref<80xf32, #tpu.memory_space<smem>>
    %352 = vector.broadcast %351 : f32 to vector<8x360xf32>
    %353 = arith.mulf %195, %352 : vector<8x360xf32>
    %354 = arith.addf %350, %353 : vector<8x360xf32>
    %c32 = arith.constant 32 : index
    %355 = memref.load %arg3[%c32] : memref<80xf32, #tpu.memory_space<smem>>
    %356 = vector.broadcast %355 : f32 to vector<8x360xf32>
    %357 = arith.mulf %196, %356 : vector<8x360xf32>
    %358 = arith.addf %354, %357 : vector<8x360xf32>
    %c33 = arith.constant 33 : index
    %359 = memref.load %arg3[%c33] : memref<80xf32, #tpu.memory_space<smem>>
    %360 = vector.broadcast %359 : f32 to vector<8x360xf32>
    %361 = arith.mulf %197, %360 : vector<8x360xf32>
    %362 = arith.addf %358, %361 : vector<8x360xf32>
    %c34 = arith.constant 34 : index
    %363 = memref.load %arg3[%c34] : memref<80xf32, #tpu.memory_space<smem>>
    %364 = vector.broadcast %363 : f32 to vector<8x360xf32>
    %365 = arith.mulf %198, %364 : vector<8x360xf32>
    %366 = arith.addf %362, %365 : vector<8x360xf32>
    %c35 = arith.constant 35 : index
    %367 = memref.load %arg3[%c35] : memref<80xf32, #tpu.memory_space<smem>>
    %368 = vector.broadcast %367 : f32 to vector<8x360xf32>
    %369 = arith.mulf %199, %368 : vector<8x360xf32>
    %370 = arith.addf %366, %369 : vector<8x360xf32>
    %c75 = arith.constant 75 : index
    %371 = memref.load %arg3[%c75] : memref<80xf32, #tpu.memory_space<smem>>
    %372 = vector.broadcast %371 : f32 to vector<8x360xf32>
    %373 = arith.addf %370, %372 : vector<8x360xf32>
    %cst_86 = arith.constant 0.000000e+00 : f32
    %374 = vector.broadcast %cst_86 : f32 to vector<8x360xf32>
    %375 = arith.maximumf %373, %374 : vector<8x360xf32>
    %376 = arith.truncf %375 : vector<8x360xf32> to vector<8x360xbf16>
    %c3_87 = arith.constant 3 : index
    %c0_88 = arith.constant 0 : index
    %c0_89 = arith.constant 0 : index
    %377 = vector.load %arg6[%c3_87, %c0_88, %c0_89] : memref<8x360x200xbf16, #tpu.memory_space<vmem>>, vector<1x360x200xbf16>
    %378 = vector.shape_cast %377 : vector<1x360x200xbf16> to vector<360x200xbf16>
    %cst_90 = arith.constant dense<0.000000e+00> : vector<8x200xf32>
    %379 = tpu.matmul %376, %378, %cst_90 {dimension_numbers = #tpu.dot_dimension_numbers<[1], [0], [0], [1], [0, 0, 1, 1], [], []>} : vector<8x360xbf16>, vector<360x200xbf16>, vector<8x200xf32> -> vector<8x200xf32>
    %380 = arith.addf %335, %379 : vector<8x200xf32>
    %c36 = arith.constant 36 : index
    %381 = memref.load %arg3[%c36] : memref<80xf32, #tpu.memory_space<smem>>
    %382 = vector.broadcast %381 : f32 to vector<8x360xf32>
    %383 = arith.mulf %191, %382 : vector<8x360xf32>
    %c37 = arith.constant 37 : index
    %384 = memref.load %arg3[%c37] : memref<80xf32, #tpu.memory_space<smem>>
    %385 = vector.broadcast %384 : f32 to vector<8x360xf32>
    %386 = arith.mulf %192, %385 : vector<8x360xf32>
    %387 = arith.addf %383, %386 : vector<8x360xf32>
    %c38 = arith.constant 38 : index
    %388 = memref.load %arg3[%c38] : memref<80xf32, #tpu.memory_space<smem>>
    %389 = vector.broadcast %388 : f32 to vector<8x360xf32>
    %390 = arith.mulf %193, %389 : vector<8x360xf32>
    %391 = arith.addf %387, %390 : vector<8x360xf32>
    %c39 = arith.constant 39 : index
    %392 = memref.load %arg3[%c39] : memref<80xf32, #tpu.memory_space<smem>>
    %393 = vector.broadcast %392 : f32 to vector<8x360xf32>
    %394 = arith.mulf %194, %393 : vector<8x360xf32>
    %395 = arith.addf %391, %394 : vector<8x360xf32>
    %c40 = arith.constant 40 : index
    %396 = memref.load %arg3[%c40] : memref<80xf32, #tpu.memory_space<smem>>
    %397 = vector.broadcast %396 : f32 to vector<8x360xf32>
    %398 = arith.mulf %195, %397 : vector<8x360xf32>
    %399 = arith.addf %395, %398 : vector<8x360xf32>
    %c41 = arith.constant 41 : index
    %400 = memref.load %arg3[%c41] : memref<80xf32, #tpu.memory_space<smem>>
    %401 = vector.broadcast %400 : f32 to vector<8x360xf32>
    %402 = arith.mulf %196, %401 : vector<8x360xf32>
    %403 = arith.addf %399, %402 : vector<8x360xf32>
    %c42 = arith.constant 42 : index
    %404 = memref.load %arg3[%c42] : memref<80xf32, #tpu.memory_space<smem>>
    %405 = vector.broadcast %404 : f32 to vector<8x360xf32>
    %406 = arith.mulf %197, %405 : vector<8x360xf32>
    %407 = arith.addf %403, %406 : vector<8x360xf32>
    %c43 = arith.constant 43 : index
    %408 = memref.load %arg3[%c43] : memref<80xf32, #tpu.memory_space<smem>>
    %409 = vector.broadcast %408 : f32 to vector<8x360xf32>
    %410 = arith.mulf %198, %409 : vector<8x360xf32>
    %411 = arith.addf %407, %410 : vector<8x360xf32>
    %c44 = arith.constant 44 : index
    %412 = memref.load %arg3[%c44] : memref<80xf32, #tpu.memory_space<smem>>
    %413 = vector.broadcast %412 : f32 to vector<8x360xf32>
    %414 = arith.mulf %199, %413 : vector<8x360xf32>
    %415 = arith.addf %411, %414 : vector<8x360xf32>
    %c76 = arith.constant 76 : index
    %416 = memref.load %arg3[%c76] : memref<80xf32, #tpu.memory_space<smem>>
    %417 = vector.broadcast %416 : f32 to vector<8x360xf32>
    %418 = arith.addf %415, %417 : vector<8x360xf32>
    %cst_91 = arith.constant 0.000000e+00 : f32
    %419 = vector.broadcast %cst_91 : f32 to vector<8x360xf32>
    %420 = arith.maximumf %418, %419 : vector<8x360xf32>
    %421 = arith.truncf %420 : vector<8x360xf32> to vector<8x360xbf16>
    %c4_92 = arith.constant 4 : index
    %c0_93 = arith.constant 0 : index
    %c0_94 = arith.constant 0 : index
    %422 = vector.load %arg6[%c4_92, %c0_93, %c0_94] : memref<8x360x200xbf16, #tpu.memory_space<vmem>>, vector<1x360x200xbf16>
    %423 = vector.shape_cast %422 : vector<1x360x200xbf16> to vector<360x200xbf16>
    %cst_95 = arith.constant dense<0.000000e+00> : vector<8x200xf32>
    %424 = tpu.matmul %421, %423, %cst_95 {dimension_numbers = #tpu.dot_dimension_numbers<[1], [0], [0], [1], [0, 0, 1, 1], [], []>} : vector<8x360xbf16>, vector<360x200xbf16>, vector<8x200xf32> -> vector<8x200xf32>
    %425 = arith.addf %380, %424 : vector<8x200xf32>
    %c45 = arith.constant 45 : index
    %426 = memref.load %arg3[%c45] : memref<80xf32, #tpu.memory_space<smem>>
    %427 = vector.broadcast %426 : f32 to vector<8x360xf32>
    %428 = arith.mulf %191, %427 : vector<8x360xf32>
    %c46 = arith.constant 46 : index
    %429 = memref.load %arg3[%c46] : memref<80xf32, #tpu.memory_space<smem>>
    %430 = vector.broadcast %429 : f32 to vector<8x360xf32>
    %431 = arith.mulf %192, %430 : vector<8x360xf32>
    %432 = arith.addf %428, %431 : vector<8x360xf32>
    %c47 = arith.constant 47 : index
    %433 = memref.load %arg3[%c47] : memref<80xf32, #tpu.memory_space<smem>>
    %434 = vector.broadcast %433 : f32 to vector<8x360xf32>
    %435 = arith.mulf %193, %434 : vector<8x360xf32>
    %436 = arith.addf %432, %435 : vector<8x360xf32>
    %c48 = arith.constant 48 : index
    %437 = memref.load %arg3[%c48] : memref<80xf32, #tpu.memory_space<smem>>
    %438 = vector.broadcast %437 : f32 to vector<8x360xf32>
    %439 = arith.mulf %194, %438 : vector<8x360xf32>
    %440 = arith.addf %436, %439 : vector<8x360xf32>
    %c49 = arith.constant 49 : index
    %441 = memref.load %arg3[%c49] : memref<80xf32, #tpu.memory_space<smem>>
    %442 = vector.broadcast %441 : f32 to vector<8x360xf32>
    %443 = arith.mulf %195, %442 : vector<8x360xf32>
    %444 = arith.addf %440, %443 : vector<8x360xf32>
    %c50 = arith.constant 50 : index
    %445 = memref.load %arg3[%c50] : memref<80xf32, #tpu.memory_space<smem>>
    %446 = vector.broadcast %445 : f32 to vector<8x360xf32>
    %447 = arith.mulf %196, %446 : vector<8x360xf32>
    %448 = arith.addf %444, %447 : vector<8x360xf32>
    %c51 = arith.constant 51 : index
    %449 = memref.load %arg3[%c51] : memref<80xf32, #tpu.memory_space<smem>>
    %450 = vector.broadcast %449 : f32 to vector<8x360xf32>
    %451 = arith.mulf %197, %450 : vector<8x360xf32>
    %452 = arith.addf %448, %451 : vector<8x360xf32>
    %c52 = arith.constant 52 : index
    %453 = memref.load %arg3[%c52] : memref<80xf32, #tpu.memory_space<smem>>
    %454 = vector.broadcast %453 : f32 to vector<8x360xf32>
    %455 = arith.mulf %198, %454 : vector<8x360xf32>
    %456 = arith.addf %452, %455 : vector<8x360xf32>
    %c53 = arith.constant 53 : index
    %457 = memref.load %arg3[%c53] : memref<80xf32, #tpu.memory_space<smem>>
    %458 = vector.broadcast %457 : f32 to vector<8x360xf32>
    %459 = arith.mulf %199, %458 : vector<8x360xf32>
    %460 = arith.addf %456, %459 : vector<8x360xf32>
    %c77 = arith.constant 77 : index
    %461 = memref.load %arg3[%c77] : memref<80xf32, #tpu.memory_space<smem>>
    %462 = vector.broadcast %461 : f32 to vector<8x360xf32>
    %463 = arith.addf %460, %462 : vector<8x360xf32>
    %cst_96 = arith.constant 0.000000e+00 : f32
    %464 = vector.broadcast %cst_96 : f32 to vector<8x360xf32>
    %465 = arith.maximumf %463, %464 : vector<8x360xf32>
    %466 = arith.truncf %465 : vector<8x360xf32> to vector<8x360xbf16>
    %c5_97 = arith.constant 5 : index
    %c0_98 = arith.constant 0 : index
    %c0_99 = arith.constant 0 : index
    %467 = vector.load %arg6[%c5_97, %c0_98, %c0_99] : memref<8x360x200xbf16, #tpu.memory_space<vmem>>, vector<1x360x200xbf16>
    %468 = vector.shape_cast %467 : vector<1x360x200xbf16> to vector<360x200xbf16>
    %cst_100 = arith.constant dense<0.000000e+00> : vector<8x200xf32>
    %469 = tpu.matmul %466, %468, %cst_100 {dimension_numbers = #tpu.dot_dimension_numbers<[1], [0], [0], [1], [0, 0, 1, 1], [], []>} : vector<8x360xbf16>, vector<360x200xbf16>, vector<8x200xf32> -> vector<8x200xf32>
    %470 = arith.addf %425, %469 : vector<8x200xf32>
    %c54 = arith.constant 54 : index
    %471 = memref.load %arg3[%c54] : memref<80xf32, #tpu.memory_space<smem>>
    %472 = vector.broadcast %471 : f32 to vector<8x360xf32>
    %473 = arith.mulf %191, %472 : vector<8x360xf32>
    %c55 = arith.constant 55 : index
    %474 = memref.load %arg3[%c55] : memref<80xf32, #tpu.memory_space<smem>>
    %475 = vector.broadcast %474 : f32 to vector<8x360xf32>
    %476 = arith.mulf %192, %475 : vector<8x360xf32>
    %477 = arith.addf %473, %476 : vector<8x360xf32>
    %c56 = arith.constant 56 : index
    %478 = memref.load %arg3[%c56] : memref<80xf32, #tpu.memory_space<smem>>
    %479 = vector.broadcast %478 : f32 to vector<8x360xf32>
    %480 = arith.mulf %193, %479 : vector<8x360xf32>
    %481 = arith.addf %477, %480 : vector<8x360xf32>
    %c57 = arith.constant 57 : index
    %482 = memref.load %arg3[%c57] : memref<80xf32, #tpu.memory_space<smem>>
    %483 = vector.broadcast %482 : f32 to vector<8x360xf32>
    %484 = arith.mulf %194, %483 : vector<8x360xf32>
    %485 = arith.addf %481, %484 : vector<8x360xf32>
    %c58 = arith.constant 58 : index
    %486 = memref.load %arg3[%c58] : memref<80xf32, #tpu.memory_space<smem>>
    %487 = vector.broadcast %486 : f32 to vector<8x360xf32>
    %488 = arith.mulf %195, %487 : vector<8x360xf32>
    %489 = arith.addf %485, %488 : vector<8x360xf32>
    %c59 = arith.constant 59 : index
    %490 = memref.load %arg3[%c59] : memref<80xf32, #tpu.memory_space<smem>>
    %491 = vector.broadcast %490 : f32 to vector<8x360xf32>
    %492 = arith.mulf %196, %491 : vector<8x360xf32>
    %493 = arith.addf %489, %492 : vector<8x360xf32>
    %c60 = arith.constant 60 : index
    %494 = memref.load %arg3[%c60] : memref<80xf32, #tpu.memory_space<smem>>
    %495 = vector.broadcast %494 : f32 to vector<8x360xf32>
    %496 = arith.mulf %197, %495 : vector<8x360xf32>
    %497 = arith.addf %493, %496 : vector<8x360xf32>
    %c61 = arith.constant 61 : index
    %498 = memref.load %arg3[%c61] : memref<80xf32, #tpu.memory_space<smem>>
    %499 = vector.broadcast %498 : f32 to vector<8x360xf32>
    %500 = arith.mulf %198, %499 : vector<8x360xf32>
    %501 = arith.addf %497, %500 : vector<8x360xf32>
    %c62 = arith.constant 62 : index
    %502 = memref.load %arg3[%c62] : memref<80xf32, #tpu.memory_space<smem>>
    %503 = vector.broadcast %502 : f32 to vector<8x360xf32>
    %504 = arith.mulf %199, %503 : vector<8x360xf32>
    %505 = arith.addf %501, %504 : vector<8x360xf32>
    %c78 = arith.constant 78 : index
    %506 = memref.load %arg3[%c78] : memref<80xf32, #tpu.memory_space<smem>>
    %507 = vector.broadcast %506 : f32 to vector<8x360xf32>
    %508 = arith.addf %505, %507 : vector<8x360xf32>
    %cst_101 = arith.constant 0.000000e+00 : f32
    %509 = vector.broadcast %cst_101 : f32 to vector<8x360xf32>
    %510 = arith.maximumf %508, %509 : vector<8x360xf32>
    %511 = arith.truncf %510 : vector<8x360xf32> to vector<8x360xbf16>
    %c6_102 = arith.constant 6 : index
    %c0_103 = arith.constant 0 : index
    %c0_104 = arith.constant 0 : index
    %512 = vector.load %arg6[%c6_102, %c0_103, %c0_104] : memref<8x360x200xbf16, #tpu.memory_space<vmem>>, vector<1x360x200xbf16>
    %513 = vector.shape_cast %512 : vector<1x360x200xbf16> to vector<360x200xbf16>
    %cst_105 = arith.constant dense<0.000000e+00> : vector<8x200xf32>
    %514 = tpu.matmul %511, %513, %cst_105 {dimension_numbers = #tpu.dot_dimension_numbers<[1], [0], [0], [1], [0, 0, 1, 1], [], []>} : vector<8x360xbf16>, vector<360x200xbf16>, vector<8x200xf32> -> vector<8x200xf32>
    %515 = arith.addf %470, %514 : vector<8x200xf32>
    %c63 = arith.constant 63 : index
    %516 = memref.load %arg3[%c63] : memref<80xf32, #tpu.memory_space<smem>>
    %517 = vector.broadcast %516 : f32 to vector<8x360xf32>
    %518 = arith.mulf %191, %517 : vector<8x360xf32>
    %c64 = arith.constant 64 : index
    %519 = memref.load %arg3[%c64] : memref<80xf32, #tpu.memory_space<smem>>
    %520 = vector.broadcast %519 : f32 to vector<8x360xf32>
    %521 = arith.mulf %192, %520 : vector<8x360xf32>
    %522 = arith.addf %518, %521 : vector<8x360xf32>
    %c65 = arith.constant 65 : index
    %523 = memref.load %arg3[%c65] : memref<80xf32, #tpu.memory_space<smem>>
    %524 = vector.broadcast %523 : f32 to vector<8x360xf32>
    %525 = arith.mulf %193, %524 : vector<8x360xf32>
    %526 = arith.addf %522, %525 : vector<8x360xf32>
    %c66 = arith.constant 66 : index
    %527 = memref.load %arg3[%c66] : memref<80xf32, #tpu.memory_space<smem>>
    %528 = vector.broadcast %527 : f32 to vector<8x360xf32>
    %529 = arith.mulf %194, %528 : vector<8x360xf32>
    %530 = arith.addf %526, %529 : vector<8x360xf32>
    %c67 = arith.constant 67 : index
    %531 = memref.load %arg3[%c67] : memref<80xf32, #tpu.memory_space<smem>>
    %532 = vector.broadcast %531 : f32 to vector<8x360xf32>
    %533 = arith.mulf %195, %532 : vector<8x360xf32>
    %534 = arith.addf %530, %533 : vector<8x360xf32>
    %c68 = arith.constant 68 : index
    %535 = memref.load %arg3[%c68] : memref<80xf32, #tpu.memory_space<smem>>
    %536 = vector.broadcast %535 : f32 to vector<8x360xf32>
    %537 = arith.mulf %196, %536 : vector<8x360xf32>
    %538 = arith.addf %534, %537 : vector<8x360xf32>
    %c69 = arith.constant 69 : index
    %539 = memref.load %arg3[%c69] : memref<80xf32, #tpu.memory_space<smem>>
    %540 = vector.broadcast %539 : f32 to vector<8x360xf32>
    %541 = arith.mulf %197, %540 : vector<8x360xf32>
    %542 = arith.addf %538, %541 : vector<8x360xf32>
    %c70 = arith.constant 70 : index
    %543 = memref.load %arg3[%c70] : memref<80xf32, #tpu.memory_space<smem>>
    %544 = vector.broadcast %543 : f32 to vector<8x360xf32>
    %545 = arith.mulf %198, %544 : vector<8x360xf32>
    %546 = arith.addf %542, %545 : vector<8x360xf32>
    %c71 = arith.constant 71 : index
    %547 = memref.load %arg3[%c71] : memref<80xf32, #tpu.memory_space<smem>>
    %548 = vector.broadcast %547 : f32 to vector<8x360xf32>
    %549 = arith.mulf %199, %548 : vector<8x360xf32>
    %550 = arith.addf %546, %549 : vector<8x360xf32>
    %c79 = arith.constant 79 : index
    %551 = memref.load %arg3[%c79] : memref<80xf32, #tpu.memory_space<smem>>
    %552 = vector.broadcast %551 : f32 to vector<8x360xf32>
    %553 = arith.addf %550, %552 : vector<8x360xf32>
    %cst_106 = arith.constant 0.000000e+00 : f32
    %554 = vector.broadcast %cst_106 : f32 to vector<8x360xf32>
    %555 = arith.maximumf %553, %554 : vector<8x360xf32>
    %556 = arith.truncf %555 : vector<8x360xf32> to vector<8x360xbf16>
    %c7_107 = arith.constant 7 : index
    %c0_108 = arith.constant 0 : index
    %c0_109 = arith.constant 0 : index
    %557 = vector.load %arg6[%c7_107, %c0_108, %c0_109] : memref<8x360x200xbf16, #tpu.memory_space<vmem>>, vector<1x360x200xbf16>
    %558 = vector.shape_cast %557 : vector<1x360x200xbf16> to vector<360x200xbf16>
    %cst_110 = arith.constant dense<0.000000e+00> : vector<8x200xf32>
    %559 = tpu.matmul %556, %558, %cst_110 {dimension_numbers = #tpu.dot_dimension_numbers<[1], [0], [0], [1], [0, 0, 1, 1], [], []>} : vector<8x360xbf16>, vector<360x200xbf16>, vector<8x200xf32> -> vector<8x200xf32>
    %560 = arith.addf %515, %559 : vector<8x200xf32>
    %c0_111 = arith.constant 0 : index
    %c0_112 = arith.constant 0 : index
    %561 = vector.load %arg7[%c0_111, %c0_112] : memref<1x200xf32, #tpu.memory_space<vmem>>, vector<1x200xf32>
    %562 = vector.broadcast %561 : vector<1x200xf32> to vector<8x200xf32>
    %563 = arith.addf %560, %562 : vector<8x200xf32>
    %cst_113 = arith.constant 0.000000e+00 : f32
    %564 = vector.broadcast %cst_113 : f32 to vector<8x200xf32>
    %565 = arith.maximumf %563, %564 : vector<8x200xf32>
    %566 = arith.truncf %565 : vector<8x200xf32> to vector<8x200xbf16>
    %c0_114 = arith.constant 0 : index
    %c0_115 = arith.constant 0 : index
    %567 = vector.load %arg8[%c0_114, %c0_115] : memref<200x64xbf16, #tpu.memory_space<vmem>>, vector<200x64xbf16>
    %cst_116 = arith.constant dense<0.000000e+00> : vector<8x64xf32>
    %568 = tpu.matmul %566, %567, %cst_116 {dimension_numbers = #tpu.dot_dimension_numbers<[1], [0], [0], [1], [0, 0, 1, 1], [], []>} : vector<8x200xbf16>, vector<200x64xbf16>, vector<8x64xf32> -> vector<8x64xf32>
    %c0_117 = arith.constant 0 : index
    %c0_118 = arith.constant 0 : index
    %569 = vector.load %arg9[%c0_117, %c0_118] : memref<1x64xf32, #tpu.memory_space<vmem>>, vector<1x64xf32>
    %570 = vector.broadcast %569 : vector<1x64xf32> to vector<8x64xf32>
    %571 = arith.addf %568, %570 : vector<8x64xf32>
    %572 = arith.negf %571 : vector<8x64xf32>
    %573 = math.exp %572 : vector<8x64xf32>
    %cst_119 = arith.constant 1.000000e+00 : f32
    %574 = vector.broadcast %cst_119 : f32 to vector<8x64xf32>
    %575 = arith.addf %574, %573 : vector<8x64xf32>
    %576 = arith.divf %574, %575 : vector<8x64xf32>
    %c0_120 = arith.constant 0 : index
    %c0_121 = arith.constant 0 : index
    %577 = vector.load %arg10[%c0_120, %c0_121] : memref<8x64xf32, #tpu.memory_space<vmem>>, vector<8x64xf32>
    tpu.vector_store %arg10[%c0_120, %c0_121], %576 {strides = array<i32>} : memref<8x64xf32, #tpu.memory_space<vmem>>, vector<8x64xf32>,
    return
  }
  func.func @transform_0(%arg0: i32, %arg1: memref<8xi32, #tpu.memory_space<smem>>, %arg2: memref<8xi32, #tpu.memory_space<smem>>) -> i32 {
    %c0_i32 = arith.constant 0 : i32
    %c0_i32_0 = arith.constant 0 : i32
    return %c0_i32 : i32
  }
  func.func @transform_1(%arg0: i32, %arg1: memref<8xi32, #tpu.memory_space<smem>>, %arg2: memref<8xi32, #tpu.memory_space<smem>>) -> (i32, i32) {
    %c0_i32 = arith.constant 0 : i32
    %c0_i32_0 = arith.constant 0 : i32
    %c0_i32_1 = arith.constant 0 : i32
    return %c0_i32, %c0_i32_0 : i32, i32
  }
  func.func @transform_2(%arg0: i32, %arg1: memref<8xi32, #tpu.memory_space<smem>>, %arg2: memref<8xi32, #tpu.memory_space<smem>>) -> (i32, i32) {
    %c0_i32 = arith.constant 0 : i32
    %c0_i32_0 = arith.constant 0 : i32
    %c0_i32_1 = arith.constant 0 : i32
    return %c0_i32, %c0_i32_0 : i32, i32
  }
  func.func @transform_3(%arg0: i32, %arg1: memref<8xi32, #tpu.memory_space<smem>>, %arg2: memref<8xi32, #tpu.memory_space<smem>>) -> (i32, i32, i32) {
    %c0_i32 = arith.constant 0 : i32
    %c0_i32_0 = arith.constant 0 : i32
    %c0_i32_1 = arith.constant 0 : i32
    %c0_i32_2 = arith.constant 0 : i32
    return %c0_i32, %c0_i32_0, %c0_i32_1 : i32, i32, i32
  }
  func.func @transform_4(%arg0: i32, %arg1: memref<8xi32, #tpu.memory_space<smem>>, %arg2: memref<8xi32, #tpu.memory_space<smem>>) -> (i32, i32) {
    %c0_i32 = arith.constant 0 : i32
    %c0_i32_0 = arith.constant 0 : i32
    %c0_i32_1 = arith.constant 0 : i32
    return %c0_i32, %c0_i32_0 : i32, i32
  }
  func.func @transform_5(%arg0: i32, %arg1: memref<8xi32, #tpu.memory_space<smem>>, %arg2: memref<8xi32, #tpu.memory_space<smem>>) -> (i32, i32) {
    %c0_i32 = arith.constant 0 : i32
    %c0_i32_0 = arith.constant 0 : i32
    %c0_i32_1 = arith.constant 0 : i32
    return %c0_i32, %c0_i32_0 : i32, i32
  }
  func.func @transform_6(%arg0: i32, %arg1: memref<8xi32, #tpu.memory_space<smem>>, %arg2: memref<8xi32, #tpu.memory_space<smem>>) -> (i32, i32) {
    %c0_i32 = arith.constant 0 : i32
    %c0_i32_0 = arith.constant 0 : i32
    %c0_i32_1 = arith.constant 0 : i32
    return %c0_i32, %c0_i32_0 : i32, i32
  }
  func.func @transform_7(%arg0: i32, %arg1: memref<8xi32, #tpu.memory_space<smem>>, %arg2: memref<8xi32, #tpu.memory_space<smem>>) -> (i32, i32) {
    %c0_i32 = arith.constant 0 : i32
    %c0_i32_0 = arith.constant 0 : i32
    return %arg0, %c0_i32 : i32, i32
  }
}

</mosaic_0001>

<llo_original>
// kernel: conve_forward.1
$region0: #{conve_forward.1}
  #allocation0 [shape = 'u32[]', space=smem, size = 0x4, offset = 0x4, fixed_abs, tag = 'smem constant byte address 0x4 - core index']
  #allocation1 [shape = 'u32[144,128]{1,0:T(1,128)}', space=vmem, size = 0x12000, scoped, tag = 'internal scratch']
  #allocation2 [shape = 'f32[8,512]{1,0:T(8,128)}', space=vmem, size = 0x4000, scoped, tag = 'scratch operand']
  #allocation3 [shape = 's32[1]{0}', space=sflag, size = 0x4, scoped, tag = 'scoped memory for conve_forward.1']
  #allocation4 [shape = 'u8[512]{0}', space=smem, size = 0x200, scoped, tag = 'prefetched SMEM operand 0']
  #allocation5 [shape = 'u8[512]{0}', space=smem, size = 0x200, scoped, tag = 'prefetched SMEM operand 1']
  %s0 = inlined_call_operand.vmem [shape: s32[8], index: 0, kind: input, shape index: {}]
  %s1 = inlined_call_operand.vmem [shape: s32[8], index: 1, kind: input, shape index: {}]
  %s2 = inlined_call_operand.vmem [shape: f32[80], index: 2, kind: input, shape index: {}]
  %s3 = inlined_call_operand.vmem [shape: f32[64,200], index: 3, kind: input, shape index: {}]
  %s4 = inlined_call_operand.vmem [shape: f32[16,200], index: 4, kind: input, shape index: {}]
  %s5 = inlined_call_operand.vmem [shape: bf16[8,360,200], index: 5, kind: input, shape index: {}]
  %s6 = inlined_call_operand.vmem [shape: f32[1,200], index: 6, kind: input, shape index: {}]
  %s7 = inlined_call_operand.vmem [shape: bf16[200,64], index: 7, kind: input, shape index: {}]
  %s8 = inlined_call_operand.vmem [shape: f32[1,64], index: 8, kind: input, shape index: {}]
  %s9 = inlined_call_operand.vmem [shape: f32[8,64], index: 9, kind: output, shape index: {}]
  %s10 = sld [smem:[#allocation0]]
  $region42: #{conve_forward.1} parent=0
    _
  %s12 = ssub.s32 1, %s10
  %s13 = scalar_select 0, %s12, %s10
  %s14 = sshll.u32 %s0, 4
  %s15 = int_to_ptr.vmem [resolvable:$true] %s14
  %17 = dma.vmem_to_smem %s15, 16, [#allocation4], [#allocation3]
  %s18 = sshll.u32 %s1, 4
  %s19 = int_to_ptr.vmem [resolvable:$true] %s18
  %21 = dma.vmem_to_smem %s19, 16, [#allocation5], [#allocation3]
  %22 = dma.done [#allocation3], 32
  %23 = sfence
  $region1: #{conve_forward.1} parent=0
    #allocation6 [shape = 'u8[512]{0}', space=smem, size = 0x200, scoped, tag = 'input window, operand 2, single buffered']
    #allocation7 [shape = 's32[1]{0}', space=sflag, size = 0x4, scoped, tag = 'scoped memory for conve_forward.1']
    %24 = vsyncpa [#allocation7], 0
    // Predicated region
    $region2: #{conve_forward.1} parent=1 // pred_check
      _
    $region3: #{conve_forward.1} parent=1 // pred_check_branch
      %26 = sbr.rel (0) target = $region5
    $region4: #{conve_forward.1} parent=1 // pred_region
      %s28 = ssub.s32 16, 16
      %29 = vsyncadd [#allocation7], %s28
      %s31 = sshll.u32 %s2, 4
      %s32 = int_to_ptr.vmem [resolvable:$true] %s31
      %34 = dma.vmem_to_smem %s32, 16, [#allocation6], [#allocation7]
    $region5: #{conve_forward.1} parent=1 // pred_fallthru
      _
    // Predicated region
    $region6: #{conve_forward.1} parent=1 // pred_check
      _
    $region7: #{conve_forward.1} parent=1 // pred_check_branch
      %36 = sbr.rel (0) target = $region9
    $region8: #{conve_forward.1} parent=1 // pred_region
      _
    $region9: #{conve_forward.1} parent=1 // pred_fallthru
      _
    // Predicated region
    $region10: #{conve_forward.1} parent=1 // pred_check
      _
    $region11: #{conve_forward.1} parent=1 // pred_check_branch
      %38 = sbr.rel (0) target = $region13
    $region12: #{conve_forward.1} parent=1 // pred_region
      _
    $region13: #{conve_forward.1} parent=1 // pred_fallthru
      _
    // Predicated region
    $region14: #{conve_forward.1} parent=1 // pred_check
      _
    $region15: #{conve_forward.1} parent=1 // pred_check_branch
      %40 = sbr.rel (0) target = $region17
    $region16: #{conve_forward.1} parent=1 // pred_region
      _
    $region17: #{conve_forward.1} parent=1 // pred_fallthru
      _
    // Predicated region
    $region18: #{conve_forward.1} parent=1 // pred_check
      _
    $region19: #{conve_forward.1} parent=1 // pred_check_branch
      %42 = sbr.rel (0) target = $region21
    $region20: #{conve_forward.1} parent=1 // pred_region
      _
    $region21: #{conve_forward.1} parent=1 // pred_fallthru
      _
    // Predicated region
    $region22: #{conve_forward.1} parent=1 // pred_check
      _
    $region23: #{conve_forward.1} parent=1 // pred_check_branch
      %44 = sbr.rel (0) target = $region25
    $region24: #{conve_forward.1} parent=1 // pred_region
      _
    $region25: #{conve_forward.1} parent=1 // pred_fallthru
      _
    // Predicated region
    $region26: #{conve_forward.1} parent=1 // pred_check
      _
    $region27: #{conve_forward.1} parent=1 // pred_check_branch
      %46 = sbr.rel (0) target = $region29
    $region28: #{conve_forward.1} parent=1 // pred_region
      _
    $region29: #{conve_forward.1} parent=1 // pred_fallthru
      _
    // Predicated region
    $region30: #{conve_forward.1} parent=1 // pred_check
      _
    $region31: #{conve_forward.1} parent=1 // pred_check_branch
      %48 = sbr.rel (0) target = $region33
    $region32: #{conve_forward.1} parent=1 // pred_region
      %49 = dma.done [#allocation7], 16
    $region33: #{conve_forward.1} parent=1 // pred_fallthru
      _
    %50 = sfence
    %v52 = vlaneseq
    %v53 = vshrl.u32 %v52, 7
    %v54 = vlaneseq
    %v55 = vand.u32 %v54, 127
    %s56 = smul.u32 0, 8
    %s57 = sld [smem:[#allocation4 + %s56]]
    %s58 = sld [smem:[#allocation5 + %s56]]
    %vm59 = vcmp.eq.s32.totalorder %v53, 0
    %v60 = vstv %s57
    %vm61 = vcmp.eq.s32.totalorder %v55, %v60
    %vm62 = vmand %vm59, %vm61
    %v63 = vsel %vm62, 1.0, 0.0
    %v64 = vstv %s58
    %vm65 = vcmp.eq.s32.totalorder %v55, %v64
    %vm66 = vmand %vm59, %vm65
    %v67 = vsel %vm66, 1.0, 0.0
    %s68 = sadd.s32 %s56, 1
    %s69 = sld [smem:[#allocation4 + %s68]]
    %s70 = sld [smem:[#allocation5 + %s68]]
    %vm71 = vcmp.eq.s32.totalorder %v53, 1
    %v72 = vstv %s69
    %vm73 = vcmp.eq.s32.totalorder %v55, %v72
    %vm74 = vmand %vm71, %vm73
    %v75 = vsel %vm74, 1.0, %v63
    %v76 = vstv %s70
    %vm77 = vcmp.eq.s32.totalorder %v55, %v76
    %vm78 = vmand %vm71, %vm77
    %v79 = vsel %vm78, 1.0, %v67
    %s80 = sadd.s32 %s56, 2
    %s81 = sld [smem:[#allocation4 + %s80]]
    %s82 = sld [smem:[#allocation5 + %s80]]
    %vm83 = vcmp.eq.s32.totalorder %v53, 2
    %v84 = vstv %s81
    %vm85 = vcmp.eq.s32.totalorder %v55, %v84
    %vm86 = vmand %vm83, %vm85
    %v87 = vsel %vm86, 1.0, %v75
    %v88 = vstv %s82
    %vm89 = vcmp.eq.s32.totalorder %v55, %v88
    %vm90 = vmand %vm83, %vm89
    %v91 = vsel %vm90, 1.0, %v79
    %s92 = sadd.s32 %s56, 3
    %s93 = sld [smem:[#allocation4 + %s92]]
    %s94 = sld [smem:[#allocation5 + %s92]]
    %vm95 = vcmp.eq.s32.totalorder %v53, 3
    %v96 = vstv %s93
    %vm97 = vcmp.eq.s32.totalorder %v55, %v96
    %vm98 = vmand %vm95, %vm97
    %v99 = vsel %vm98, 1.0, %v87
    %v100 = vstv %s94
    %vm101 = vcmp.eq.s32.totalorder %v55, %v100
    %vm102 = vmand %vm95, %vm101
    %v103 = vsel %vm102, 1.0, %v91
    %s104 = sadd.s32 %s56, 4
    %s105 = sld [smem:[#allocation4 + %s104]]
    %s106 = sld [smem:[#allocation5 + %s104]]
    %vm107 = vcmp.eq.s32.totalorder %v53, 4
    %v108 = vstv %s105
    %vm109 = vcmp.eq.s32.totalorder %v55, %v108
    %vm110 = vmand %vm107, %vm109
    %v111 = vsel %vm110, 1.0, %v99
    %v112 = vstv %s106
    %vm113 = vcmp.eq.s32.totalorder %v55, %v112
    %vm114 = vmand %vm107, %vm113
    %v115 = vsel %vm114, 1.0, %v103
    %s116 = sadd.s32 %s56, 5
    %s117 = sld [smem:[#allocation4 + %s116]]
    %s118 = sld [smem:[#allocation5 + %s116]]
    %vm119 = vcmp.eq.s32.totalorder %v53, 5
    %v120 = vstv %s117
    %vm121 = vcmp.eq.s32.totalorder %v55, %v120
    %vm122 = vmand %vm119, %vm121
    %v123 = vsel %vm122, 1.0, %v111
    %v124 = vstv %s118
    %vm125 = vcmp.eq.s32.totalorder %v55, %v124
    %vm126 = vmand %vm119, %vm125
    %v127 = vsel %vm126, 1.0, %v115
    %s128 = sadd.s32 %s56, 6
    %s129 = sld [smem:[#allocation4 + %s128]]
    %s130 = sld [smem:[#allocation5 + %s128]]
    %vm131 = vcmp.eq.s32.totalorder %v53, 6
    %v132 = vstv %s129
    %vm133 = vcmp.eq.s32.totalorder %v55, %v132
    %vm134 = vmand %vm131, %vm133
    %v135 = vsel %vm134, 1.0, %v123
    %v136 = vstv %s130
    %vm137 = vcmp.eq.s32.totalorder %v55, %v136
    %vm138 = vmand %vm131, %vm137
    %v139 = vsel %vm138, 1.0, %v127
    %s140 = sadd.s32 %s56, 7
    %s141 = sld [smem:[#allocation4 + %s140]]
    %s142 = sld [smem:[#allocation5 + %s140]]
    %vm143 = vcmp.eq.s32.totalorder %v53, 7
    %v144 = vstv %s141
    %vm145 = vcmp.eq.s32.totalorder %v55, %v144
    %vm146 = vmand %vm143, %vm145
    %v147 = vsel %vm146, 1.0, %v135
    %v148 = vstv %s142
    %vm149 = vcmp.eq.s32.totalorder %v55, %v148
    %vm150 = vmand %vm143, %vm149
    %v151 = vsel %vm150, 1.0, %v139
    %v152 = vld [vmem:[%s3] sm:$0xff]
    %v153 = vld [vmem:[%s3 + $0x8] sm:$0xff]
    %v154 = vld [vmem:[%s3 + $0x10] sm:$0xff]
    %v155 = vld [vmem:[%s3 + $0x18] sm:$0xff]
    %v156 = vld [vmem:[%s3 + $0x20] sm:$0xff]
    %v157 = vld [vmem:[%s3 + $0x28] sm:$0xff]
    %v158 = vld [vmem:[%s3 + $0x30] sm:$0xff]
    %v159 = vld [vmem:[%s3 + $0x38] sm:$0xff]
    %v160 = vld [vmem:[%s3 + $0x40] sm:$0xff]
    %v161 = vld [vmem:[%s3 + $0x48] sm:$0xff]
    %v162 = vld [vmem:[%s3 + $0x50] sm:$0xff]
    %v163 = vld [vmem:[%s3 + $0x58] sm:$0xff]
    %v164 = vld [vmem:[%s3 + $0x60] sm:$0xff]
    %v165 = vld [vmem:[%s3 + $0x68] sm:$0xff]
    %v166 = vld [vmem:[%s3 + $0x70] sm:$0xff]
    %v167 = vld [vmem:[%s3 + $0x78] sm:$0xff]
    %vm168 = vcmask 523264
    %v170 = vsel %vm168, %v147, 0
    %172 = vmatprep.subr.mxu0 %v153
    %173 = vmatpush1.msra.mxu0 %v152
    %174 = vmatprep.subr.mxu0 %v155
    %175 = vmatpush1.msra.mxu0 %v154
    %176 = vmatprep.subr.mxu0 %v157
    %177 = vmatpush1.msra.mxu0 %v156
    %178 = vmatprep.subr.mxu0 %v159
    %179 = vmatpush1.msra.mxu0 %v158
    %180 = vmatprep.subr.mxu0 %v161
    %181 = vmatpush1.msra.mxu0 %v160
    %182 = vmatprep.subr.mxu0 %v163
    %183 = vmatpush1.msra.mxu0 %v162
    %184 = vmatprep.subr.mxu0 %v165
    %185 = vmatpush1.msra.mxu0 %v164
    %186 = vmatprep.subr.mxu0 %v167
    %187 = vmatpush1.msra.mxu0 %v166
    %188 = vmatprep.subr.mxu0 0.0
    %189 = vmatpush1.msra.mxu0 0.0
    %190 = vmatprep.subr.mxu0 0.0
    %191 = vmatpush1.msra.mxu0 0.0
    %192 = vmatprep.subr.mxu0 0.0
    %193 = vmatpush1.msra.mxu0 0.0
    %194 = vmatprep.subr.mxu0 0.0
    %195 = vmatpush1.msra.mxu0 0.0
    %196 = vmatprep.subr.mxu0 0.0
    %197 = vmatpush1.msra.mxu0 0.0
    %198 = vmatprep.subr.mxu0 0.0
    %199 = vmatpush1.msra.mxu0 0.0
    %200 = vmatprep.subr.mxu0 0.0
    %201 = vmatpush1.msra.mxu0 0.0
    %202 = vmatprep.subr.mxu0 0.0
    %203 = vmatpush1.msra.mxu0 0.0
    %204 = vmatprep.subr.mxu0 0.0
    %205 = vmatpush1.msra.mxu0 0.0
    %206 = vmatprep.subr.mxu0 0.0
    %207 = vmatpush1.msra.mxu0 0.0
    %208 = vmatprep.subr.mxu0 0.0
    %209 = vmatpush1.msra.mxu0 0.0
    %210 = vmatprep.subr.mxu0 0.0
    %211 = vmatpush1.msra.mxu0 0.0
    %212 = vmatprep.subr.mxu0 0.0
    %213 = vmatpush1.msra.mxu0 0.0
    %214 = vmatprep.subr.mxu0 0.0
    %215 = vmatpush1.msra.mxu0 0.0
    %216 = vmatprep.subr.mxu0 0.0
    %217 = vmatpush1.msra.mxu0 0.0
    %218 = vmatprep.subr.mxu0 0.0
    %219 = vmatpush1.msra.mxu0 0.0
    %220 = vmatprep.subr.mxu0 0.0
    %221 = vmatpush1.msra.mxu0 0.0
    %222 = vmatprep.subr.mxu0 0.0
    %223 = vmatpush1.msra.mxu0 0.0
    %224 = vmatprep.subr.mxu0 0.0
    %225 = vmatpush1.msra.mxu0 0.0
    %226 = vmatprep.subr.mxu0 0.0
    %227 = vmatpush1.msra.mxu0 0.0
    %228 = vmatprep.subr.mxu0 0.0
    %229 = vmatpush1.msra.mxu0 0.0
    %230 = vmatprep.subr.mxu0 0.0
    %231 = vmatpush1.msra.mxu0 0.0
    %232 = vmatprep.subr.mxu0 0.0
    %233 = vmatpush1.msra.mxu0 0.0
    %234 = vmatprep.subr.mxu0 0.0
    %235 = vmatpush1.msra.mxu0 0.0
    %236 = vmatprep.mubr.f32.mxu0 0.0
    %237 = vmatmul.mubr.f32.gmra.mrb[0].mxu0 %v170
    %v238 = vpop.f32.mrb[0].mxu0
    %v239 = vadd.f32 0.0, %v238
    %v240 = vpop.f32.mrb[0].mxu0
    %v241 = vadd.f32 0.0, %v240
    %242 = vdwg.mxu0
    %v243 = vld [vmem:[%s4] sm:$0xff]
    %v244 = vld [vmem:[%s4 + $0x8] sm:$0xff]
    %v245 = vld [vmem:[%s4 + $0x10] sm:$0xff]
    %v246 = vld [vmem:[%s4 + $0x18] sm:$0xff]
    %vm247 = vcmask 130048
    %v249 = vsel %vm247, %v151, 0
    %251 = vmatprep.subr.mxu0 %v244
    %252 = vmatpush1.msra.mxu0 %v243
    %253 = vmatprep.subr.mxu0 %v246
    %254 = vmatpush1.msra.mxu0 %v245
    %255 = vmatprep.subr.mxu0 0.0
    %256 = vmatpush1.msra.mxu0 0.0
    %257 = vmatprep.subr.mxu0 0.0
    %258 = vmatpush1.msra.mxu0 0.0
    %259 = vmatprep.subr.mxu0 0.0
    %260 = vmatpush1.msra.mxu0 0.0
    %261 = vmatprep.subr.mxu0 0.0
    %262 = vmatpush1.msra.mxu0 0.0
    %263 = vmatprep.subr.mxu0 0.0
    %264 = vmatpush1.msra.mxu0 0.0
    %265 = vmatprep.subr.mxu0 0.0
    %266 = vmatpush1.msra.mxu0 0.0
    %267 = vmatprep.subr.mxu0 0.0
    %268 = vmatpush1.msra.mxu0 0.0
    %269 = vmatprep.subr.mxu0 0.0
    %270 = vmatpush1.msra.mxu0 0.0
    %271 = vmatprep.subr.mxu0 0.0
    %272 = vmatpush1.msra.mxu0 0.0
    %273 = vmatprep.subr.mxu0 0.0
    %274 = vmatpush1.msra.mxu0 0.0
    %275 = vmatprep.subr.mxu0 0.0
    %276 = vmatpush1.msra.mxu0 0.0
    %277 = vmatprep.subr.mxu0 0.0
    %278 = vmatpush1.msra.mxu0 0.0
    %279 = vmatprep.subr.mxu0 0.0
    %280 = vmatpush1.msra.mxu0 0.0
    %281 = vmatprep.subr.mxu0 0.0
    %282 = vmatpush1.msra.mxu0 0.0
    %283 = vmatprep.subr.mxu0 0.0
    %284 = vmatpush1.msra.mxu0 0.0
    %285 = vmatprep.subr.mxu0 0.0
    %286 = vmatpush1.msra.mxu0 0.0
    %287 = vmatprep.subr.mxu0 0.0
    %288 = vmatpush1.msra.mxu0 0.0
    %289 = vmatprep.subr.mxu0 0.0
    %290 = vmatpush1.msra.mxu0 0.0
    %291 = vmatprep.subr.mxu0 0.0
    %292 = vmatpush1.msra.mxu0 0.0
    %293 = vmatprep.subr.mxu0 0.0
    %294 = vmatpush1.msra.mxu0 0.0
    %295 = vmatprep.subr.mxu0 0.0
    %296 = vmatpush1.msra.mxu0 0.0
    %297 = vmatprep.subr.mxu0 0.0
    %298 = vmatpush1.msra.mxu0 0.0
    %299 = vmatprep.subr.mxu0 0.0
    %300 = vmatpush1.msra.mxu0 0.0
    %301 = vmatprep.subr.mxu0 0.0
    %302 = vmatpush1.msra.mxu0 0.0
    %303 = vmatprep.subr.mxu0 0.0
    %304 = vmatpush1.msra.mxu0 0.0
    %305 = vmatprep.subr.mxu0 0.0
    %306 = vmatpush1.msra.mxu0 0.0
    %307 = vmatprep.subr.mxu0 0.0
    %308 = vmatpush1.msra.mxu0 0.0
    %309 = vmatprep.subr.mxu0 0.0
    %310 = vmatpush1.msra.mxu0 0.0
    %311 = vmatprep.subr.mxu0 0.0
    %312 = vmatpush1.msra.mxu0 0.0
    %313 = vmatprep.subr.mxu0 0.0
    %314 = vmatpush1.msra.mxu0 0.0
    %315 = vmatprep.mubr.f32.mxu0 0.0
    %316 = vmatmul.mubr.f32.gmra.mrb[0].mxu0 %v249
    %v317 = vpop.f32.mrb[0].mxu0
    %v318 = vadd.f32 0.0, %v317
    %v319 = vpop.f32.mrb[0].mxu0
    %v320 = vadd.f32 0.0, %v319
    %321 = vdwg.mxu0
    %322 = vst [vmem:[#allocation2] sm:$0xff] 0.0
    %323 = vst [vmem:[#allocation2 + $0x8] sm:$0xff] 0.0
    %324 = vst [vmem:[#allocation2 + $0x10] sm:$0xff] 0.0
    %325 = vst [vmem:[#allocation2 + $0x18] sm:$0xff] 0.0
    %326 = vst [vmem:[#allocation2] sm:$0xff] %v239
    %vm327 = vcmask 588800
    %328 = vst.msk [vmem:[#allocation2 + $0x8] sm:$0xff] %vm327, %v241
    %331 = vrot.lane.b32.xlu0 %v318, 72
    %v332 = vpop.permute.xlu0 %331
    %333 = vrot.lane.b32.xlu0 %v320, 72
    %v334 = vpop.permute.xlu0 %333
    %v335 = vsel %vm327, %v332, %v334
    %vm339 = vcmask 1048128
    %340 = vst.msk [vmem:[#allocation2 + $0x8] sm:$0xff] %vm339, %v332
    %341 = vst [vmem:[#allocation2 + $0x10] sm:$0xff] %v335
    %342 = vst.msk [vmem:[#allocation2 + $0x18] sm:$0xff] %vm247, %v334
    %v343 = vld [vmem:[#allocation2] sm:$0xff]
    %v344 = vld [vmem:[#allocation2 + $0x8] sm:$0xff]
    %v345 = vld [vmem:[#allocation2 + $0x10] sm:$0xff]
    %v346 = vld [vmem:[#allocation2 + $0x18] sm:$0xff]
    %s347 = sld [smem:[#allocation6]]
    %v348 = vstv %s347
    %v349 = vmul.f32 %v343, %v348
    %v350 = vmul.f32 %v344, %v348
    %v351 = vmul.f32 %v345, %v348
    %s352 = sld [smem:[#allocation6 + $0x1]]
    %v353 = vstv %s352
    %v354 = vmul.f32 %v343, %v353
    %v355 = vmul.f32 %v344, %v353
    %v356 = vmul.f32 %v345, %v353
    %360 = vrot.lane.b32.xlu0 %v354, 127
    %v361 = vpop.permute.xlu0 %360
    %362 = vrot.lane.b32.xlu0 %v355, 127
    %v363 = vpop.permute.xlu0 %362
    %364 = vrot.lane.b32.xlu0 %v356, 127
    %v365 = vpop.permute.xlu0 %364
    %vm366 = vcmask 1039360
    %v367 = vsel %vm366, %v361, %v363
    %v368 = vsel %vm366, %v363, %v365
    %v372 = vadd.f32 %v349, %v367
    %v373 = vadd.f32 %v350, %v368
    %v374 = vadd.f32 %v351, %v365
    %s375 = sld [smem:[#allocation6 + $0x2]]
    %v376 = vstv %s375
    %v377 = vmul.f32 %v343, %v376
    %v378 = vmul.f32 %v344, %v376
    %v379 = vmul.f32 %v345, %v376
    %383 = vrot.lane.b32.xlu0 %v377, 126
    %v384 = vpop.permute.xlu0 %383
    %385 = vrot.lane.b32.xlu0 %v378, 126
    %v386 = vpop.permute.xlu0 %385
    %387 = vrot.lane.b32.xlu0 %v379, 126
    %v388 = vpop.permute.xlu0 %387
    %vm389 = vcmask 1031168
    %v390 = vsel %vm389, %v384, %v386
    %v391 = vsel %vm389, %v386, %v388
    %v395 = vadd.f32 %v372, %v390
    %v396 = vadd.f32 %v373, %v391
    %v397 = vadd.f32 %v374, %v388
    %s398 = sld [smem:[#allocation6 + $0x3]]
    %v399 = vstv %s398
    %v400 = vmul.f32 %v343, %v399
    %v401 = vmul.f32 %v344, %v399
    %v402 = vmul.f32 %v345, %v399
    %406 = vrot.lane.b32.xlu0 %v400, 108
    %v407 = vpop.permute.xlu0 %406
    %408 = vrot.lane.b32.xlu0 %v401, 108
    %v409 = vpop.permute.xlu0 %408
    %410 = vrot.lane.b32.xlu0 %v402, 108
    %v411 = vpop.permute.xlu0 %410
    %vm412 = vcmask 883712
    %v413 = vsel %vm412, %v407, %v409
    %v414 = vsel %vm412, %v409, %v411
    %v418 = vadd.f32 %v395, %v413
    %v419 = vadd.f32 %v396, %v414
    %v420 = vadd.f32 %v397, %v411
    %s421 = sld [smem:[#allocation6 + $0x4]]
    %v422 = vstv %s421
    %v423 = vmul.f32 %v343, %v422
    %v424 = vmul.f32 %v344, %v422
    %v425 = vmul.f32 %v345, %v422
    %429 = vrot.lane.b32.xlu0 %v423, 107
    %v430 = vpop.permute.xlu0 %429
    %431 = vrot.lane.b32.xlu0 %v424, 107
    %v432 = vpop.permute.xlu0 %431
    %433 = vrot.lane.b32.xlu0 %v425, 107
    %v434 = vpop.permute.xlu0 %433
    %vm435 = vcmask 875520
    %v436 = vsel %vm435, %v430, %v432
    %v437 = vsel %vm435, %v432, %v434
    %v441 = vadd.f32 %v418, %v436
    %v442 = vadd.f32 %v419, %v437
    %v443 = vadd.f32 %v420, %v434
    %s444 = sld [smem:[#allocation6 + $0x5]]
    %v445 = vstv %s444
    %v446 = vmul.f32 %v343, %v445
    %v447 = vmul.f32 %v344, %v445
    %v448 = vmul.f32 %v345, %v445
    %452 = vrot.lane.b32.xlu0 %v446, 106
    %v453 = vpop.permute.xlu0 %452
    %454 = vrot.lane.b32.xlu0 %v447, 106
    %v455 = vpop.permute.xlu0 %454
    %456 = vrot.lane.b32.xlu0 %v448, 106
    %v457 = vpop.permute.xlu0 %456
    %vm458 = vcmask 867328
    %v459 = vsel %vm458, %v453, %v455
    %v460 = vsel %vm458, %v455, %v457
    %v464 = vadd.f32 %v441, %v459
    %v465 = vadd.f32 %v442, %v460
    %v466 = vadd.f32 %v443, %v457
    %s467 = sld [smem:[#allocation6 + $0x6]]
    %v468 = vstv %s467
    %v469 = vmul.f32 %v343, %v468
    %v470 = vmul.f32 %v344, %v468
    %v471 = vmul.f32 %v345, %v468
    %v472 = vmul.f32 %v346, %v468
    %477 = vrot.lane.b32.xlu0 %v469, 88
    %v478 = vpop.permute.xlu0 %477
    %479 = vrot.lane.b32.xlu0 %v470, 88
    %v480 = vpop.permute.xlu0 %479
    %481 = vrot.lane.b32.xlu0 %v471, 88
    %v482 = vpop.permute.xlu0 %481
    %483 = vrot.lane.b32.xlu0 %v472, 88
    %v484 = vpop.permute.xlu0 %483
    %vm485 = vcmask 719872
    %v486 = vsel %vm485, %v478, %v480
    %v487 = vsel %vm485, %v480, %v482
    %v488 = vsel %vm485, %v482, %v484
    %v492 = vadd.f32 %v464, %v486
    %v493 = vadd.f32 %v465, %v487
    %v494 = vadd.f32 %v466, %v488
    %s495 = sld [smem:[#allocation6 + $0x7]]
    %v496 = vstv %s495
    %v497 = vmul.f32 %v343, %v496
    %v498 = vmul.f32 %v344, %v496
    %v499 = vmul.f32 %v345, %v496
    %v500 = vmul.f32 %v346, %v496
    %505 = vrot.lane.b32.xlu0 %v497, 87
    %v506 = vpop.permute.xlu0 %505
    %507 = vrot.lane.b32.xlu0 %v498, 87
    %v508 = vpop.permute.xlu0 %507
    %509 = vrot.lane.b32.xlu0 %v499, 87
    %v510 = vpop.permute.xlu0 %509
    %511 = vrot.lane.b32.xlu0 %v500, 87
    %v512 = vpop.permute.xlu0 %511
    %vm513 = vcmask 711680
    %v514 = vsel %vm513, %v506, %v508
    %v515 = vsel %vm513, %v508, %v510
    %v516 = vsel %vm513, %v510, %v512
    %v520 = vadd.f32 %v492, %v514
    %v521 = vadd.f32 %v493, %v515
    %v522 = vadd.f32 %v494, %v516
    %s523 = sld [smem:[#allocation6 + $0x8]]
    %v524 = vstv %s523
    %v525 = vmul.f32 %v343, %v524
    %v526 = vmul.f32 %v344, %v524
    %v527 = vmul.f32 %v345, %v524
    %v528 = vmul.f32 %v346, %v524
    %533 = vrot.lane.b32.xlu0 %v525, 86
    %v534 = vpop.permute.xlu0 %533
    %535 = vrot.lane.b32.xlu0 %v526, 86
    %v536 = vpop.permute.xlu0 %535
    %537 = vrot.lane.b32.xlu0 %v527, 86
    %v538 = vpop.permute.xlu0 %537
    %539 = vrot.lane.b32.xlu0 %v528, 86
    %v540 = vpop.permute.xlu0 %539
    %vm541 = vcmask 703488
    %v542 = vsel %vm541, %v534, %v536
    %v543 = vsel %vm541, %v536, %v538
    %v544 = vsel %vm541, %v538, %v540
    %v548 = vadd.f32 %v520, %v542
    %v549 = vadd.f32 %v521, %v543
    %v550 = vadd.f32 %v522, %v544
    %s551 = sld [smem:[#allocation6 + $0x48]]
    %v552 = vstv %s551
    %v553 = vadd.f32 %v548, %v552
    %v554 = vadd.f32 %v549, %v552
    %v555 = vadd.f32 %v550, %v552
    %v556 = vmax.f32 %v553, 0.0
    %v557 = vmax.f32 %v554, 0.0
    %v558 = vmax.f32 %v555, 0.0
    %v559 = vpack.c.bf16 %v556, %v556
    %v560 = vpack.c.bf16 %v557, %v557
    %v561 = vpack.c.bf16 %v558, %v558
    %v562 = vld [vmem:[%s5] sm:$0xff]
    %v563 = vld [vmem:[%s5 + $0x8] sm:$0xff]
    %v564 = vld [vmem:[%s5 + $0x10] sm:$0xff]
    %v565 = vld [vmem:[%s5 + $0x18] sm:$0xff]
    %v566 = vld [vmem:[%s5 + $0x20] sm:$0xff]
    %v567 = vld [vmem:[%s5 + $0x28] sm:$0xff]
    %v568 = vld [vmem:[%s5 + $0x30] sm:$0xff]
    %v569 = vld [vmem:[%s5 + $0x38] sm:$0xff]
    %v570 = vld [vmem:[%s5 + $0x40] sm:$0xff]
    %v571 = vld [vmem:[%s5 + $0x48] sm:$0xff]
    %v572 = vld [vmem:[%s5 + $0x50] sm:$0xff]
    %v573 = vld [vmem:[%s5 + $0x58] sm:$0xff]
    %v574 = vld [vmem:[%s5 + $0x60] sm:$0xff]
    %v575 = vld [vmem:[%s5 + $0x68] sm:$0xff]
    %v576 = vld [vmem:[%s5 + $0x70] sm:$0xff]
    %v577 = vld [vmem:[%s5 + $0x78] sm:$0xff]
    %v578 = vld [vmem:[%s5 + $0x80] sm:$0xff]
    %v579 = vld [vmem:[%s5 + $0x88] sm:$0xff]
    %v580 = vld [vmem:[%s5 + $0x90] sm:$0xff]
    %v581 = vld [vmem:[%s5 + $0x98] sm:$0xff]
    %v582 = vld [vmem:[%s5 + $0xa0] sm:$0xff]
    %v583 = vld [vmem:[%s5 + $0xa8] sm:$0xff]
    %v584 = vld [vmem:[%s5 + $0xb0] sm:$0xff]
    %v585 = vld [vmem:[%s5 + $0xb8] sm:$0xff]
    %v586 = vld [vmem:[%s5 + $0xc0] sm:$0xff]
    %v587 = vld [vmem:[%s5 + $0xc8] sm:$0xff]
    %v588 = vld [vmem:[%s5 + $0xd0] sm:$0xff]
    %v589 = vld [vmem:[%s5 + $0xd8] sm:$0xff]
    %v590 = vld [vmem:[%s5 + $0xe0] sm:$0xff]
    %v591 = vld [vmem:[%s5 + $0xe8] sm:$0xff]
    %v592 = vld [vmem:[%s5 + $0xf0] sm:$0xff]
    %v593 = vld [vmem:[%s5 + $0xf8] sm:$0xff]
    %v594 = vld [vmem:[%s5 + $0x100] sm:$0xff]
    %v595 = vld [vmem:[%s5 + $0x108] sm:$0xff]
    %v596 = vld [vmem:[%s5 + $0x110] sm:$0xff]
    %v597 = vld [vmem:[%s5 + $0x118] sm:$0xff]
    %v598 = vld [vmem:[%s5 + $0x120] sm:$0xff]
    %v599 = vld [vmem:[%s5 + $0x128] sm:$0xff]
    %v600 = vld [vmem:[%s5 + $0x130] sm:$0xff]
    %v601 = vld [vmem:[%s5 + $0x138] sm:$0xff]
    %v602 = vld [vmem:[%s5 + $0x140] sm:$0xff]
    %v603 = vld [vmem:[%s5 + $0x148] sm:$0xff]
    %v604 = vld [vmem:[%s5 + $0x150] sm:$0xff]
    %v605 = vld [vmem:[%s5 + $0x158] sm:$0xff]
    %v606 = vld [vmem:[%s5 + $0x160] sm:$0xff]
    %s607 = sld [smem:[#allocation6 + $0x9]]
    %v608 = vstv %s607
    %v609 = vmul.f32 %v343, %v608
    %v610 = vmul.f32 %v344, %v608
    %v611 = vmul.f32 %v345, %v608
    %s612 = sld [smem:[#allocation6 + $0xa]]
    %v613 = vstv %s612
    %v614 = vmul.f32 %v343, %v613
    %v615 = vmul.f32 %v344, %v613
    %v616 = vmul.f32 %v345, %v613
    %620 = vrot.lane.b32.xlu0 %v614, 127
    %v621 = vpop.permute.xlu0 %620
    %622 = vrot.lane.b32.xlu0 %v615, 127
    %v623 = vpop.permute.xlu0 %622
    %624 = vrot.lane.b32.xlu0 %v616, 127
    %v625 = vpop.permute.xlu0 %624
    %v626 = vsel %vm366, %v621, %v623
    %v627 = vsel %vm366, %v623, %v625
    %v631 = vadd.f32 %v609, %v626
    %v632 = vadd.f32 %v610, %v627
    %v633 = vadd.f32 %v611, %v625
    %s634 = sld [smem:[#allocation6 + $0xb]]
    %v635 = vstv %s634
    %v636 = vmul.f32 %v343, %v635
    %v637 = vmul.f32 %v344, %v635
    %v638 = vmul.f32 %v345, %v635
    %642 = vrot.lane.b32.xlu0 %v636, 126
    %v643 = vpop.permute.xlu0 %642
    %644 = vrot.lane.b32.xlu0 %v637, 126
    %v645 = vpop.permute.xlu0 %644
    %646 = vrot.lane.b32.xlu0 %v638, 126
    %v647 = vpop.permute.xlu0 %646
    %v648 = vsel %vm389, %v643, %v645
    %v649 = vsel %vm389, %v645, %v647
    %v653 = vadd.f32 %v631, %v648
    %v654 = vadd.f32 %v632, %v649
    %v655 = vadd.f32 %v633, %v647
    %s656 = sld [smem:[#allocation6 + $0xc]]
    %v657 = vstv %s656
    %v658 = vmul.f32 %v343, %v657
    %v659 = vmul.f32 %v344, %v657
    %v660 = vmul.f32 %v345, %v657
    %664 = vrot.lane.b32.xlu0 %v658, 108
    %v665 = vpop.permute.xlu0 %664
    %666 = vrot.lane.b32.xlu0 %v659, 108
    %v667 = vpop.permute.xlu0 %666
    %668 = vrot.lane.b32.xlu0 %v660, 108
    %v669 = vpop.permute.xlu0 %668
    %v670 = vsel %vm412, %v665, %v667
    %v671 = vsel %vm412, %v667, %v669
    %v675 = vadd.f32 %v653, %v670
    %v676 = vadd.f32 %v654, %v671
    %v677 = vadd.f32 %v655, %v669
    %s678 = sld [smem:[#allocation6 + $0xd]]
    %v679 = vstv %s678
    %v680 = vmul.f32 %v343, %v679
    %v681 = vmul.f32 %v344, %v679
    %v682 = vmul.f32 %v345, %v679
    %686 = vrot.lane.b32.xlu0 %v680, 107
    %v687 = vpop.permute.xlu0 %686
    %688 = vrot.lane.b32.xlu0 %v681, 107
    %v689 = vpop.permute.xlu0 %688
    %690 = vrot.lane.b32.xlu0 %v682, 107
    %v691 = vpop.permute.xlu0 %690
    %v692 = vsel %vm435, %v687, %v689
    %v693 = vsel %vm435, %v689, %v691
    %v697 = vadd.f32 %v675, %v692
    %v698 = vadd.f32 %v676, %v693
    %v699 = vadd.f32 %v677, %v691
    %s700 = sld [smem:[#allocation6 + $0xe]]
    %v701 = vstv %s700
    %v702 = vmul.f32 %v343, %v701
    %v703 = vmul.f32 %v344, %v701
    %v704 = vmul.f32 %v345, %v701
    %708 = vrot.lane.b32.xlu0 %v702, 106
    %v709 = vpop.permute.xlu0 %708
    %710 = vrot.lane.b32.xlu0 %v703, 106
    %v711 = vpop.permute.xlu0 %710
    %712 = vrot.lane.b32.xlu0 %v704, 106
    %v713 = vpop.permute.xlu0 %712
    %v714 = vsel %vm458, %v709, %v711
    %v715 = vsel %vm458, %v711, %v713
    %v719 = vadd.f32 %v697, %v714
    %v720 = vadd.f32 %v698, %v715
    %v721 = vadd.f32 %v699, %v713
    %s722 = sld [smem:[#allocation6 + $0xf]]
    %v723 = vstv %s722
    %v724 = vmul.f32 %v343, %v723
    %v725 = vmul.f32 %v344, %v723
    %v726 = vmul.f32 %v345, %v723
    %v727 = vmul.f32 %v346, %v723
    %732 = vrot.lane.b32.xlu0 %v724, 88
    %v733 = vpop.permute.xlu0 %732
    %734 = vrot.lane.b32.xlu0 %v725, 88
    %v735 = vpop.permute.xlu0 %734
    %736 = vrot.lane.b32.xlu0 %v726, 88
    %v737 = vpop.permute.xlu0 %736
    %738 = vrot.lane.b32.xlu0 %v727, 88
    %v739 = vpop.permute.xlu0 %738
    %v740 = vsel %vm485, %v733, %v735
    %v741 = vsel %vm485, %v735, %v737
    %v742 = vsel %vm485, %v737, %v739
    %v746 = vadd.f32 %v719, %v740
    %v747 = vadd.f32 %v720, %v741
    %v748 = vadd.f32 %v721, %v742
    %s749 = sld [smem:[#allocation6 + $0x10]]
    %v750 = vstv %s749
    %v751 = vmul.f32 %v343, %v750
    %v752 = vmul.f32 %v344, %v750
    %v753 = vmul.f32 %v345, %v750
    %v754 = vmul.f32 %v346, %v750
    %759 = vrot.lane.b32.xlu0 %v751, 87
    %v760 = vpop.permute.xlu0 %759
    %761 = vrot.lane.b32.xlu0 %v752, 87
    %v762 = vpop.permute.xlu0 %761
    %763 = vrot.lane.b32.xlu0 %v753, 87
    %v764 = vpop.permute.xlu0 %763
    %765 = vrot.lane.b32.xlu0 %v754, 87
    %v766 = vpop.permute.xlu0 %765
    %v767 = vsel %vm513, %v760, %v762
    %v768 = vsel %vm513, %v762, %v764
    %v769 = vsel %vm513, %v764, %v766
    %v773 = vadd.f32 %v746, %v767
    %v774 = vadd.f32 %v747, %v768
    %v775 = vadd.f32 %v748, %v769
    %s776 = sld [smem:[#allocation6 + $0x11]]
    %v777 = vstv %s776
    %v778 = vmul.f32 %v343, %v777
    %v779 = vmul.f32 %v344, %v777
    %v780 = vmul.f32 %v345, %v777
    %v781 = vmul.f32 %v346, %v777
    %786 = vrot.lane.b32.xlu0 %v778, 86
    %v787 = vpop.permute.xlu0 %786
    %788 = vrot.lane.b32.xlu0 %v779, 86
    %v789 = vpop.permute.xlu0 %788
    %790 = vrot.lane.b32.xlu0 %v780, 86
    %v791 = vpop.permute.xlu0 %790
    %792 = vrot.lane.b32.xlu0 %v781, 86
    %v793 = vpop.permute.xlu0 %792
    %v794 = vsel %vm541, %v787, %v789
    %v795 = vsel %vm541, %v789, %v791
    %v796 = vsel %vm541, %v791, %v793
    %v800 = vadd.f32 %v773, %v794
    %v801 = vadd.f32 %v774, %v795
    %v802 = vadd.f32 %v775, %v796
    %s803 = sld [smem:[#allocation6 + $0x49]]
    %v804 = vstv %s803
    %v805 = vadd.f32 %v800, %v804
    %v806 = vadd.f32 %v801, %v804
    %v807 = vadd.f32 %v802, %v804
    %v808 = vmax.f32 %v805, 0.0
    %v809 = vmax.f32 %v806, 0.0
    %v810 = vmax.f32 %v807, 0.0
    %v811 = vpack.c.bf16 %v808, %v808
    %v812 = vpack.c.bf16 %v809, %v809
    %v813 = vpack.c.bf16 %v810, %v810
    %s814 = scalar_lea.vmem %s5, 360
    %v815 = vld [vmem:[%s814] sm:$0xff]
    %v816 = vld [vmem:[%s814 + $0x8] sm:$0xff]
    %v817 = vld [vmem:[%s814 + $0x10] sm:$0xff]
    %v818 = vld [vmem:[%s814 + $0x18] sm:$0xff]
    %v819 = vld [vmem:[%s814 + $0x20] sm:$0xff]
    %v820 = vld [vmem:[%s814 + $0x28] sm:$0xff]
    %v821 = vld [vmem:[%s814 + $0x30] sm:$0xff]
    %v822 = vld [vmem:[%s814 + $0x38] sm:$0xff]
    %v823 = vld [vmem:[%s814 + $0x40] sm:$0xff]
    %v824 = vld [vmem:[%s814 + $0x48] sm:$0xff]
    %v825 = vld [vmem:[%s814 + $0x50] sm:$0xff]
    %v826 = vld [vmem:[%s814 + $0x58] sm:$0xff]
    %v827 = vld [vmem:[%s814 + $0x60] sm:$0xff]
    %v828 = vld [vmem:[%s814 + $0x68] sm:$0xff]
    %v829 = vld [vmem:[%s814 + $0x70] sm:$0xff]
    %v830 = vld [vmem:[%s814 + $0x78] sm:$0xff]
    %v831 = vld [vmem:[%s814 + $0x80] sm:$0xff]
    %v832 = vld [vmem:[%s814 + $0x88] sm:$0xff]
    %v833 = vld [vmem:[%s814 + $0x90] sm:$0xff]
    %v834 = vld [vmem:[%s814 + $0x98] sm:$0xff]
    %v835 = vld [vmem:[%s814 + $0xa0] sm:$0xff]
    %v836 = vld [vmem:[%s814 + $0xa8] sm:$0xff]
    %v837 = vld [vmem:[%s814 + $0xb0] sm:$0xff]
    %v838 = vld [vmem:[%s814 + $0xb8] sm:$0xff]
    %v839 = vld [vmem:[%s814 + $0xc0] sm:$0xff]
    %v840 = vld [vmem:[%s814 + $0xc8] sm:$0xff]
    %v841 = vld [vmem:[%s814 + $0xd0] sm:$0xff]
    %v842 = vld [vmem:[%s814 + $0xd8] sm:$0xff]
    %v843 = vld [vmem:[%s814 + $0xe0] sm:$0xff]
    %v844 = vld [vmem:[%s814 + $0xe8] sm:$0xff]
    %v845 = vld [vmem:[%s814 + $0xf0] sm:$0xff]
    %v846 = vld [vmem:[%s814 + $0xf8] sm:$0xff]
    %v847 = vld [vmem:[%s814 + $0x100] sm:$0xff]
    %v848 = vld [vmem:[%s814 + $0x108] sm:$0xff]
    %v849 = vld [vmem:[%s814 + $0x110] sm:$0xff]
    %v850 = vld [vmem:[%s814 + $0x118] sm:$0xff]
    %v851 = vld [vmem:[%s814 + $0x120] sm:$0xff]
    %v852 = vld [vmem:[%s814 + $0x128] sm:$0xff]
    %v853 = vld [vmem:[%s814 + $0x130] sm:$0xff]
    %v854 = vld [vmem:[%s814 + $0x138] sm:$0xff]
    %v855 = vld [vmem:[%s814 + $0x140] sm:$0xff]
    %v856 = vld [vmem:[%s814 + $0x148] sm:$0xff]
    %v857 = vld [vmem:[%s814 + $0x150] sm:$0xff]
    %v858 = vld [vmem:[%s814 + $0x158] sm:$0xff]
    %v859 = vld [vmem:[%s814 + $0x160] sm:$0xff]
    %v905 = vunpack.c.l.b16 %v815
    %v906 = vunpack.c.h.b16 %v815
    %v907 = vunpack.c.l.b16 %v816
    %v908 = vunpack.c.h.b16 %v816
    %v909 = vunpack.c.l.b16 %v817
    %v910 = vunpack.c.h.b16 %v817
    %v911 = vunpack.c.l.b16 %v818
    %v912 = vunpack.c.h.b16 %v818
    %v913 = vunpack.c.l.b16 %v819
    %v914 = vunpack.c.h.b16 %v819
    %v915 = vunpack.c.l.b16 %v820
    %v916 = vunpack.c.h.b16 %v820
    %v917 = vunpack.c.l.b16 %v821
    %v918 = vunpack.c.h.b16 %v821
    %v919 = vunpack.c.l.b16 %v822
    %v920 = vunpack.c.h.b16 %v822
    %v921 = vunpack.c.l.b16 %v823
    %v922 = vunpack.c.h.b16 %v823
    %v923 = vunpack.c.l.b16 %v824
    %v924 = vunpack.c.h.b16 %v824
    %v925 = vunpack.c.l.b16 %v825
    %v926 = vunpack.c.h.b16 %v825
    %v927 = vunpack.c.l.b16 %v826
    %v928 = vunpack.c.h.b16 %v826
    %v929 = vunpack.c.l.b16 %v827
    %v930 = vunpack.c.h.b16 %v827
    %v931 = vunpack.c.l.b16 %v828
    %v932 = vunpack.c.h.b16 %v828
    %v933 = vunpack.c.l.b16 %v829
    %v934 = vunpack.c.h.b16 %v829
    %v935 = vunpack.c.l.b16 %v830
    %v936 = vunpack.c.h.b16 %v830
    %v937 = vunpack.c.l.b16 %v831
    %v938 = vunpack.c.h.b16 %v831
    %v939 = vunpack.c.l.b16 %v832
    %v940 = vunpack.c.h.b16 %v832
    %v941 = vunpack.c.l.b16 %v833
    %v942 = vunpack.c.h.b16 %v833
    %v943 = vunpack.c.l.b16 %v834
    %v944 = vunpack.c.h.b16 %v834
    %v945 = vunpack.c.l.b16 %v835
    %v946 = vunpack.c.h.b16 %v835
    %v947 = vunpack.c.l.b16 %v836
    %v948 = vunpack.c.h.b16 %v836
    %v949 = vunpack.c.l.b16 %v837
    %v950 = vunpack.c.h.b16 %v837
    %v951 = vunpack.c.l.b16 %v838
    %v952 = vunpack.c.h.b16 %v838
    %v953 = vunpack.c.l.b16 %v839
    %v954 = vunpack.c.h.b16 %v839
    %v955 = vunpack.c.l.b16 %v840
    %v956 = vunpack.c.h.b16 %v840
    %v957 = vunpack.c.l.b16 %v841
    %v958 = vunpack.c.h.b16 %v841
    %v959 = vunpack.c.l.b16 %v842
    %v960 = vunpack.c.h.b16 %v842
    %v961 = vunpack.c.l.b16 %v843
    %v962 = vunpack.c.h.b16 %v843
    %v963 = vunpack.c.l.b16 %v844
    %v964 = vunpack.c.h.b16 %v844
    %v965 = vunpack.c.l.b16 %v845
    %v966 = vunpack.c.h.b16 %v845
    %v967 = vunpack.c.l.b16 %v846
    %v968 = vunpack.c.h.b16 %v846
    %v969 = vunpack.c.l.b16 %v847
    %v970 = vunpack.c.h.b16 %v847
    %v971 = vunpack.c.l.b16 %v848
    %v972 = vunpack.c.h.b16 %v848
    %v973 = vunpack.c.l.b16 %v849
    %v974 = vunpack.c.h.b16 %v849
    %v975 = vunpack.c.l.b16 %v850
    %v976 = vunpack.c.h.b16 %v850
    %v977 = vunpack.c.l.b16 %v851
    %v978 = vunpack.c.h.b16 %v851
    %v979 = vunpack.c.l.b16 %v852
    %v980 = vunpack.c.h.b16 %v852
    %v981 = vunpack.c.l.b16 %v853
    %v982 = vunpack.c.h.b16 %v853
    %v983 = vunpack.c.l.b16 %v854
    %v984 = vunpack.c.h.b16 %v854
    %v985 = vunpack.c.l.b16 %v855
    %v986 = vunpack.c.h.b16 %v855
    %v987 = vunpack.c.l.b16 %v856
    %v988 = vunpack.c.h.b16 %v856
    %v989 = vunpack.c.l.b16 %v857
    %v990 = vunpack.c.h.b16 %v857
    %v991 = vunpack.c.l.b16 %v858
    %v992 = vunpack.c.h.b16 %v858
    %v993 = vunpack.c.l.b16 %v859
    %v994 = vunpack.c.h.b16 %v859
    %v995 = vpack.c.b16 %v907, %v905
    %v996 = vpack.c.b16 %v908, %v906
    %v997 = vpack.c.b16 %v911, %v909
    %v998 = vpack.c.b16 %v912, %v910
    %v999 = vpack.c.b16 %v915, %v913
    %v1000 = vpack.c.b16 %v916, %v914
    %v1001 = vpack.c.b16 %v919, %v917
    %v1002 = vpack.c.b16 %v920, %v918
    %v1003 = vpack.c.b16 %v923, %v921
    %v1004 = vpack.c.b16 %v924, %v922
    %v1005 = vpack.c.b16 %v927, %v925
    %v1006 = vpack.c.b16 %v928, %v926
    %v1007 = vpack.c.b16 %v931, %v929
    %v1008 = vpack.c.b16 %v932, %v930
    %v1009 = vpack.c.b16 %v935, %v933
    %v1010 = vpack.c.b16 %v936, %v934
    %v1011 = vpack.c.b16 %v939, %v937
    %v1012 = vpack.c.b16 %v940, %v938
    %v1013 = vpack.c.b16 %v943, %v941
    %v1014 = vpack.c.b16 %v944, %v942
    %v1015 = vpack.c.b16 %v947, %v945
    %v1016 = vpack.c.b16 %v948, %v946
    %v1017 = vpack.c.b16 %v951, %v949
    %v1018 = vpack.c.b16 %v952, %v950
    %v1019 = vpack.c.b16 %v955, %v953
    %v1020 = vpack.c.b16 %v956, %v954
    %v1021 = vpack.c.b16 %v959, %v957
    %v1022 = vpack.c.b16 %v960, %v958
    %v1023 = vpack.c.b16 %v963, %v961
    %v1024 = vpack.c.b16 %v964, %v962
    %v1025 = vpack.c.b16 %v967, %v965
    %v1026 = vpack.c.b16 %v968, %v966
    %v1027 = vpack.c.b16 %v971, %v969
    %v1028 = vpack.c.b16 %v972, %v970
    %v1029 = vpack.c.b16 %v975, %v973
    %v1030 = vpack.c.b16 %v976, %v974
    %v1031 = vpack.c.b16 %v979, %v977
    %v1032 = vpack.c.b16 %v980, %v978
    %v1033 = vpack.c.b16 %v983, %v981
    %v1034 = vpack.c.b16 %v984, %v982
    %v1035 = vpack.c.b16 %v987, %v985
    %v1036 = vpack.c.b16 %v988, %v986
    %v1037 = vpack.c.b16 %v991, %v989
    %v1038 = vpack.c.b16 %v992, %v990
    %v1039 = vpack.c.b16 %v993, %v993
    %v1040 = vpack.c.b16 %v994, %v994
    %vm1085 = vcmask 850944
    %v1087 = vsel %vm1085, %v813, 0
    %vm1089 = vcmask 1043456
    %v1091 = vsel %vm1089, %v1039, 0
    %v1094 = vsel %vm1089, %v1040, 0
    %1096 = vmatprep.subr.bf16.mxu0 %v996
    %1097 = vmatpush1.bf16.msra.mxu0 %v995
    %1098 = vmatprep.subr.bf16.mxu0 %v998
    %1099 = vmatpush1.bf16.msra.mxu0 %v997
    %1100 = vmatprep.subr.bf16.mxu0 %v1000
    %1101 = vmatpush1.bf16.msra.mxu0 %v999
    %1102 = vmatprep.subr.bf16.mxu0 %v1002
    %1103 = vmatpush1.bf16.msra.mxu0 %v1001
    %1104 = vmatprep.subr.bf16.mxu0 %v1004
    %1105 = vmatpush1.bf16.msra.mxu0 %v1003
    %1106 = vmatprep.subr.bf16.mxu0 %v1006
    %1107 = vmatpush1.bf16.msra.mxu0 %v1005
    %1108 = vmatprep.subr.bf16.mxu0 %v1008
    %1109 = vmatpush1.bf16.msra.mxu0 %v1007
    %1110 = vmatprep.subr.bf16.mxu0 %v1010
    %1111 = vmatpush1.bf16.msra.mxu0 %v1009
    %1112 = vmatprep.subr.bf16.mxu0 %v1012
    %1113 = vmatpush1.bf16.msra.mxu0 %v1011
    %1114 = vmatprep.subr.bf16.mxu0 %v1014
    %1115 = vmatpush1.bf16.msra.mxu0 %v1013
    %1116 = vmatprep.subr.bf16.mxu0 %v1016
    %1117 = vmatpush1.bf16.msra.mxu0 %v1015
    %1118 = vmatprep.subr.bf16.mxu0 %v1018
    %1119 = vmatpush1.bf16.msra.mxu0 %v1017
    %1120 = vmatprep.subr.bf16.mxu0 %v1020
    %1121 = vmatpush1.bf16.msra.mxu0 %v1019
    %1122 = vmatprep.subr.bf16.mxu0 %v1022
    %1123 = vmatpush1.bf16.msra.mxu0 %v1021
    %1124 = vmatprep.subr.bf16.mxu0 %v1024
    %1125 = vmatpush1.bf16.msra.mxu0 %v1023
    %1126 = vmatprep.subr.bf16.mxu0 %v1026
    %1127 = vmatpush1.bf16.msra.mxu0 %v1025
    %1128 = vmatprep.mubr.bf16.mxu0 %v812
    %1129 = vmatmul.mubr.bf16.gmra.mrb[0].mxu0 %v811
    %v1130 = vpop.f32.mrb[0].mxu0
    %v1131 = vadd.f32 0.0, %v1130
    %v1132 = vpop.f32.mrb[0].mxu0
    %v1133 = vadd.f32 0.0, %v1132
    %v1134 = vpop.f32.mrb[0].mxu0
    %v1135 = vpop.f32.mrb[0].mxu0
    %1136 = vdwg.mxu0
    %1137 = vmatprep.subr.bf16.mxu0 %v1028
    %1138 = vmatpush1.bf16.msra.mxu0 %v1027
    %1139 = vmatprep.subr.bf16.mxu0 %v1030
    %1140 = vmatpush1.bf16.msra.mxu0 %v1029
    %1141 = vmatprep.subr.bf16.mxu0 %v1032
    %1142 = vmatpush1.bf16.msra.mxu0 %v1031
    %1143 = vmatprep.subr.bf16.mxu0 %v1034
    %1144 = vmatpush1.bf16.msra.mxu0 %v1033
    %1145 = vmatprep.subr.bf16.mxu0 %v1036
    %1146 = vmatpush1.bf16.msra.mxu0 %v1035
    %1147 = vmatprep.subr.bf16.mxu0 %v1038
    %1148 = vmatpush1.bf16.msra.mxu0 %v1037
    %1149 = vmatprep.subr.bf16.mxu0 %v1094
    %1150 = vmatpush1.bf16.msra.mxu0 %v1091
    %1151 = vmatprep.subr.bf16.mxu0 0
    %1152 = vmatpush1.bf16.msra.mxu0 0
    %1153 = vmatprep.subr.bf16.mxu0 0
    %1154 = vmatpush1.bf16.msra.mxu0 0
    %1155 = vmatprep.subr.bf16.mxu0 0
    %1156 = vmatpush1.bf16.msra.mxu0 0
    %1157 = vmatprep.subr.bf16.mxu0 0
    %1158 = vmatpush1.bf16.msra.mxu0 0
    %1159 = vmatprep.subr.bf16.mxu0 0
    %1160 = vmatpush1.bf16.msra.mxu0 0
    %1161 = vmatprep.subr.bf16.mxu0 0
    %1162 = vmatpush1.bf16.msra.mxu0 0
    %1163 = vmatprep.subr.bf16.mxu0 0
    %1164 = vmatpush1.bf16.msra.mxu0 0
    %1165 = vmatprep.subr.bf16.mxu0 0
    %1166 = vmatpush1.bf16.msra.mxu0 0
    %1167 = vmatprep.subr.bf16.mxu0 0
    %1168 = vmatpush1.bf16.msra.mxu0 0
    %1169 = vmatprep.mubr.bf16.mxu0 0
    %1170 = vmatmul.mubr.bf16.gmra.mrb[0].mxu0 %v1087
    %v1171 = vpop.f32.mrb[0].mxu0
    %v1172 = vadd.f32 %v1131, %v1171
    %v1173 = vpop.f32.mrb[0].mxu0
    %v1174 = vadd.f32 %v1133, %v1173
    %v1175 = vpop.f32.mrb[0].mxu0
    %v1176 = vpop.f32.mrb[0].mxu0
    %1177 = vdwg.mxu0
    %v1223 = vunpack.c.l.b16 %v562
    %v1224 = vunpack.c.h.b16 %v562
    %v1225 = vunpack.c.l.b16 %v563
    %v1226 = vunpack.c.h.b16 %v563
    %v1227 = vunpack.c.l.b16 %v564
    %v1228 = vunpack.c.h.b16 %v564
    %v1229 = vunpack.c.l.b16 %v565
    %v1230 = vunpack.c.h.b16 %v565
    %v1231 = vunpack.c.l.b16 %v566
    %v1232 = vunpack.c.h.b16 %v566
    %v1233 = vunpack.c.l.b16 %v567
    %v1234 = vunpack.c.h.b16 %v567
    %v1235 = vunpack.c.l.b16 %v568
    %v1236 = vunpack.c.h.b16 %v568
    %v1237 = vunpack.c.l.b16 %v569
    %v1238 = vunpack.c.h.b16 %v569
    %v1239 = vunpack.c.l.b16 %v570
    %v1240 = vunpack.c.h.b16 %v570
    %v1241 = vunpack.c.l.b16 %v571
    %v1242 = vunpack.c.h.b16 %v571
    %v1243 = vunpack.c.l.b16 %v572
    %v1244 = vunpack.c.h.b16 %v572
    %v1245 = vunpack.c.l.b16 %v573
    %v1246 = vunpack.c.h.b16 %v573
    %v1247 = vunpack.c.l.b16 %v574
    %v1248 = vunpack.c.h.b16 %v574
    %v1249 = vunpack.c.l.b16 %v575
    %v1250 = vunpack.c.h.b16 %v575
    %v1251 = vunpack.c.l.b16 %v576
    %v1252 = vunpack.c.h.b16 %v576
    %v1253 = vunpack.c.l.b16 %v577
    %v1254 = vunpack.c.h.b16 %v577
    %v1255 = vunpack.c.l.b16 %v578
    %v1256 = vunpack.c.h.b16 %v578
    %v1257 = vunpack.c.l.b16 %v579
    %v1258 = vunpack.c.h.b16 %v579
    %v1259 = vunpack.c.l.b16 %v580
    %v1260 = vunpack.c.h.b16 %v580
    %v1261 = vunpack.c.l.b16 %v581
    %v1262 = vunpack.c.h.b16 %v581
    %v1263 = vunpack.c.l.b16 %v582
    %v1264 = vunpack.c.h.b16 %v582
    %v1265 = vunpack.c.l.b16 %v583
    %v1266 = vunpack.c.h.b16 %v583
    %v1267 = vunpack.c.l.b16 %v584
    %v1268 = vunpack.c.h.b16 %v584
    %v1269 = vunpack.c.l.b16 %v585
    %v1270 = vunpack.c.h.b16 %v585
    %v1271 = vunpack.c.l.b16 %v586
    %v1272 = vunpack.c.h.b16 %v586
    %v1273 = vunpack.c.l.b16 %v587
    %v1274 = vunpack.c.h.b16 %v587
    %v1275 = vunpack.c.l.b16 %v588
    %v1276 = vunpack.c.h.b16 %v588
    %v1277 = vunpack.c.l.b16 %v589
    %v1278 = vunpack.c.h.b16 %v589
    %v1279 = vunpack.c.l.b16 %v590
    %v1280 = vunpack.c.h.b16 %v590
    %v1281 = vunpack.c.l.b16 %v591
    %v1282 = vunpack.c.h.b16 %v591
    %v1283 = vunpack.c.l.b16 %v592
    %v1284 = vunpack.c.h.b16 %v592
    %v1285 = vunpack.c.l.b16 %v593
    %v1286 = vunpack.c.h.b16 %v593
    %v1287 = vunpack.c.l.b16 %v594
    %v1288 = vunpack.c.h.b16 %v594
    %v1289 = vunpack.c.l.b16 %v595
    %v1290 = vunpack.c.h.b16 %v595
    %v1291 = vunpack.c.l.b16 %v596
    %v1292 = vunpack.c.h.b16 %v596
    %v1293 = vunpack.c.l.b16 %v597
    %v1294 = vunpack.c.h.b16 %v597
    %v1295 = vunpack.c.l.b16 %v598
    %v1296 = vunpack.c.h.b16 %v598
    %v1297 = vunpack.c.l.b16 %v599
    %v1298 = vunpack.c.h.b16 %v599
    %v1299 = vunpack.c.l.b16 %v600
    %v1300 = vunpack.c.h.b16 %v600
    %v1301 = vunpack.c.l.b16 %v601
    %v1302 = vunpack.c.h.b16 %v601
    %v1303 = vunpack.c.l.b16 %v602
    %v1304 = vunpack.c.h.b16 %v602
    %v1305 = vunpack.c.l.b16 %v603
    %v1306 = vunpack.c.h.b16 %v603
    %v1307 = vunpack.c.l.b16 %v604
    %v1308 = vunpack.c.h.b16 %v604
    %v1309 = vunpack.c.l.b16 %v605
    %v1310 = vunpack.c.h.b16 %v605
    %v1311 = vunpack.c.l.b16 %v606
    %v1312 = vunpack.c.h.b16 %v606
    %v1313 = vpack.c.b16 %v1225, %v1223
    %v1314 = vpack.c.b16 %v1226, %v1224
    %v1315 = vpack.c.b16 %v1229, %v1227
    %v1316 = vpack.c.b16 %v1230, %v1228
    %v1317 = vpack.c.b16 %v1233, %v1231
    %v1318 = vpack.c.b16 %v1234, %v1232
    %v1319 = vpack.c.b16 %v1237, %v1235
    %v1320 = vpack.c.b16 %v1238, %v1236
    %v1321 = vpack.c.b16 %v1241, %v1239
    %v1322 = vpack.c.b16 %v1242, %v1240
    %v1323 = vpack.c.b16 %v1245, %v1243
    %v1324 = vpack.c.b16 %v1246, %v1244
    %v1325 = vpack.c.b16 %v1249, %v1247
    %v1326 = vpack.c.b16 %v1250, %v1248
    %v1327 = vpack.c.b16 %v1253, %v1251
    %v1328 = vpack.c.b16 %v1254, %v1252
    %v1329 = vpack.c.b16 %v1257, %v1255
    %v1330 = vpack.c.b16 %v1258, %v1256
    %v1331 = vpack.c.b16 %v1261, %v1259
    %v1332 = vpack.c.b16 %v1262, %v1260
    %v1333 = vpack.c.b16 %v1265, %v1263
    %v1334 = vpack.c.b16 %v1266, %v1264
    %v1335 = vpack.c.b16 %v1269, %v1267
    %v1336 = vpack.c.b16 %v1270, %v1268
    %v1337 = vpack.c.b16 %v1273, %v1271
    %v1338 = vpack.c.b16 %v1274, %v1272
    %v1339 = vpack.c.b16 %v1277, %v1275
    %v1340 = vpack.c.b16 %v1278, %v1276
    %v1341 = vpack.c.b16 %v1281, %v1279
    %v1342 = vpack.c.b16 %v1282, %v1280
    %v1343 = vpack.c.b16 %v1285, %v1283
    %v1344 = vpack.c.b16 %v1286, %v1284
    %v1345 = vpack.c.b16 %v1289, %v1287
    %v1346 = vpack.c.b16 %v1290, %v1288
    %v1347 = vpack.c.b16 %v1293, %v1291
    %v1348 = vpack.c.b16 %v1294, %v1292
    %v1349 = vpack.c.b16 %v1297, %v1295
    %v1350 = vpack.c.b16 %v1298, %v1296
    %v1351 = vpack.c.b16 %v1301, %v1299
    %v1352 = vpack.c.b16 %v1302, %v1300
    %v1353 = vpack.c.b16 %v1305, %v1303
    %v1354 = vpack.c.b16 %v1306, %v1304
    %v1355 = vpack.c.b16 %v1309, %v1307
    %v1356 = vpack.c.b16 %v1310, %v1308
    %v1357 = vpack.c.b16 %v1311, %v1311
    %v1358 = vpack.c.b16 %v1312, %v1312
    %v1404 = vsel %vm1085, %v561, 0
    %v1407 = vsel %vm1089, %v1357, 0
    %v1410 = vsel %vm1089, %v1358, 0
    %1412 = vmatprep.subr.bf16.mxu0 %v1314
    %1413 = vmatpush1.bf16.msra.mxu0 %v1313
    %1414 = vmatprep.subr.bf16.mxu0 %v1316
    %1415 = vmatpush1.bf16.msra.mxu0 %v1315
    %1416 = vmatprep.subr.bf16.mxu0 %v1318
    %1417 = vmatpush1.bf16.msra.mxu0 %v1317
    %1418 = vmatprep.subr.bf16.mxu0 %v1320
    %1419 = vmatpush1.bf16.msra.mxu0 %v1319
    %1420 = vmatprep.subr.bf16.mxu0 %v1322
    %1421 = vmatpush1.bf16.msra.mxu0 %v1321
    %1422 = vmatprep.subr.bf16.mxu0 %v1324
    %1423 = vmatpush1.bf16.msra.mxu0 %v1323
    %1424 = vmatprep.subr.bf16.mxu0 %v1326
    %1425 = vmatpush1.bf16.msra.mxu0 %v1325
    %1426 = vmatprep.subr.bf16.mxu0 %v1328
    %1427 = vmatpush1.bf16.msra.mxu0 %v1327
    %1428 = vmatprep.subr.bf16.mxu0 %v1330
    %1429 = vmatpush1.bf16.msra.mxu0 %v1329
    %1430 = vmatprep.subr.bf16.mxu0 %v1332
    %1431 = vmatpush1.bf16.msra.mxu0 %v1331
    %1432 = vmatprep.subr.bf16.mxu0 %v1334
    %1433 = vmatpush1.bf16.msra.mxu0 %v1333
    %1434 = vmatprep.subr.bf16.mxu0 %v1336
    %1435 = vmatpush1.bf16.msra.mxu0 %v1335
    %1436 = vmatprep.subr.bf16.mxu0 %v1338
    %1437 = vmatpush1.bf16.msra.mxu0 %v1337
    %1438 = vmatprep.subr.bf16.mxu0 %v1340
    %1439 = vmatpush1.bf16.msra.mxu0 %v1339
    %1440 = vmatprep.subr.bf16.mxu0 %v1342
    %1441 = vmatpush1.bf16.msra.mxu0 %v1341
    %1442 = vmatprep.subr.bf16.mxu0 %v1344
    %1443 = vmatpush1.bf16.msra.mxu0 %v1343
    %1444 = vmatprep.mubr.bf16.mxu0 %v560
    %1445 = vmatmul.mubr.bf16.gmra.mrb[0].mxu0 %v559
    %v1446 = vpop.f32.mrb[0].mxu0
    %v1447 = vadd.f32 %v1172, %v1446
    %v1448 = vpop.f32.mrb[0].mxu0
    %v1449 = vadd.f32 %v1174, %v1448
    %v1450 = vpop.f32.mrb[0].mxu0
    %v1451 = vpop.f32.mrb[0].mxu0
    %1452 = vdwg.mxu0
    %1453 = vmatprep.subr.bf16.mxu0 %v1346
    %1454 = vmatpush1.bf16.msra.mxu0 %v1345
    %1455 = vmatprep.subr.bf16.mxu0 %v1348
    %1456 = vmatpush1.bf16.msra.mxu0 %v1347
    %1457 = vmatprep.subr.bf16.mxu0 %v1350
    %1458 = vmatpush1.bf16.msra.mxu0 %v1349
    %1459 = vmatprep.subr.bf16.mxu0 %v1352
    %1460 = vmatpush1.bf16.msra.mxu0 %v1351
    %1461 = vmatprep.subr.bf16.mxu0 %v1354
    %1462 = vmatpush1.bf16.msra.mxu0 %v1353
    %1463 = vmatprep.subr.bf16.mxu0 %v1356
    %1464 = vmatpush1.bf16.msra.mxu0 %v1355
    %1465 = vmatprep.subr.bf16.mxu0 %v1410
    %1466 = vmatpush1.bf16.msra.mxu0 %v1407
    %1467 = vmatprep.subr.bf16.mxu0 0
    %1468 = vmatpush1.bf16.msra.mxu0 0
    %1469 = vmatprep.subr.bf16.mxu0 0
    %1470 = vmatpush1.bf16.msra.mxu0 0
    %1471 = vmatprep.subr.bf16.mxu0 0
    %1472 = vmatpush1.bf16.msra.mxu0 0
    %1473 = vmatprep.subr.bf16.mxu0 0
    %1474 = vmatpush1.bf16.msra.mxu0 0
    %1475 = vmatprep.subr.bf16.mxu0 0
    %1476 = vmatpush1.bf16.msra.mxu0 0
    %1477 = vmatprep.subr.bf16.mxu0 0
    %1478 = vmatpush1.bf16.msra.mxu0 0
    %1479 = vmatprep.subr.bf16.mxu0 0
    %1480 = vmatpush1.bf16.msra.mxu0 0
    %1481 = vmatprep.subr.bf16.mxu0 0
    %1482 = vmatpush1.bf16.msra.mxu0 0
    %1483 = vmatprep.subr.bf16.mxu0 0
    %1484 = vmatpush1.bf16.msra.mxu0 0
    %1485 = vmatprep.mubr.bf16.mxu0 0
    %1486 = vmatmul.mubr.bf16.gmra.mrb[0].mxu0 %v1404
    %v1487 = vpop.f32.mrb[0].mxu0
    %v1488 = vadd.f32 %v1447, %v1487
    %v1489 = vpop.f32.mrb[0].mxu0
    %v1490 = vadd.f32 %v1449, %v1489
    %v1491 = vpop.f32.mrb[0].mxu0
    %v1492 = vpop.f32.mrb[0].mxu0
    %1493 = vdwg.mxu0
    %s1494 = sld [smem:[#allocation6 + $0x12]]
    %v1495 = vstv %s1494
    %v1496 = vmul.f32 %v343, %v1495
    %v1497 = vmul.f32 %v344, %v1495
    %v1498 = vmul.f32 %v345, %v1495
    %s1499 = sld [smem:[#allocation6 + $0x13]]
    %v1500 = vstv %s1499
    %v1501 = vmul.f32 %v343, %v1500
    %v1502 = vmul.f32 %v344, %v1500
    %v1503 = vmul.f32 %v345, %v1500
    %1507 = vrot.lane.b32.xlu0 %v1501, 127
    %v1508 = vpop.permute.xlu0 %1507
    %1509 = vrot.lane.b32.xlu0 %v1502, 127
    %v1510 = vpop.permute.xlu0 %1509
    %1511 = vrot.lane.b32.xlu0 %v1503, 127
    %v1512 = vpop.permute.xlu0 %1511
    %v1513 = vsel %vm366, %v1508, %v1510
    %v1514 = vsel %vm366, %v1510, %v1512
    %v1518 = vadd.f32 %v1496, %v1513
    %v1519 = vadd.f32 %v1497, %v1514
    %v1520 = vadd.f32 %v1498, %v1512
    %s1521 = sld [smem:[#allocation6 + $0x14]]
    %v1522 = vstv %s1521
    %v1523 = vmul.f32 %v343, %v1522
    %v1524 = vmul.f32 %v344, %v1522
    %v1525 = vmul.f32 %v345, %v1522
    %1529 = vrot.lane.b32.xlu0 %v1523, 126
    %v1530 = vpop.permute.xlu0 %1529
    %1531 = vrot.lane.b32.xlu0 %v1524, 126
    %v1532 = vpop.permute.xlu0 %1531
    %1533 = vrot.lane.b32.xlu0 %v1525, 126
    %v1534 = vpop.permute.xlu0 %1533
    %v1535 = vsel %vm389, %v1530, %v1532
    %v1536 = vsel %vm389, %v1532, %v1534
    %v1540 = vadd.f32 %v1518, %v1535
    %v1541 = vadd.f32 %v1519, %v1536
    %v1542 = vadd.f32 %v1520, %v1534
    %s1543 = sld [smem:[#allocation6 + $0x15]]
    %v1544 = vstv %s1543
    %v1545 = vmul.f32 %v343, %v1544
    %v1546 = vmul.f32 %v344, %v1544
    %v1547 = vmul.f32 %v345, %v1544
    %1551 = vrot.lane.b32.xlu0 %v1545, 108
    %v1552 = vpop.permute.xlu0 %1551
    %1553 = vrot.lane.b32.xlu0 %v1546, 108
    %v1554 = vpop.permute.xlu0 %1553
    %1555 = vrot.lane.b32.xlu0 %v1547, 108
    %v1556 = vpop.permute.xlu0 %1555
    %v1557 = vsel %vm412, %v1552, %v1554
    %v1558 = vsel %vm412, %v1554, %v1556
    %v1562 = vadd.f32 %v1540, %v1557
    %v1563 = vadd.f32 %v1541, %v1558
    %v1564 = vadd.f32 %v1542, %v1556
    %s1565 = sld [smem:[#allocation6 + $0x16]]
    %v1566 = vstv %s1565
    %v1567 = vmul.f32 %v343, %v1566
    %v1568 = vmul.f32 %v344, %v1566
    %v1569 = vmul.f32 %v345, %v1566
    %1573 = vrot.lane.b32.xlu0 %v1567, 107
    %v1574 = vpop.permute.xlu0 %1573
    %1575 = vrot.lane.b32.xlu0 %v1568, 107
    %v1576 = vpop.permute.xlu0 %1575
    %1577 = vrot.lane.b32.xlu0 %v1569, 107
    %v1578 = vpop.permute.xlu0 %1577
    %v1579 = vsel %vm435, %v1574, %v1576
    %v1580 = vsel %vm435, %v1576, %v1578
    %v1584 = vadd.f32 %v1562, %v1579
    %v1585 = vadd.f32 %v1563, %v1580
    %v1586 = vadd.f32 %v1564, %v1578
    %s1587 = sld [smem:[#allocation6 + $0x17]]
    %v1588 = vstv %s1587
    %v1589 = vmul.f32 %v343, %v1588
    %v1590 = vmul.f32 %v344, %v1588
    %v1591 = vmul.f32 %v345, %v1588
    %1595 = vrot.lane.b32.xlu0 %v1589, 106
    %v1596 = vpop.permute.xlu0 %1595
    %1597 = vrot.lane.b32.xlu0 %v1590, 106
    %v1598 = vpop.permute.xlu0 %1597
    %1599 = vrot.lane.b32.xlu0 %v1591, 106
    %v1600 = vpop.permute.xlu0 %1599
    %v1601 = vsel %vm458, %v1596, %v1598
    %v1602 = vsel %vm458, %v1598, %v1600
    %v1606 = vadd.f32 %v1584, %v1601
    %v1607 = vadd.f32 %v1585, %v1602
    %v1608 = vadd.f32 %v1586, %v1600
    %s1609 = sld [smem:[#allocation6 + $0x18]]
    %v1610 = vstv %s1609
    %v1611 = vmul.f32 %v343, %v1610
    %v1612 = vmul.f32 %v344, %v1610
    %v1613 = vmul.f32 %v345, %v1610
    %v1614 = vmul.f32 %v346, %v1610
    %1619 = vrot.lane.b32.xlu0 %v1611, 88
    %v1620 = vpop.permute.xlu0 %1619
    %1621 = vrot.lane.b32.xlu0 %v1612, 88
    %v1622 = vpop.permute.xlu0 %1621
    %1623 = vrot.lane.b32.xlu0 %v1613, 88
    %v1624 = vpop.permute.xlu0 %1623
    %1625 = vrot.lane.b32.xlu0 %v1614, 88
    %v1626 = vpop.permute.xlu0 %1625
    %v1627 = vsel %vm485, %v1620, %v1622
    %v1628 = vsel %vm485, %v1622, %v1624
    %v1629 = vsel %vm485, %v1624, %v1626
    %v1633 = vadd.f32 %v1606, %v1627
    %v1634 = vadd.f32 %v1607, %v1628
    %v1635 = vadd.f32 %v1608, %v1629
    %s1636 = sld [smem:[#allocation6 + $0x19]]
    %v1637 = vstv %s1636
    %v1638 = vmul.f32 %v343, %v1637
    %v1639 = vmul.f32 %v344, %v1637
    %v1640 = vmul.f32 %v345, %v1637
    %v1641 = vmul.f32 %v346, %v1637
    %1646 = vrot.lane.b32.xlu0 %v1638, 87
    %v1647 = vpop.permute.xlu0 %1646
    %1648 = vrot.lane.b32.xlu0 %v1639, 87
    %v1649 = vpop.permute.xlu0 %1648
    %1650 = vrot.lane.b32.xlu0 %v1640, 87
    %v1651 = vpop.permute.xlu0 %1650
    %1652 = vrot.lane.b32.xlu0 %v1641, 87
    %v1653 = vpop.permute.xlu0 %1652
    %v1654 = vsel %vm513, %v1647, %v1649
    %v1655 = vsel %vm513, %v1649, %v1651
    %v1656 = vsel %vm513, %v1651, %v1653
    %v1660 = vadd.f32 %v1633, %v1654
    %v1661 = vadd.f32 %v1634, %v1655
    %v1662 = vadd.f32 %v1635, %v1656
    %s1663 = sld [smem:[#allocation6 + $0x1a]]
    %v1664 = vstv %s1663
    %v1665 = vmul.f32 %v343, %v1664
    %v1666 = vmul.f32 %v344, %v1664
    %v1667 = vmul.f32 %v345, %v1664
    %v1668 = vmul.f32 %v346, %v1664
    %1673 = vrot.lane.b32.xlu0 %v1665, 86
    %v1674 = vpop.permute.xlu0 %1673
    %1675 = vrot.lane.b32.xlu0 %v1666, 86
    %v1676 = vpop.permute.xlu0 %1675
    %1677 = vrot.lane.b32.xlu0 %v1667, 86
    %v1678 = vpop.permute.xlu0 %1677
    %1679 = vrot.lane.b32.xlu0 %v1668, 86
    %v1680 = vpop.permute.xlu0 %1679
    %v1681 = vsel %vm541, %v1674, %v1676
    %v1682 = vsel %vm541, %v1676, %v1678
    %v1683 = vsel %vm541, %v1678, %v1680
    %v1687 = vadd.f32 %v1660, %v1681
    %v1688 = vadd.f32 %v1661, %v1682
    %v1689 = vadd.f32 %v1662, %v1683
    %s1690 = sld [smem:[#allocation6 + $0x4a]]
    %v1691 = vstv %s1690
    %v1692 = vadd.f32 %v1687, %v1691
    %v1693 = vadd.f32 %v1688, %v1691
    %v1694 = vadd.f32 %v1689, %v1691
    %v1695 = vmax.f32 %v1692, 0.0
    %v1696 = vmax.f32 %v1693, 0.0
    %v1697 = vmax.f32 %v1694, 0.0
    %v1698 = vpack.c.bf16 %v1695, %v1695
    %v1699 = vpack.c.bf16 %v1696, %v1696
    %v1700 = vpack.c.bf16 %v1697, %v1697
    %s1701 = scalar_lea.vmem %s5, 720
    %v1702 = vld [vmem:[%s1701] sm:$0xff]
    %v1703 = vld [vmem:[%s1701 + $0x8] sm:$0xff]
    %v1704 = vld [vmem:[%s1701 + $0x10] sm:$0xff]
    %v1705 = vld [vmem:[%s1701 + $0x18] sm:$0xff]
    %v1706 = vld [vmem:[%s1701 + $0x20] sm:$0xff]
    %v1707 = vld [vmem:[%s1701 + $0x28] sm:$0xff]
    %v1708 = vld [vmem:[%s1701 + $0x30] sm:$0xff]
    %v1709 = vld [vmem:[%s1701 + $0x38] sm:$0xff]
    %v1710 = vld [vmem:[%s1701 + $0x40] sm:$0xff]
    %v1711 = vld [vmem:[%s1701 + $0x48] sm:$0xff]
    %v1712 = vld [vmem:[%s1701 + $0x50] sm:$0xff]
    %v1713 = vld [vmem:[%s1701 + $0x58] sm:$0xff]
    %v1714 = vld [vmem:[%s1701 + $0x60] sm:$0xff]
    %v1715 = vld [vmem:[%s1701 + $0x68] sm:$0xff]
    %v1716 = vld [vmem:[%s1701 + $0x70] sm:$0xff]
    %v1717 = vld [vmem:[%s1701 + $0x78] sm:$0xff]
    %v1718 = vld [vmem:[%s1701 + $0x80] sm:$0xff]
    %v1719 = vld [vmem:[%s1701 + $0x88] sm:$0xff]
    %v1720 = vld [vmem:[%s1701 + $0x90] sm:$0xff]
    %v1721 = vld [vmem:[%s1701 + $0x98] sm:$0xff]
    %v1722 = vld [vmem:[%s1701 + $0xa0] sm:$0xff]
    %v1723 = vld [vmem:[%s1701 + $0xa8] sm:$0xff]
    %v1724 = vld [vmem:[%s1701 + $0xb0] sm:$0xff]
    %v1725 = vld [vmem:[%s1701 + $0xb8] sm:$0xff]
    %v1726 = vld [vmem:[%s1701 + $0xc0] sm:$0xff]
    %v1727 = vld [vmem:[%s1701 + $0xc8] sm:$0xff]
    %v1728 = vld [vmem:[%s1701 + $0xd0] sm:$0xff]
    %v1729 = vld [vmem:[%s1701 + $0xd8] sm:$0xff]
    %v1730 = vld [vmem:[%s1701 + $0xe0] sm:$0xff]
    %v1731 = vld [vmem:[%s1701 + $0xe8] sm:$0xff]
    %v1732 = vld [vmem:[%s1701 + $0xf0] sm:$0xff]
    %v1733 = vld [vmem:[%s1701 + $0xf8] sm:$0xff]
    %v1734 = vld [vmem:[%s1701 + $0x100] sm:$0xff]
    %v1735 = vld [vmem:[%s1701 + $0x108] sm:$0xff]
    %v1736 = vld [vmem:[%s1701 + $0x110] sm:$0xff]
    %v1737 = vld [vmem:[%s1701 + $0x118] sm:$0xff]
    %v1738 = vld [vmem:[%s1701 + $0x120] sm:$0xff]
    %v1739 = vld [vmem:[%s1701 + $0x128] sm:$0xff]
    %v1740 = vld [vmem:[%s1701 + $0x130] sm:$0xff]
    %v1741 = vld [vmem:[%s1701 + $0x138] sm:$0xff]
    %v1742 = vld [vmem:[%s1701 + $0x140] sm:$0xff]
    %v1743 = vld [vmem:[%s1701 + $0x148] sm:$0xff]
    %v1744 = vld [vmem:[%s1701 + $0x150] sm:$0xff]
    %v1745 = vld [vmem:[%s1701 + $0x158] sm:$0xff]
    %v1746 = vld [vmem:[%s1701 + $0x160] sm:$0xff]
    %v1792 = vunpack.c.l.b16 %v1702
    %v1793 = vunpack.c.h.b16 %v1702
    %v1794 = vunpack.c.l.b16 %v1703
    %v1795 = vunpack.c.h.b16 %v1703
    %v1796 = vunpack.c.l.b16 %v1704
    %v1797 = vunpack.c.h.b16 %v1704
    %v1798 = vunpack.c.l.b16 %v1705
    %v1799 = vunpack.c.h.b16 %v1705
    %v1800 = vunpack.c.l.b16 %v1706
    %v1801 = vunpack.c.h.b16 %v1706
    %v1802 = vunpack.c.l.b16 %v1707
    %v1803 = vunpack.c.h.b16 %v1707
    %v1804 = vunpack.c.l.b16 %v1708
    %v1805 = vunpack.c.h.b16 %v1708
    %v1806 = vunpack.c.l.b16 %v1709
    %v1807 = vunpack.c.h.b16 %v1709
    %v1808 = vunpack.c.l.b16 %v1710
    %v1809 = vunpack.c.h.b16 %v1710
    %v1810 = vunpack.c.l.b16 %v1711
    %v1811 = vunpack.c.h.b16 %v1711
    %v1812 = vunpack.c.l.b16 %v1712
    %v1813 = vunpack.c.h.b16 %v1712
    %v1814 = vunpack.c.l.b16 %v1713
    %v1815 = vunpack.c.h.b16 %v1713
    %v1816 = vunpack.c.l.b16 %v1714
    %v1817 = vunpack.c.h.b16 %v1714
    %v1818 = vunpack.c.l.b16 %v1715
    %v1819 = vunpack.c.h.b16 %v1715
    %v1820 = vunpack.c.l.b16 %v1716
    %v1821 = vunpack.c.h.b16 %v1716
    %v1822 = vunpack.c.l.b16 %v1717
    %v1823 = vunpack.c.h.b16 %v1717
    %v1824 = vunpack.c.l.b16 %v1718
    %v1825 = vunpack.c.h.b16 %v1718
    %v1826 = vunpack.c.l.b16 %v1719
    %v1827 = vunpack.c.h.b16 %v1719
    %v1828 = vunpack.c.l.b16 %v1720
    %v1829 = vunpack.c.h.b16 %v1720
    %v1830 = vunpack.c.l.b16 %v1721
    %v1831 = vunpack.c.h.b16 %v1721
    %v1832 = vunpack.c.l.b16 %v1722
    %v1833 = vunpack.c.h.b16 %v1722
    %v1834 = vunpack.c.l.b16 %v1723
    %v1835 = vunpack.c.h.b16 %v1723
    %v1836 = vunpack.c.l.b16 %v1724
    %v1837 = vunpack.c.h.b16 %v1724
    %v1838 = vunpack.c.l.b16 %v1725
    %v1839 = vunpack.c.h.b16 %v1725
    %v1840 = vunpack.c.l.b16 %v1726
    %v1841 = vunpack.c.h.b16 %v1726
    %v1842 = vunpack.c.l.b16 %v1727
    %v1843 = vunpack.c.h.b16 %v1727
    %v1844 = vunpack.c.l.b16 %v1728
    %v1845 = vunpack.c.h.b16 %v1728
    %v1846 = vunpack.c.l.b16 %v1729
    %v1847 = vunpack.c.h.b16 %v1729
    %v1848 = vunpack.c.l.b16 %v1730
    %v1849 = vunpack.c.h.b16 %v1730
    %v1850 = vunpack.c.l.b16 %v1731
    %v1851 = vunpack.c.h.b16 %v1731
    %v1852 = vunpack.c.l.b16 %v1732
    %v1853 = vunpack.c.h.b16 %v1732
    %v1854 = vunpack.c.l.b16 %v1733
    %v1855 = vunpack.c.h.b16 %v1733
    %v1856 = vunpack.c.l.b16 %v1734
    %v1857 = vunpack.c.h.b16 %v1734
    %v1858 = vunpack.c.l.b16 %v1735
    %v1859 = vunpack.c.h.b16 %v1735
    %v1860 = vunpack.c.l.b16 %v1736
    %v1861 = vunpack.c.h.b16 %v1736
    %v1862 = vunpack.c.l.b16 %v1737
    %v1863 = vunpack.c.h.b16 %v1737
    %v1864 = vunpack.c.l.b16 %v1738
    %v1865 = vunpack.c.h.b16 %v1738
    %v1866 = vunpack.c.l.b16 %v1739
    %v1867 = vunpack.c.h.b16 %v1739
    %v1868 = vunpack.c.l.b16 %v1740
    %v1869 = vunpack.c.h.b16 %v1740
    %v1870 = vunpack.c.l.b16 %v1741
    %v1871 = vunpack.c.h.b16 %v1741
    %v1872 = vunpack.c.l.b16 %v1742
    %v1873 = vunpack.c.h.b16 %v1742
    %v1874 = vunpack.c.l.b16 %v1743
    %v1875 = vunpack.c.h.b16 %v1743
    %v1876 = vunpack.c.l.b16 %v1744
    %v1877 = vunpack.c.h.b16 %v1744
    %v1878 = vunpack.c.l.b16 %v1745
    %v1879 = vunpack.c.h.b16 %v1745
    %v1880 = vunpack.c.l.b16 %v1746
    %v1881 = vunpack.c.h.b16 %v1746
    %v1882 = vpack.c.b16 %v1794, %v1792
    %v1883 = vpack.c.b16 %v1795, %v1793
    %v1884 = vpack.c.b16 %v1798, %v1796
    %v1885 = vpack.c.b16 %v1799, %v1797
    %v1886 = vpack.c.b16 %v1802, %v1800
    %v1887 = vpack.c.b16 %v1803, %v1801
    %v1888 = vpack.c.b16 %v1806, %v1804
    %v1889 = vpack.c.b16 %v1807, %v1805
    %v1890 = vpack.c.b16 %v1810, %v1808
    %v1891 = vpack.c.b16 %v1811, %v1809
    %v1892 = vpack.c.b16 %v1814, %v1812
    %v1893 = vpack.c.b16 %v1815, %v1813
    %v1894 = vpack.c.b16 %v1818, %v1816
    %v1895 = vpack.c.b16 %v1819, %v1817
    %v1896 = vpack.c.b16 %v1822, %v1820
    %v1897 = vpack.c.b16 %v1823, %v1821
    %v1898 = vpack.c.b16 %v1826, %v1824
    %v1899 = vpack.c.b16 %v1827, %v1825
    %v1900 = vpack.c.b16 %v1830, %v1828
    %v1901 = vpack.c.b16 %v1831, %v1829
    %v1902 = vpack.c.b16 %v1834, %v1832
    %v1903 = vpack.c.b16 %v1835, %v1833
    %v1904 = vpack.c.b16 %v1838, %v1836
    %v1905 = vpack.c.b16 %v1839, %v1837
    %v1906 = vpack.c.b16 %v1842, %v1840
    %v1907 = vpack.c.b16 %v1843, %v1841
    %v1908 = vpack.c.b16 %v1846, %v1844
    %v1909 = vpack.c.b16 %v1847, %v1845
    %v1910 = vpack.c.b16 %v1850, %v1848
    %v1911 = vpack.c.b16 %v1851, %v1849
    %v1912 = vpack.c.b16 %v1854, %v1852
    %v1913 = vpack.c.b16 %v1855, %v1853
    %v1914 = vpack.c.b16 %v1858, %v1856
    %v1915 = vpack.c.b16 %v1859, %v1857
    %v1916 = vpack.c.b16 %v1862, %v1860
    %v1917 = vpack.c.b16 %v1863, %v1861
    %v1918 = vpack.c.b16 %v1866, %v1864
    %v1919 = vpack.c.b16 %v1867, %v1865
    %v1920 = vpack.c.b16 %v1870, %v1868
    %v1921 = vpack.c.b16 %v1871, %v1869
    %v1922 = vpack.c.b16 %v1874, %v1872
    %v1923 = vpack.c.b16 %v1875, %v1873
    %v1924 = vpack.c.b16 %v1878, %v1876
    %v1925 = vpack.c.b16 %v1879, %v1877
    %v1926 = vpack.c.b16 %v1880, %v1880
    %v1927 = vpack.c.b16 %v1881, %v1881
    %v1973 = vsel %vm1085, %v1700, 0
    %v1976 = vsel %vm1089, %v1926, 0
    %v1979 = vsel %vm1089, %v1927, 0
    %1981 = vmatprep.subr.bf16.mxu0 %v1883
    %1982 = vmatpush1.bf16.msra.mxu0 %v1882
    %1983 = vmatprep.subr.bf16.mxu0 %v1885
    %1984 = vmatpush1.bf16.msra.mxu0 %v1884
    %1985 = vmatprep.subr.bf16.mxu0 %v1887
    %1986 = vmatpush1.bf16.msra.mxu0 %v1886
    %1987 = vmatprep.subr.bf16.mxu0 %v1889
    %1988 = vmatpush1.bf16.msra.mxu0 %v1888
    %1989 = vmatprep.subr.bf16.mxu0 %v1891
    %1990 = vmatpush1.bf16.msra.mxu0 %v1890
    %1991 = vmatprep.subr.bf16.mxu0 %v1893
    %1992 = vmatpush1.bf16.msra.mxu0 %v1892
    %1993 = vmatprep.subr.bf16.mxu0 %v1895
    %1994 = vmatpush1.bf16.msra.mxu0 %v1894
    %1995 = vmatprep.subr.bf16.mxu0 %v1897
    %1996 = vmatpush1.bf16.msra.mxu0 %v1896
    %1997 = vmatprep.subr.bf16.mxu0 %v1899
    %1998 = vmatpush1.bf16.msra.mxu0 %v1898
    %1999 = vmatprep.subr.bf16.mxu0 %v1901
    %2000 = vmatpush1.bf16.msra.mxu0 %v1900
    %2001 = vmatprep.subr.bf16.mxu0 %v1903
    %2002 = vmatpush1.bf16.msra.mxu0 %v1902
    %2003 = vmatprep.subr.bf16.mxu0 %v1905
    %2004 = vmatpush1.bf16.msra.mxu0 %v1904
    %2005 = vmatprep.subr.bf16.mxu0 %v1907
    %2006 = vmatpush1.bf16.msra.mxu0 %v1906
    %2007 = vmatprep.subr.bf16.mxu0 %v1909
    %2008 = vmatpush1.bf16.msra.mxu0 %v1908
    %2009 = vmatprep.subr.bf16.mxu0 %v1911
    %2010 = vmatpush1.bf16.msra.mxu0 %v1910
    %2011 = vmatprep.subr.bf16.mxu0 %v1913
    %2012 = vmatpush1.bf16.msra.mxu0 %v1912
    %2013 = vmatprep.mubr.bf16.mxu0 %v1699
    %2014 = vmatmul.mubr.bf16.gmra.mrb[0].mxu0 %v1698
    %v2015 = vpop.f32.mrb[0].mxu0
    %v2016 = vadd.f32 0.0, %v2015
    %v2017 = vpop.f32.mrb[0].mxu0
    %v2018 = vadd.f32 0.0, %v2017
    %v2019 = vpop.f32.mrb[0].mxu0
    %v2020 = vpop.f32.mrb[0].mxu0
    %2021 = vdwg.mxu0
    %2022 = vmatprep.subr.bf16.mxu0 %v1915
    %2023 = vmatpush1.bf16.msra.mxu0 %v1914
    %2024 = vmatprep.subr.bf16.mxu0 %v1917
    %2025 = vmatpush1.bf16.msra.mxu0 %v1916
    %2026 = vmatprep.subr.bf16.mxu0 %v1919
    %2027 = vmatpush1.bf16.msra.mxu0 %v1918
    %2028 = vmatprep.subr.bf16.mxu0 %v1921
    %2029 = vmatpush1.bf16.msra.mxu0 %v1920
    %2030 = vmatprep.subr.bf16.mxu0 %v1923
    %2031 = vmatpush1.bf16.msra.mxu0 %v1922
    %2032 = vmatprep.subr.bf16.mxu0 %v1925
    %2033 = vmatpush1.bf16.msra.mxu0 %v1924
    %2034 = vmatprep.subr.bf16.mxu0 %v1979
    %2035 = vmatpush1.bf16.msra.mxu0 %v1976
    %2036 = vmatprep.subr.bf16.mxu0 0
    %2037 = vmatpush1.bf16.msra.mxu0 0
    %2038 = vmatprep.subr.bf16.mxu0 0
    %2039 = vmatpush1.bf16.msra.mxu0 0
    %2040 = vmatprep.subr.bf16.mxu0 0
    %2041 = vmatpush1.bf16.msra.mxu0 0
    %2042 = vmatprep.subr.bf16.mxu0 0
    %2043 = vmatpush1.bf16.msra.mxu0 0
    %2044 = vmatprep.subr.bf16.mxu0 0
    %2045 = vmatpush1.bf16.msra.mxu0 0
    %2046 = vmatprep.subr.bf16.mxu0 0
    %2047 = vmatpush1.bf16.msra.mxu0 0
    %2048 = vmatprep.subr.bf16.mxu0 0
    %2049 = vmatpush1.bf16.msra.mxu0 0
    %2050 = vmatprep.subr.bf16.mxu0 0
    %2051 = vmatpush1.bf16.msra.mxu0 0
    %2052 = vmatprep.subr.bf16.mxu0 0
    %2053 = vmatpush1.bf16.msra.mxu0 0
    %2054 = vmatprep.mubr.bf16.mxu0 0
    %2055 = vmatmul.mubr.bf16.gmra.mrb[0].mxu0 %v1973
    %v2056 = vpop.f32.mrb[0].mxu0
    %v2057 = vadd.f32 %v2016, %v2056
    %v2058 = vpop.f32.mrb[0].mxu0
    %v2059 = vadd.f32 %v2018, %v2058
    %v2060 = vpop.f32.mrb[0].mxu0
    %v2061 = vpop.f32.mrb[0].mxu0
    %2062 = vdwg.mxu0
    %v2063 = vadd.f32 %v1488, %v2057
    %v2064 = vadd.f32 %v1490, %v2059
    %s2065 = sld [smem:[#allocation6 + $0x1b]]
    %v2066 = vstv %s2065
    %v2067 = vmul.f32 %v343, %v2066
    %v2068 = vmul.f32 %v344, %v2066
    %v2069 = vmul.f32 %v345, %v2066
    %s2070 = sld [smem:[#allocation6 + $0x1c]]
    %v2071 = vstv %s2070
    %v2072 = vmul.f32 %v343, %v2071
    %v2073 = vmul.f32 %v344, %v2071
    %v2074 = vmul.f32 %v345, %v2071
    %2078 = vrot.lane.b32.xlu0 %v2072, 127
    %v2079 = vpop.permute.xlu0 %2078
    %2080 = vrot.lane.b32.xlu0 %v2073, 127
    %v2081 = vpop.permute.xlu0 %2080
    %2082 = vrot.lane.b32.xlu0 %v2074, 127
    %v2083 = vpop.permute.xlu0 %2082
    %v2084 = vsel %vm366, %v2079, %v2081
    %v2085 = vsel %vm366, %v2081, %v2083
    %v2089 = vadd.f32 %v2067, %v2084
    %v2090 = vadd.f32 %v2068, %v2085
    %v2091 = vadd.f32 %v2069, %v2083
    %s2092 = sld [smem:[#allocation6 + $0x1d]]
    %v2093 = vstv %s2092
    %v2094 = vmul.f32 %v343, %v2093
    %v2095 = vmul.f32 %v344, %v2093
    %v2096 = vmul.f32 %v345, %v2093
    %2100 = vrot.lane.b32.xlu0 %v2094, 126
    %v2101 = vpop.permute.xlu0 %2100
    %2102 = vrot.lane.b32.xlu0 %v2095, 126
    %v2103 = vpop.permute.xlu0 %2102
    %2104 = vrot.lane.b32.xlu0 %v2096, 126
    %v2105 = vpop.permute.xlu0 %2104
    %v2106 = vsel %vm389, %v2101, %v2103
    %v2107 = vsel %vm389, %v2103, %v2105
    %v2111 = vadd.f32 %v2089, %v2106
    %v2112 = vadd.f32 %v2090, %v2107
    %v2113 = vadd.f32 %v2091, %v2105
    %s2114 = sld [smem:[#allocation6 + $0x1e]]
    %v2115 = vstv %s2114
    %v2116 = vmul.f32 %v343, %v2115
    %v2117 = vmul.f32 %v344, %v2115
    %v2118 = vmul.f32 %v345, %v2115
    %2122 = vrot.lane.b32.xlu0 %v2116, 108
    %v2123 = vpop.permute.xlu0 %2122
    %2124 = vrot.lane.b32.xlu0 %v2117, 108
    %v2125 = vpop.permute.xlu0 %2124
    %2126 = vrot.lane.b32.xlu0 %v2118, 108
    %v2127 = vpop.permute.xlu0 %2126
    %v2128 = vsel %vm412, %v2123, %v2125
    %v2129 = vsel %vm412, %v2125, %v2127
    %v2133 = vadd.f32 %v2111, %v2128
    %v2134 = vadd.f32 %v2112, %v2129
    %v2135 = vadd.f32 %v2113, %v2127
    %s2136 = sld [smem:[#allocation6 + $0x1f]]
    %v2137 = vstv %s2136
    %v2138 = vmul.f32 %v343, %v2137
    %v2139 = vmul.f32 %v344, %v2137
    %v2140 = vmul.f32 %v345, %v2137
    %2144 = vrot.lane.b32.xlu0 %v2138, 107
    %v2145 = vpop.permute.xlu0 %2144
    %2146 = vrot.lane.b32.xlu0 %v2139, 107
    %v2147 = vpop.permute.xlu0 %2146
    %2148 = vrot.lane.b32.xlu0 %v2140, 107
    %v2149 = vpop.permute.xlu0 %2148
    %v2150 = vsel %vm435, %v2145, %v2147
    %v2151 = vsel %vm435, %v2147, %v2149
    %v2155 = vadd.f32 %v2133, %v2150
    %v2156 = vadd.f32 %v2134, %v2151
    %v2157 = vadd.f32 %v2135, %v2149
    %s2158 = sld [smem:[#allocation6 + $0x20]]
    %v2159 = vstv %s2158
    %v2160 = vmul.f32 %v343, %v2159
    %v2161 = vmul.f32 %v344, %v2159
    %v2162 = vmul.f32 %v345, %v2159
    %2166 = vrot.lane.b32.xlu0 %v2160, 106
    %v2167 = vpop.permute.xlu0 %2166
    %2168 = vrot.lane.b32.xlu0 %v2161, 106
    %v2169 = vpop.permute.xlu0 %2168
    %2170 = vrot.lane.b32.xlu0 %v2162, 106
    %v2171 = vpop.permute.xlu0 %2170
    %v2172 = vsel %vm458, %v2167, %v2169
    %v2173 = vsel %vm458, %v2169, %v2171
    %v2177 = vadd.f32 %v2155, %v2172
    %v2178 = vadd.f32 %v2156, %v2173
    %v2179 = vadd.f32 %v2157, %v2171
    %s2180 = sld [smem:[#allocation6 + $0x21]]
    %v2181 = vstv %s2180
    %v2182 = vmul.f32 %v343, %v2181
    %v2183 = vmul.f32 %v344, %v2181
    %v2184 = vmul.f32 %v345, %v2181
    %v2185 = vmul.f32 %v346, %v2181
    %2190 = vrot.lane.b32.xlu0 %v2182, 88
    %v2191 = vpop.permute.xlu0 %2190
    %2192 = vrot.lane.b32.xlu0 %v2183, 88
    %v2193 = vpop.permute.xlu0 %2192
    %2194 = vrot.lane.b32.xlu0 %v2184, 88
    %v2195 = vpop.permute.xlu0 %2194
    %2196 = vrot.lane.b32.xlu0 %v2185, 88
    %v2197 = vpop.permute.xlu0 %2196
    %v2198 = vsel %vm485, %v2191, %v2193
    %v2199 = vsel %vm485, %v2193, %v2195
    %v2200 = vsel %vm485, %v2195, %v2197
    %v2204 = vadd.f32 %v2177, %v2198
    %v2205 = vadd.f32 %v2178, %v2199
    %v2206 = vadd.f32 %v2179, %v2200
    %s2207 = sld [smem:[#allocation6 + $0x22]]
    %v2208 = vstv %s2207
    %v2209 = vmul.f32 %v343, %v2208
    %v2210 = vmul.f32 %v344, %v2208
    %v2211 = vmul.f32 %v345, %v2208
    %v2212 = vmul.f32 %v346, %v2208
    %2217 = vrot.lane.b32.xlu0 %v2209, 87
    %v2218 = vpop.permute.xlu0 %2217
    %2219 = vrot.lane.b32.xlu0 %v2210, 87
    %v2220 = vpop.permute.xlu0 %2219
    %2221 = vrot.lane.b32.xlu0 %v2211, 87
    %v2222 = vpop.permute.xlu0 %2221
    %2223 = vrot.lane.b32.xlu0 %v2212, 87
    %v2224 = vpop.permute.xlu0 %2223
    %v2225 = vsel %vm513, %v2218, %v2220
    %v2226 = vsel %vm513, %v2220, %v2222
    %v2227 = vsel %vm513, %v2222, %v2224
    %v2231 = vadd.f32 %v2204, %v2225
    %v2232 = vadd.f32 %v2205, %v2226
    %v2233 = vadd.f32 %v2206, %v2227
    %s2234 = sld [smem:[#allocation6 + $0x23]]
    %v2235 = vstv %s2234
    %v2236 = vmul.f32 %v343, %v2235
    %v2237 = vmul.f32 %v344, %v2235
    %v2238 = vmul.f32 %v345, %v2235
    %v2239 = vmul.f32 %v346, %v2235
    %2244 = vrot.lane.b32.xlu0 %v2236, 86
    %v2245 = vpop.permute.xlu0 %2244
    %2246 = vrot.lane.b32.xlu0 %v2237, 86
    %v2247 = vpop.permute.xlu0 %2246
    %2248 = vrot.lane.b32.xlu0 %v2238, 86
    %v2249 = vpop.permute.xlu0 %2248
    %2250 = vrot.lane.b32.xlu0 %v2239, 86
    %v2251 = vpop.permute.xlu0 %2250
    %v2252 = vsel %vm541, %v2245, %v2247
    %v2253 = vsel %vm541, %v2247, %v2249
    %v2254 = vsel %vm541, %v2249, %v2251
    %v2258 = vadd.f32 %v2231, %v2252
    %v2259 = vadd.f32 %v2232, %v2253
    %v2260 = vadd.f32 %v2233, %v2254
    %s2261 = sld [smem:[#allocation6 + $0x4b]]
    %v2262 = vstv %s2261
    %v2263 = vadd.f32 %v2258, %v2262
    %v2264 = vadd.f32 %v2259, %v2262
    %v2265 = vadd.f32 %v2260, %v2262
    %v2266 = vmax.f32 %v2263, 0.0
    %v2267 = vmax.f32 %v2264, 0.0
    %v2268 = vmax.f32 %v2265, 0.0
    %v2269 = vpack.c.bf16 %v2266, %v2266
    %v2270 = vpack.c.bf16 %v2267, %v2267
    %v2271 = vpack.c.bf16 %v2268, %v2268
    %s2272 = scalar_lea.vmem %s5, 1080
    %v2273 = vld [vmem:[%s2272] sm:$0xff]
    %v2274 = vld [vmem:[%s2272 + $0x8] sm:$0xff]
    %v2275 = vld [vmem:[%s2272 + $0x10] sm:$0xff]
    %v2276 = vld [vmem:[%s2272 + $0x18] sm:$0xff]
    %v2277 = vld [vmem:[%s2272 + $0x20] sm:$0xff]
    %v2278 = vld [vmem:[%s2272 + $0x28] sm:$0xff]
    %v2279 = vld [vmem:[%s2272 + $0x30] sm:$0xff]
    %v2280 = vld [vmem:[%s2272 + $0x38] sm:$0xff]
    %v2281 = vld [vmem:[%s2272 + $0x40] sm:$0xff]
    %v2282 = vld [vmem:[%s2272 + $0x48] sm:$0xff]
    %v2283 = vld [vmem:[%s2272 + $0x50] sm:$0xff]
    %v2284 = vld [vmem:[%s2272 + $0x58] sm:$0xff]
    %v2285 = vld [vmem:[%s2272 + $0x60] sm:$0xff]
    %v2286 = vld [vmem:[%s2272 + $0x68] sm:$0xff]
    %v2287 = vld [vmem:[%s2272 + $0x70] sm:$0xff]
    %v2288 = vld [vmem:[%s2272 + $0x78] sm:$0xff]
    %v2289 = vld [vmem:[%s2272 + $0x80] sm:$0xff]
    %v2290 = vld [vmem:[%s2272 + $0x88] sm:$0xff]
    %v2291 = vld [vmem:[%s2272 + $0x90] sm:$0xff]
    %v2292 = vld [vmem:[%s2272 + $0x98] sm:$0xff]
    %v2293 = vld [vmem:[%s2272 + $0xa0] sm:$0xff]
    %v2294 = vld [vmem:[%s2272 + $0xa8] sm:$0xff]
    %v2295 = vld [vmem:[%s2272 + $0xb0] sm:$0xff]
    %v2296 = vld [vmem:[%s2272 + $0xb8] sm:$0xff]
    %v2297 = vld [vmem:[%s2272 + $0xc0] sm:$0xff]
    %v2298 = vld [vmem:[%s2272 + $0xc8] sm:$0xff]
    %v2299 = vld [vmem:[%s2272 + $0xd0] sm:$0xff]
    %v2300 = vld [vmem:[%s2272 + $0xd8] sm:$0xff]
    %v2301 = vld [vmem:[%s2272 + $0xe0] sm:$0xff]
    %v2302 = vld [vmem:[%s2272 + $0xe8] sm:$0xff]
    %v2303 = vld [vmem:[%s2272 + $0xf0] sm:$0xff]
    %v2304 = vld [vmem:[%s2272 + $0xf8] sm:$0xff]
    %v2305 = vld [vmem:[%s2272 + $0x100] sm:$0xff]
    %v2306 = vld [vmem:[%s2272 + $0x108] sm:$0xff]
    %v2307 = vld [vmem:[%s2272 + $0x110] sm:$0xff]
    %v2308 = vld [vmem:[%s2272 + $0x118] sm:$0xff]
    %v2309 = vld [vmem:[%s2272 + $0x120] sm:$0xff]
    %v2310 = vld [vmem:[%s2272 + $0x128] sm:$0xff]
    %v2311 = vld [vmem:[%s2272 + $0x130] sm:$0xff]
    %v2312 = vld [vmem:[%s2272 + $0x138] sm:$0xff]
    %v2313 = vld [vmem:[%s2272 + $0x140] sm:$0xff]
    %v2314 = vld [vmem:[%s2272 + $0x148] sm:$0xff]
    %v2315 = vld [vmem:[%s2272 + $0x150] sm:$0xff]
    %v2316 = vld [vmem:[%s2272 + $0x158] sm:$0xff]
    %v2317 = vld [vmem:[%s2272 + $0x160] sm:$0xff]
    %v2363 = vunpack.c.l.b16 %v2273
    %v2364 = vunpack.c.h.b16 %v2273
    %v2365 = vunpack.c.l.b16 %v2274
    %v2366 = vunpack.c.h.b16 %v2274
    %v2367 = vunpack.c.l.b16 %v2275
    %v2368 = vunpack.c.h.b16 %v2275
    %v2369 = vunpack.c.l.b16 %v2276
    %v2370 = vunpack.c.h.b16 %v2276
    %v2371 = vunpack.c.l.b16 %v2277
    %v2372 = vunpack.c.h.b16 %v2277
    %v2373 = vunpack.c.l.b16 %v2278
    %v2374 = vunpack.c.h.b16 %v2278
    %v2375 = vunpack.c.l.b16 %v2279
    %v2376 = vunpack.c.h.b16 %v2279
    %v2377 = vunpack.c.l.b16 %v2280
    %v2378 = vunpack.c.h.b16 %v2280
    %v2379 = vunpack.c.l.b16 %v2281
    %v2380 = vunpack.c.h.b16 %v2281
    %v2381 = vunpack.c.l.b16 %v2282
    %v2382 = vunpack.c.h.b16 %v2282
    %v2383 = vunpack.c.l.b16 %v2283
    %v2384 = vunpack.c.h.b16 %v2283
    %v2385 = vunpack.c.l.b16 %v2284
    %v2386 = vunpack.c.h.b16 %v2284
    %v2387 = vunpack.c.l.b16 %v2285
    %v2388 = vunpack.c.h.b16 %v2285
    %v2389 = vunpack.c.l.b16 %v2286
    %v2390 = vunpack.c.h.b16 %v2286
    %v2391 = vunpack.c.l.b16 %v2287
    %v2392 = vunpack.c.h.b16 %v2287
    %v2393 = vunpack.c.l.b16 %v2288
    %v2394 = vunpack.c.h.b16 %v2288
    %v2395 = vunpack.c.l.b16 %v2289
    %v2396 = vunpack.c.h.b16 %v2289
    %v2397 = vunpack.c.l.b16 %v2290
    %v2398 = vunpack.c.h.b16 %v2290
    %v2399 = vunpack.c.l.b16 %v2291
    %v2400 = vunpack.c.h.b16 %v2291
    %v2401 = vunpack.c.l.b16 %v2292
    %v2402 = vunpack.c.h.b16 %v2292
    %v2403 = vunpack.c.l.b16 %v2293
    %v2404 = vunpack.c.h.b16 %v2293
    %v2405 = vunpack.c.l.b16 %v2294
    %v2406 = vunpack.c.h.b16 %v2294
    %v2407 = vunpack.c.l.b16 %v2295
    %v2408 = vunpack.c.h.b16 %v2295
    %v2409 = vunpack.c.l.b16 %v2296
    %v2410 = vunpack.c.h.b16 %v2296
    %v2411 = vunpack.c.l.b16 %v2297
    %v2412 = vunpack.c.h.b16 %v2297
    %v2413 = vunpack.c.l.b16 %v2298
    %v2414 = vunpack.c.h.b16 %v2298
    %v2415 = vunpack.c.l.b16 %v2299
    %v2416 = vunpack.c.h.b16 %v2299
    %v2417 = vunpack.c.l.b16 %v2300
    %v2418 = vunpack.c.h.b16 %v2300
    %v2419 = vunpack.c.l.b16 %v2301
    %v2420 = vunpack.c.h.b16 %v2301
    %v2421 = vunpack.c.l.b16 %v2302
    %v2422 = vunpack.c.h.b16 %v2302
    %v2423 = vunpack.c.l.b16 %v2303
    %v2424 = vunpack.c.h.b16 %v2303
    %v2425 = vunpack.c.l.b16 %v2304
    %v2426 = vunpack.c.h.b16 %v2304
    %v2427 = vunpack.c.l.b16 %v2305
    %v2428 = vunpack.c.h.b16 %v2305
    %v2429 = vunpack.c.l.b16 %v2306
    %v2430 = vunpack.c.h.b16 %v2306
    %v2431 = vunpack.c.l.b16 %v2307
    %v2432 = vunpack.c.h.b16 %v2307
    %v2433 = vunpack.c.l.b16 %v2308
    %v2434 = vunpack.c.h.b16 %v2308
    %v2435 = vunpack.c.l.b16 %v2309
    %v2436 = vunpack.c.h.b16 %v2309
    %v2437 = vunpack.c.l.b16 %v2310
    %v2438 = vunpack.c.h.b16 %v2310
    %v2439 = vunpack.c.l.b16 %v2311
    %v2440 = vunpack.c.h.b16 %v2311
    %v2441 = vunpack.c.l.b16 %v2312
    %v2442 = vunpack.c.h.b16 %v2312
    %v2443 = vunpack.c.l.b16 %v2313
    %v2444 = vunpack.c.h.b16 %v2313
    %v2445 = vunpack.c.l.b16 %v2314
    %v2446 = vunpack.c.h.b16 %v2314
    %v2447 = vunpack.c.l.b16 %v2315
    %v2448 = vunpack.c.h.b16 %v2315
    %v2449 = vunpack.c.l.b16 %v2316
    %v2450 = vunpack.c.h.b16 %v2316
    %v2451 = vunpack.c.l.b16 %v2317
    %v2452 = vunpack.c.h.b16 %v2317
    %v2453 = vpack.c.b16 %v2365, %v2363
    %v2454 = vpack.c.b16 %v2366, %v2364
    %v2455 = vpack.c.b16 %v2369, %v2367
    %v2456 = vpack.c.b16 %v2370, %v2368
    %v2457 = vpack.c.b16 %v2373, %v2371
    %v2458 = vpack.c.b16 %v2374, %v2372
    %v2459 = vpack.c.b16 %v2377, %v2375
    %v2460 = vpack.c.b16 %v2378, %v2376
    %v2461 = vpack.c.b16 %v2381, %v2379
    %v2462 = vpack.c.b16 %v2382, %v2380
    %v2463 = vpack.c.b16 %v2385, %v2383
    %v2464 = vpack.c.b16 %v2386, %v2384
    %v2465 = vpack.c.b16 %v2389, %v2387
    %v2466 = vpack.c.b16 %v2390, %v2388
    %v2467 = vpack.c.b16 %v2393, %v2391
    %v2468 = vpack.c.b16 %v2394, %v2392
    %v2469 = vpack.c.b16 %v2397, %v2395
    %v2470 = vpack.c.b16 %v2398, %v2396
    %v2471 = vpack.c.b16 %v2401, %v2399
    %v2472 = vpack.c.b16 %v2402, %v2400
    %v2473 = vpack.c.b16 %v2405, %v2403
    %v2474 = vpack.c.b16 %v2406, %v2404
    %v2475 = vpack.c.b16 %v2409, %v2407
    %v2476 = vpack.c.b16 %v2410, %v2408
    %v2477 = vpack.c.b16 %v2413, %v2411
    %v2478 = vpack.c.b16 %v2414, %v2412
    %v2479 = vpack.c.b16 %v2417, %v2415
    %v2480 = vpack.c.b16 %v2418, %v2416
    %v2481 = vpack.c.b16 %v2421, %v2419
    %v2482 = vpack.c.b16 %v2422, %v2420
    %v2483 = vpack.c.b16 %v2425, %v2423
    %v2484 = vpack.c.b16 %v2426, %v2424
    %v2485 = vpack.c.b16 %v2429, %v2427
    %v2486 = vpack.c.b16 %v2430, %v2428
    %v2487 = vpack.c.b16 %v2433, %v2431
    %v2488 = vpack.c.b16 %v2434, %v2432
    %v2489 = vpack.c.b16 %v2437, %v2435
    %v2490 = vpack.c.b16 %v2438, %v2436
    %v2491 = vpack.c.b16 %v2441, %v2439
    %v2492 = vpack.c.b16 %v2442, %v2440
    %v2493 = vpack.c.b16 %v2445, %v2443
    %v2494 = vpack.c.b16 %v2446, %v2444
    %v2495 = vpack.c.b16 %v2449, %v2447
    %v2496 = vpack.c.b16 %v2450, %v2448
    %v2497 = vpack.c.b16 %v2451, %v2451
    %v2498 = vpack.c.b16 %v2452, %v2452
    %v2544 = vsel %vm1085, %v2271, 0
    %v2547 = vsel %vm1089, %v2497, 0
    %v2550 = vsel %vm1089, %v2498, 0
    %2552 = vmatprep.subr.bf16.mxu0 %v2454
    %2553 = vmatpush1.bf16.msra.mxu0 %v2453
    %2554 = vmatprep.subr.bf16.mxu0 %v2456
    %2555 = vmatpush1.bf16.msra.mxu0 %v2455
    %2556 = vmatprep.subr.bf16.mxu0 %v2458
    %2557 = vmatpush1.bf16.msra.mxu0 %v2457
    %2558 = vmatprep.subr.bf16.mxu0 %v2460
    %2559 = vmatpush1.bf16.msra.mxu0 %v2459
    %2560 = vmatprep.subr.bf16.mxu0 %v2462
    %2561 = vmatpush1.bf16.msra.mxu0 %v2461
    %2562 = vmatprep.subr.bf16.mxu0 %v2464
    %2563 = vmatpush1.bf16.msra.mxu0 %v2463
    %2564 = vmatprep.subr.bf16.mxu0 %v2466
    %2565 = vmatpush1.bf16.msra.mxu0 %v2465
    %2566 = vmatprep.subr.bf16.mxu0 %v2468
    %2567 = vmatpush1.bf16.msra.mxu0 %v2467
    %2568 = vmatprep.subr.bf16.mxu0 %v2470
    %2569 = vmatpush1.bf16.msra.mxu0 %v2469
    %2570 = vmatprep.subr.bf16.mxu0 %v2472
    %2571 = vmatpush1.bf16.msra.mxu0 %v2471
    %2572 = vmatprep.subr.bf16.mxu0 %v2474
    %2573 = vmatpush1.bf16.msra.mxu0 %v2473
    %2574 = vmatprep.subr.bf16.mxu0 %v2476
    %2575 = vmatpush1.bf16.msra.mxu0 %v2475
    %2576 = vmatprep.subr.bf16.mxu0 %v2478
    %2577 = vmatpush1.bf16.msra.mxu0 %v2477
    %2578 = vmatprep.subr.bf16.mxu0 %v2480
    %2579 = vmatpush1.bf16.msra.mxu0 %v2479
    %2580 = vmatprep.subr.bf16.mxu0 %v2482
    %2581 = vmatpush1.bf16.msra.mxu0 %v2481
    %2582 = vmatprep.subr.bf16.mxu0 %v2484
    %2583 = vmatpush1.bf16.msra.mxu0 %v2483
    %2584 = vmatprep.mubr.bf16.mxu0 %v2270
    %2585 = vmatmul.mubr.bf16.gmra.mrb[0].mxu0 %v2269
    %v2586 = vpop.f32.mrb[0].mxu0
    %v2587 = vadd.f32 0.0, %v2586
    %v2588 = vpop.f32.mrb[0].mxu0
    %v2589 = vadd.f32 0.0, %v2588
    %v2590 = vpop.f32.mrb[0].mxu0
    %v2591 = vpop.f32.mrb[0].mxu0
    %2592 = vdwg.mxu0
    %2593 = vmatprep.subr.bf16.mxu0 %v2486
    %2594 = vmatpush1.bf16.msra.mxu0 %v2485
    %2595 = vmatprep.subr.bf16.mxu0 %v2488
    %2596 = vmatpush1.bf16.msra.mxu0 %v2487
    %2597 = vmatprep.subr.bf16.mxu0 %v2490
    %2598 = vmatpush1.bf16.msra.mxu0 %v2489
    %2599 = vmatprep.subr.bf16.mxu0 %v2492
    %2600 = vmatpush1.bf16.msra.mxu0 %v2491
    %2601 = vmatprep.subr.bf16.mxu0 %v2494
    %2602 = vmatpush1.bf16.msra.mxu0 %v2493
    %2603 = vmatprep.subr.bf16.mxu0 %v2496
    %2604 = vmatpush1.bf16.msra.mxu0 %v2495
    %2605 = vmatprep.subr.bf16.mxu0 %v2550
    %2606 = vmatpush1.bf16.msra.mxu0 %v2547
    %2607 = vmatprep.subr.bf16.mxu0 0
    %2608 = vmatpush1.bf16.msra.mxu0 0
    %2609 = vmatprep.subr.bf16.mxu0 0
    %2610 = vmatpush1.bf16.msra.mxu0 0
    %2611 = vmatprep.subr.bf16.mxu0 0
    %2612 = vmatpush1.bf16.msra.mxu0 0
    %2613 = vmatprep.subr.bf16.mxu0 0
    %2614 = vmatpush1.bf16.msra.mxu0 0
    %2615 = vmatprep.subr.bf16.mxu0 0
    %2616 = vmatpush1.bf16.msra.mxu0 0
    %2617 = vmatprep.subr.bf16.mxu0 0
    %2618 = vmatpush1.bf16.msra.mxu0 0
    %2619 = vmatprep.subr.bf16.mxu0 0
    %2620 = vmatpush1.bf16.msra.mxu0 0
    %2621 = vmatprep.subr.bf16.mxu0 0
    %2622 = vmatpush1.bf16.msra.mxu0 0
    %2623 = vmatprep.subr.bf16.mxu0 0
    %2624 = vmatpush1.bf16.msra.mxu0 0
    %2625 = vmatprep.mubr.bf16.mxu0 0
    %2626 = vmatmul.mubr.bf16.gmra.mrb[0].mxu0 %v2544
    %v2627 = vpop.f32.mrb[0].mxu0
    %v2628 = vadd.f32 %v2587, %v2627
    %v2629 = vpop.f32.mrb[0].mxu0
    %v2630 = vadd.f32 %v2589, %v2629
    %v2631 = vpop.f32.mrb[0].mxu0
    %v2632 = vpop.f32.mrb[0].mxu0
    %2633 = vdwg.mxu0
    %v2634 = vadd.f32 %v2063, %v2628
    %v2635 = vadd.f32 %v2064, %v2630
    %s2636 = sld [smem:[#allocation6 + $0x24]]
    %v2637 = vstv %s2636
    %v2638 = vmul.f32 %v343, %v2637
    %v2639 = vmul.f32 %v344, %v2637
    %v2640 = vmul.f32 %v345, %v2637
    %s2641 = sld [smem:[#allocation6 + $0x25]]
    %v2642 = vstv %s2641
    %v2643 = vmul.f32 %v343, %v2642
    %v2644 = vmul.f32 %v344, %v2642
    %v2645 = vmul.f32 %v345, %v2642
    %2649 = vrot.lane.b32.xlu0 %v2643, 127
    %v2650 = vpop.permute.xlu0 %2649
    %2651 = vrot.lane.b32.xlu0 %v2644, 127
    %v2652 = vpop.permute.xlu0 %2651
    %2653 = vrot.lane.b32.xlu0 %v2645, 127
    %v2654 = vpop.permute.xlu0 %2653
    %v2655 = vsel %vm366, %v2650, %v2652
    %v2656 = vsel %vm366, %v2652, %v2654
    %v2660 = vadd.f32 %v2638, %v2655
    %v2661 = vadd.f32 %v2639, %v2656
    %v2662 = vadd.f32 %v2640, %v2654
    %s2663 = sld [smem:[#allocation6 + $0x26]]
    %v2664 = vstv %s2663
    %v2665 = vmul.f32 %v343, %v2664
    %v2666 = vmul.f32 %v344, %v2664
    %v2667 = vmul.f32 %v345, %v2664
    %2671 = vrot.lane.b32.xlu0 %v2665, 126
    %v2672 = vpop.permute.xlu0 %2671
    %2673 = vrot.lane.b32.xlu0 %v2666, 126
    %v2674 = vpop.permute.xlu0 %2673
    %2675 = vrot.lane.b32.xlu0 %v2667, 126
    %v2676 = vpop.permute.xlu0 %2675
    %v2677 = vsel %vm389, %v2672, %v2674
    %v2678 = vsel %vm389, %v2674, %v2676
    %v2682 = vadd.f32 %v2660, %v2677
    %v2683 = vadd.f32 %v2661, %v2678
    %v2684 = vadd.f32 %v2662, %v2676
    %s2685 = sld [smem:[#allocation6 + $0x27]]
    %v2686 = vstv %s2685
    %v2687 = vmul.f32 %v343, %v2686
    %v2688 = vmul.f32 %v344, %v2686
    %v2689 = vmul.f32 %v345, %v2686
    %2693 = vrot.lane.b32.xlu0 %v2687, 108
    %v2694 = vpop.permute.xlu0 %2693
    %2695 = vrot.lane.b32.xlu0 %v2688, 108
    %v2696 = vpop.permute.xlu0 %2695
    %2697 = vrot.lane.b32.xlu0 %v2689, 108
    %v2698 = vpop.permute.xlu0 %2697
    %v2699 = vsel %vm412, %v2694, %v2696
    %v2700 = vsel %vm412, %v2696, %v2698
    %v2704 = vadd.f32 %v2682, %v2699
    %v2705 = vadd.f32 %v2683, %v2700
    %v2706 = vadd.f32 %v2684, %v2698
    %s2707 = sld [smem:[#allocation6 + $0x28]]
    %v2708 = vstv %s2707
    %v2709 = vmul.f32 %v343, %v2708
    %v2710 = vmul.f32 %v344, %v2708
    %v2711 = vmul.f32 %v345, %v2708
    %2715 = vrot.lane.b32.xlu0 %v2709, 107
    %v2716 = vpop.permute.xlu0 %2715
    %2717 = vrot.lane.b32.xlu0 %v2710, 107
    %v2718 = vpop.permute.xlu0 %2717
    %2719 = vrot.lane.b32.xlu0 %v2711, 107
    %v2720 = vpop.permute.xlu0 %2719
    %v2721 = vsel %vm435, %v2716, %v2718
    %v2722 = vsel %vm435, %v2718, %v2720
    %v2726 = vadd.f32 %v2704, %v2721
    %v2727 = vadd.f32 %v2705, %v2722
    %v2728 = vadd.f32 %v2706, %v2720
    %s2729 = sld [smem:[#allocation6 + $0x29]]
    %v2730 = vstv %s2729
    %v2731 = vmul.f32 %v343, %v2730
    %v2732 = vmul.f32 %v344, %v2730
    %v2733 = vmul.f32 %v345, %v2730
    %2737 = vrot.lane.b32.xlu0 %v2731, 106
    %v2738 = vpop.permute.xlu0 %2737
    %2739 = vrot.lane.b32.xlu0 %v2732, 106
    %v2740 = vpop.permute.xlu0 %2739
    %2741 = vrot.lane.b32.xlu0 %v2733, 106
    %v2742 = vpop.permute.xlu0 %2741
    %v2743 = vsel %vm458, %v2738, %v2740
    %v2744 = vsel %vm458, %v2740, %v2742
    %v2748 = vadd.f32 %v2726, %v2743
    %v2749 = vadd.f32 %v2727, %v2744
    %v2750 = vadd.f32 %v2728, %v2742
    %s2751 = sld [smem:[#allocation6 + $0x2a]]
    %v2752 = vstv %s2751
    %v2753 = vmul.f32 %v343, %v2752
    %v2754 = vmul.f32 %v344, %v2752
    %v2755 = vmul.f32 %v345, %v2752
    %v2756 = vmul.f32 %v346, %v2752
    %2761 = vrot.lane.b32.xlu0 %v2753, 88
    %v2762 = vpop.permute.xlu0 %2761
    %2763 = vrot.lane.b32.xlu0 %v2754, 88
    %v2764 = vpop.permute.xlu0 %2763
    %2765 = vrot.lane.b32.xlu0 %v2755, 88
    %v2766 = vpop.permute.xlu0 %2765
    %2767 = vrot.lane.b32.xlu0 %v2756, 88
    %v2768 = vpop.permute.xlu0 %2767
    %v2769 = vsel %vm485, %v2762, %v2764
    %v2770 = vsel %vm485, %v2764, %v2766
    %v2771 = vsel %vm485, %v2766, %v2768
    %v2775 = vadd.f32 %v2748, %v2769
    %v2776 = vadd.f32 %v2749, %v2770
    %v2777 = vadd.f32 %v2750, %v2771
    %s2778 = sld [smem:[#allocation6 + $0x2b]]
    %v2779 = vstv %s2778
    %v2780 = vmul.f32 %v343, %v2779
    %v2781 = vmul.f32 %v344, %v2779
    %v2782 = vmul.f32 %v345, %v2779
    %v2783 = vmul.f32 %v346, %v2779
    %2788 = vrot.lane.b32.xlu0 %v2780, 87
    %v2789 = vpop.permute.xlu0 %2788
    %2790 = vrot.lane.b32.xlu0 %v2781, 87
    %v2791 = vpop.permute.xlu0 %2790
    %2792 = vrot.lane.b32.xlu0 %v2782, 87
    %v2793 = vpop.permute.xlu0 %2792
    %2794 = vrot.lane.b32.xlu0 %v2783, 87
    %v2795 = vpop.permute.xlu0 %2794
    %v2796 = vsel %vm513, %v2789, %v2791
    %v2797 = vsel %vm513, %v2791, %v2793
    %v2798 = vsel %vm513, %v2793, %v2795
    %v2802 = vadd.f32 %v2775, %v2796
    %v2803 = vadd.f32 %v2776, %v2797
    %v2804 = vadd.f32 %v2777, %v2798
    %s2805 = sld [smem:[#allocation6 + $0x2c]]
    %v2806 = vstv %s2805
    %v2807 = vmul.f32 %v343, %v2806
    %v2808 = vmul.f32 %v344, %v2806
    %v2809 = vmul.f32 %v345, %v2806
    %v2810 = vmul.f32 %v346, %v2806
    %2815 = vrot.lane.b32.xlu0 %v2807, 86
    %v2816 = vpop.permute.xlu0 %2815
    %2817 = vrot.lane.b32.xlu0 %v2808, 86
    %v2818 = vpop.permute.xlu0 %2817
    %2819 = vrot.lane.b32.xlu0 %v2809, 86
    %v2820 = vpop.permute.xlu0 %2819
    %2821 = vrot.lane.b32.xlu0 %v2810, 86
    %v2822 = vpop.permute.xlu0 %2821
    %v2823 = vsel %vm541, %v2816, %v2818
    %v2824 = vsel %vm541, %v2818, %v2820
    %v2825 = vsel %vm541, %v2820, %v2822
    %v2829 = vadd.f32 %v2802, %v2823
    %v2830 = vadd.f32 %v2803, %v2824
    %v2831 = vadd.f32 %v2804, %v2825
    %s2832 = sld [smem:[#allocation6 + $0x4c]]
    %v2833 = vstv %s2832
    %v2834 = vadd.f32 %v2829, %v2833
    %v2835 = vadd.f32 %v2830, %v2833
    %v2836 = vadd.f32 %v2831, %v2833
    %v2837 = vmax.f32 %v2834, 0.0
    %v2838 = vmax.f32 %v2835, 0.0
    %v2839 = vmax.f32 %v2836, 0.0
    %v2840 = vpack.c.bf16 %v2837, %v2837
    %v2841 = vpack.c.bf16 %v2838, %v2838
    %v2842 = vpack.c.bf16 %v2839, %v2839
    %s2843 = scalar_lea.vmem %s5, 1440
    %v2844 = vld [vmem:[%s2843] sm:$0xff]
    %v2845 = vld [vmem:[%s2843 + $0x8] sm:$0xff]
    %v2846 = vld [vmem:[%s2843 + $0x10] sm:$0xff]
    %v2847 = vld [vmem:[%s2843 + $0x18] sm:$0xff]
    %v2848 = vld [vmem:[%s2843 + $0x20] sm:$0xff]
    %v2849 = vld [vmem:[%s2843 + $0x28] sm:$0xff]
    %v2850 = vld [vmem:[%s2843 + $0x30] sm:$0xff]
    %v2851 = vld [vmem:[%s2843 + $0x38] sm:$0xff]
    %v2852 = vld [vmem:[%s2843 + $0x40] sm:$0xff]
    %v2853 = vld [vmem:[%s2843 + $0x48] sm:$0xff]
    %v2854 = vld [vmem:[%s2843 + $0x50] sm:$0xff]
    %v2855 = vld [vmem:[%s2843 + $0x58] sm:$0xff]
    %v2856 = vld [vmem:[%s2843 + $0x60] sm:$0xff]
    %v2857 = vld [vmem:[%s2843 + $0x68] sm:$0xff]
    %v2858 = vld [vmem:[%s2843 + $0x70] sm:$0xff]
    %v2859 = vld [vmem:[%s2843 + $0x78] sm:$0xff]
    %v2860 = vld [vmem:[%s2843 + $0x80] sm:$0xff]
    %v2861 = vld [vmem:[%s2843 + $0x88] sm:$0xff]
    %v2862 = vld [vmem:[%s2843 + $0x90] sm:$0xff]
    %v2863 = vld [vmem:[%s2843 + $0x98] sm:$0xff]
    %v2864 = vld [vmem:[%s2843 + $0xa0] sm:$0xff]
    %v2865 = vld [vmem:[%s2843 + $0xa8] sm:$0xff]
    %v2866 = vld [vmem:[%s2843 + $0xb0] sm:$0xff]
    %v2867 = vld [vmem:[%s2843 + $0xb8] sm:$0xff]
    %v2868 = vld [vmem:[%s2843 + $0xc0] sm:$0xff]
    %v2869 = vld [vmem:[%s2843 + $0xc8] sm:$0xff]
    %v2870 = vld [vmem:[%s2843 + $0xd0] sm:$0xff]
    %v2871 = vld [vmem:[%s2843 + $0xd8] sm:$0xff]
    %v2872 = vld [vmem:[%s2843 + $0xe0] sm:$0xff]
    %v2873 = vld [vmem:[%s2843 + $0xe8] sm:$0xff]
    %v2874 = vld [vmem:[%s2843 + $0xf0] sm:$0xff]
    %v2875 = vld [vmem:[%s2843 + $0xf8] sm:$0xff]
    %v2876 = vld [vmem:[%s2843 + $0x100] sm:$0xff]
    %v2877 = vld [vmem:[%s2843 + $0x108] sm:$0xff]
    %v2878 = vld [vmem:[%s2843 + $0x110] sm:$0xff]
    %v2879 = vld [vmem:[%s2843 + $0x118] sm:$0xff]
    %v2880 = vld [vmem:[%s2843 + $0x120] sm:$0xff]
    %v2881 = vld [vmem:[%s2843 + $0x128] sm:$0xff]
    %v2882 = vld [vmem:[%s2843 + $0x130] sm:$0xff]
    %v2883 = vld [vmem:[%s2843 + $0x138] sm:$0xff]
    %v2884 = vld [vmem:[%s2843 + $0x140] sm:$0xff]
    %v2885 = vld [vmem:[%s2843 + $0x148] sm:$0xff]
    %v2886 = vld [vmem:[%s2843 + $0x150] sm:$0xff]
    %v2887 = vld [vmem:[%s2843 + $0x158] sm:$0xff]
    %v2888 = vld [vmem:[%s2843 + $0x160] sm:$0xff]
    %v2934 = vunpack.c.l.b16 %v2844
    %v2935 = vunpack.c.h.b16 %v2844
    %v2936 = vunpack.c.l.b16 %v2845
    %v2937 = vunpack.c.h.b16 %v2845
    %v2938 = vunpack.c.l.b16 %v2846
    %v2939 = vunpack.c.h.b16 %v2846
    %v2940 = vunpack.c.l.b16 %v2847
    %v2941 = vunpack.c.h.b16 %v2847
    %v2942 = vunpack.c.l.b16 %v2848
    %v2943 = vunpack.c.h.b16 %v2848
    %v2944 = vunpack.c.l.b16 %v2849
    %v2945 = vunpack.c.h.b16 %v2849
    %v2946 = vunpack.c.l.b16 %v2850
    %v2947 = vunpack.c.h.b16 %v2850
    %v2948 = vunpack.c.l.b16 %v2851
    %v2949 = vunpack.c.h.b16 %v2851
    %v2950 = vunpack.c.l.b16 %v2852
    %v2951 = vunpack.c.h.b16 %v2852
    %v2952 = vunpack.c.l.b16 %v2853
    %v2953 = vunpack.c.h.b16 %v2853
    %v2954 = vunpack.c.l.b16 %v2854
    %v2955 = vunpack.c.h.b16 %v2854
    %v2956 = vunpack.c.l.b16 %v2855
    %v2957 = vunpack.c.h.b16 %v2855
    %v2958 = vunpack.c.l.b16 %v2856
    %v2959 = vunpack.c.h.b16 %v2856
    %v2960 = vunpack.c.l.b16 %v2857
    %v2961 = vunpack.c.h.b16 %v2857
    %v2962 = vunpack.c.l.b16 %v2858
    %v2963 = vunpack.c.h.b16 %v2858
    %v2964 = vunpack.c.l.b16 %v2859
    %v2965 = vunpack.c.h.b16 %v2859
    %v2966 = vunpack.c.l.b16 %v2860
    %v2967 = vunpack.c.h.b16 %v2860
    %v2968 = vunpack.c.l.b16 %v2861
    %v2969 = vunpack.c.h.b16 %v2861
    %v2970 = vunpack.c.l.b16 %v2862
    %v2971 = vunpack.c.h.b16 %v2862
    %v2972 = vunpack.c.l.b16 %v2863
    %v2973 = vunpack.c.h.b16 %v2863
    %v2974 = vunpack.c.l.b16 %v2864
    %v2975 = vunpack.c.h.b16 %v2864
    %v2976 = vunpack.c.l.b16 %v2865
    %v2977 = vunpack.c.h.b16 %v2865
    %v2978 = vunpack.c.l.b16 %v2866
    %v2979 = vunpack.c.h.b16 %v2866
    %v2980 = vunpack.c.l.b16 %v2867
    %v2981 = vunpack.c.h.b16 %v2867
    %v2982 = vunpack.c.l.b16 %v2868
    %v2983 = vunpack.c.h.b16 %v2868
    %v2984 = vunpack.c.l.b16 %v2869
    %v2985 = vunpack.c.h.b16 %v2869
    %v2986 = vunpack.c.l.b16 %v2870
    %v2987 = vunpack.c.h.b16 %v2870
    %v2988 = vunpack.c.l.b16 %v2871
    %v2989 = vunpack.c.h.b16 %v2871
    %v2990 = vunpack.c.l.b16 %v2872
    %v2991 = vunpack.c.h.b16 %v2872
    %v2992 = vunpack.c.l.b16 %v2873
    %v2993 = vunpack.c.h.b16 %v2873
    %v2994 = vunpack.c.l.b16 %v2874
    %v2995 = vunpack.c.h.b16 %v2874
    %v2996 = vunpack.c.l.b16 %v2875
    %v2997 = vunpack.c.h.b16 %v2875
    %v2998 = vunpack.c.l.b16 %v2876
    %v2999 = vunpack.c.h.b16 %v2876
    %v3000 = vunpack.c.l.b16 %v2877
    %v3001 = vunpack.c.h.b16 %v2877
    %v3002 = vunpack.c.l.b16 %v2878
    %v3003 = vunpack.c.h.b16 %v2878
    %v3004 = vunpack.c.l.b16 %v2879
    %v3005 = vunpack.c.h.b16 %v2879
    %v3006 = vunpack.c.l.b16 %v2880
    %v3007 = vunpack.c.h.b16 %v2880
    %v3008 = vunpack.c.l.b16 %v2881
    %v3009 = vunpack.c.h.b16 %v2881
    %v3010 = vunpack.c.l.b16 %v2882
    %v3011 = vunpack.c.h.b16 %v2882
    %v3012 = vunpack.c.l.b16 %v2883
    %v3013 = vunpack.c.h.b16 %v2883
    %v3014 = vunpack.c.l.b16 %v2884
    %v3015 = vunpack.c.h.b16 %v2884
    %v3016 = vunpack.c.l.b16 %v2885
    %v3017 = vunpack.c.h.b16 %v2885
    %v3018 = vunpack.c.l.b16 %v2886
    %v3019 = vunpack.c.h.b16 %v2886
    %v3020 = vunpack.c.l.b16 %v2887
    %v3021 = vunpack.c.h.b16 %v2887
    %v3022 = vunpack.c.l.b16 %v2888
    %v3023 = vunpack.c.h.b16 %v2888
    %v3024 = vpack.c.b16 %v2936, %v2934
    %v3025 = vpack.c.b16 %v2937, %v2935
    %v3026 = vpack.c.b16 %v2940, %v2938
    %v3027 = vpack.c.b16 %v2941, %v2939
    %v3028 = vpack.c.b16 %v2944, %v2942
    %v3029 = vpack.c.b16 %v2945, %v2943
    %v3030 = vpack.c.b16 %v2948, %v2946
    %v3031 = vpack.c.b16 %v2949, %v2947
    %v3032 = vpack.c.b16 %v2952, %v2950
    %v3033 = vpack.c.b16 %v2953, %v2951
    %v3034 = vpack.c.b16 %v2956, %v2954
    %v3035 = vpack.c.b16 %v2957, %v2955
    %v3036 = vpack.c.b16 %v2960, %v2958
    %v3037 = vpack.c.b16 %v2961, %v2959
    %v3038 = vpack.c.b16 %v2964, %v2962
    %v3039 = vpack.c.b16 %v2965, %v2963
    %v3040 = vpack.c.b16 %v2968, %v2966
    %v3041 = vpack.c.b16 %v2969, %v2967
    %v3042 = vpack.c.b16 %v2972, %v2970
    %v3043 = vpack.c.b16 %v2973, %v2971
    %v3044 = vpack.c.b16 %v2976, %v2974
    %v3045 = vpack.c.b16 %v2977, %v2975
    %v3046 = vpack.c.b16 %v2980, %v2978
    %v3047 = vpack.c.b16 %v2981, %v2979
    %v3048 = vpack.c.b16 %v2984, %v2982
    %v3049 = vpack.c.b16 %v2985, %v2983
    %v3050 = vpack.c.b16 %v2988, %v2986
    %v3051 = vpack.c.b16 %v2989, %v2987
    %v3052 = vpack.c.b16 %v2992, %v2990
    %v3053 = vpack.c.b16 %v2993, %v2991
    %v3054 = vpack.c.b16 %v2996, %v2994
    %v3055 = vpack.c.b16 %v2997, %v2995
    %v3056 = vpack.c.b16 %v3000, %v2998
    %v3057 = vpack.c.b16 %v3001, %v2999
    %v3058 = vpack.c.b16 %v3004, %v3002
    %v3059 = vpack.c.b16 %v3005, %v3003
    %v3060 = vpack.c.b16 %v3008, %v3006
    %v3061 = vpack.c.b16 %v3009, %v3007
    %v3062 = vpack.c.b16 %v3012, %v3010
    %v3063 = vpack.c.b16 %v3013, %v3011
    %v3064 = vpack.c.b16 %v3016, %v3014
    %v3065 = vpack.c.b16 %v3017, %v3015
    %v3066 = vpack.c.b16 %v3020, %v3018
    %v3067 = vpack.c.b16 %v3021, %v3019
    %v3068 = vpack.c.b16 %v3022, %v3022
    %v3069 = vpack.c.b16 %v3023, %v3023
    %v3115 = vsel %vm1085, %v2842, 0
    %v3118 = vsel %vm1089, %v3068, 0
    %v3121 = vsel %vm1089, %v3069, 0
    %3123 = vmatprep.subr.bf16.mxu0 %v3025
    %3124 = vmatpush1.bf16.msra.mxu0 %v3024
    %3125 = vmatprep.subr.bf16.mxu0 %v3027
    %3126 = vmatpush1.bf16.msra.mxu0 %v3026
    %3127 = vmatprep.subr.bf16.mxu0 %v3029
    %3128 = vmatpush1.bf16.msra.mxu0 %v3028
    %3129 = vmatprep.subr.bf16.mxu0 %v3031
    %3130 = vmatpush1.bf16.msra.mxu0 %v3030
    %3131 = vmatprep.subr.bf16.mxu0 %v3033
    %3132 = vmatpush1.bf16.msra.mxu0 %v3032
    %3133 = vmatprep.subr.bf16.mxu0 %v3035
    %3134 = vmatpush1.bf16.msra.mxu0 %v3034
    %3135 = vmatprep.subr.bf16.mxu0 %v3037
    %3136 = vmatpush1.bf16.msra.mxu0 %v3036
    %3137 = vmatprep.subr.bf16.mxu0 %v3039
    %3138 = vmatpush1.bf16.msra.mxu0 %v3038
    %3139 = vmatprep.subr.bf16.mxu0 %v3041
    %3140 = vmatpush1.bf16.msra.mxu0 %v3040
    %3141 = vmatprep.subr.bf16.mxu0 %v3043
    %3142 = vmatpush1.bf16.msra.mxu0 %v3042
    %3143 = vmatprep.subr.bf16.mxu0 %v3045
    %3144 = vmatpush1.bf16.msra.mxu0 %v3044
    %3145 = vmatprep.subr.bf16.mxu0 %v3047
    %3146 = vmatpush1.bf16.msra.mxu0 %v3046
    %3147 = vmatprep.subr.bf16.mxu0 %v3049
    %3148 = vmatpush1.bf16.msra.mxu0 %v3048
    %3149 = vmatprep.subr.bf16.mxu0 %v3051
    %3150 = vmatpush1.bf16.msra.mxu0 %v3050
    %3151 = vmatprep.subr.bf16.mxu0 %v3053
    %3152 = vmatpush1.bf16.msra.mxu0 %v3052
    %3153 = vmatprep.subr.bf16.mxu0 %v3055
    %3154 = vmatpush1.bf16.msra.mxu0 %v3054
    %3155 = vmatprep.mubr.bf16.mxu0 %v2841
    %3156 = vmatmul.mubr.bf16.gmra.mrb[0].mxu0 %v2840
    %v3157 = vpop.f32.mrb[0].mxu0
    %v3158 = vadd.f32 0.0, %v3157
    %v3159 = vpop.f32.mrb[0].mxu0
    %v3160 = vadd.f32 0.0, %v3159
    %v3161 = vpop.f32.mrb[0].mxu0
    %v3162 = vpop.f32.mrb[0].mxu0
    %3163 = vdwg.mxu0
    %3164 = vmatprep.subr.bf16.mxu0 %v3057
    %3165 = vmatpush1.bf16.msra.mxu0 %v3056
    %3166 = vmatprep.subr.bf16.mxu0 %v3059
    %3167 = vmatpush1.bf16.msra.mxu0 %v3058
    %3168 = vmatprep.subr.bf16.mxu0 %v3061
    %3169 = vmatpush1.bf16.msra.mxu0 %v3060
    %3170 = vmatprep.subr.bf16.mxu0 %v3063
    %3171 = vmatpush1.bf16.msra.mxu0 %v3062
    %3172 = vmatprep.subr.bf16.mxu0 %v3065
    %3173 = vmatpush1.bf16.msra.mxu0 %v3064
    %3174 = vmatprep.subr.bf16.mxu0 %v3067
    %3175 = vmatpush1.bf16.msra.mxu0 %v3066
    %3176 = vmatprep.subr.bf16.mxu0 %v3121
    %3177 = vmatpush1.bf16.msra.mxu0 %v3118
    %3178 = vmatprep.subr.bf16.mxu0 0
    %3179 = vmatpush1.bf16.msra.mxu0 0
    %3180 = vmatprep.subr.bf16.mxu0 0
    %3181 = vmatpush1.bf16.msra.mxu0 0
    %3182 = vmatprep.subr.bf16.mxu0 0
    %3183 = vmatpush1.bf16.msra.mxu0 0
    %3184 = vmatprep.subr.bf16.mxu0 0
    %3185 = vmatpush1.bf16.msra.mxu0 0
    %3186 = vmatprep.subr.bf16.mxu0 0
    %3187 = vmatpush1.bf16.msra.mxu0 0
    %3188 = vmatprep.subr.bf16.mxu0 0
    %3189 = vmatpush1.bf16.msra.mxu0 0
    %3190 = vmatprep.subr.bf16.mxu0 0
    %3191 = vmatpush1.bf16.msra.mxu0 0
    %3192 = vmatprep.subr.bf16.mxu0 0
    %3193 = vmatpush1.bf16.msra.mxu0 0
    %3194 = vmatprep.subr.bf16.mxu0 0
    %3195 = vmatpush1.bf16.msra.mxu0 0
    %3196 = vmatprep.mubr.bf16.mxu0 0
    %3197 = vmatmul.mubr.bf16.gmra.mrb[0].mxu0 %v3115
    %v3198 = vpop.f32.mrb[0].mxu0
    %v3199 = vadd.f32 %v3158, %v3198
    %v3200 = vpop.f32.mrb[0].mxu0
    %v3201 = vadd.f32 %v3160, %v3200
    %v3202 = vpop.f32.mrb[0].mxu0
    %v3203 = vpop.f32.mrb[0].mxu0
    %3204 = vdwg.mxu0
    %v3205 = vadd.f32 %v2634, %v3199
    %v3206 = vadd.f32 %v2635, %v3201
    %s3207 = sld [smem:[#allocation6 + $0x2d]]
    %v3208 = vstv %s3207
    %v3209 = vmul.f32 %v343, %v3208
    %v3210 = vmul.f32 %v344, %v3208
    %v3211 = vmul.f32 %v345, %v3208
    %s3212 = sld [smem:[#allocation6 + $0x2e]]
    %v3213 = vstv %s3212
    %v3214 = vmul.f32 %v343, %v3213
    %v3215 = vmul.f32 %v344, %v3213
    %v3216 = vmul.f32 %v345, %v3213
    %3220 = vrot.lane.b32.xlu0 %v3214, 127
    %v3221 = vpop.permute.xlu0 %3220
    %3222 = vrot.lane.b32.xlu0 %v3215, 127
    %v3223 = vpop.permute.xlu0 %3222
    %3224 = vrot.lane.b32.xlu0 %v3216, 127
    %v3225 = vpop.permute.xlu0 %3224
    %v3226 = vsel %vm366, %v3221, %v3223
    %v3227 = vsel %vm366, %v3223, %v3225
    %v3231 = vadd.f32 %v3209, %v3226
    %v3232 = vadd.f32 %v3210, %v3227
    %v3233 = vadd.f32 %v3211, %v3225
    %s3234 = sld [smem:[#allocation6 + $0x2f]]
    %v3235 = vstv %s3234
    %v3236 = vmul.f32 %v343, %v3235
    %v3237 = vmul.f32 %v344, %v3235
    %v3238 = vmul.f32 %v345, %v3235
    %3242 = vrot.lane.b32.xlu0 %v3236, 126
    %v3243 = vpop.permute.xlu0 %3242
    %3244 = vrot.lane.b32.xlu0 %v3237, 126
    %v3245 = vpop.permute.xlu0 %3244
    %3246 = vrot.lane.b32.xlu0 %v3238, 126
    %v3247 = vpop.permute.xlu0 %3246
    %v3248 = vsel %vm389, %v3243, %v3245
    %v3249 = vsel %vm389, %v3245, %v3247
    %v3253 = vadd.f32 %v3231, %v3248
    %v3254 = vadd.f32 %v3232, %v3249
    %v3255 = vadd.f32 %v3233, %v3247
    %s3256 = sld [smem:[#allocation6 + $0x30]]
    %v3257 = vstv %s3256
    %v3258 = vmul.f32 %v343, %v3257
    %v3259 = vmul.f32 %v344, %v3257
    %v3260 = vmul.f32 %v345, %v3257
    %3264 = vrot.lane.b32.xlu0 %v3258, 108
    %v3265 = vpop.permute.xlu0 %3264
    %3266 = vrot.lane.b32.xlu0 %v3259, 108
    %v3267 = vpop.permute.xlu0 %3266
    %3268 = vrot.lane.b32.xlu0 %v3260, 108
    %v3269 = vpop.permute.xlu0 %3268
    %v3270 = vsel %vm412, %v3265, %v3267
    %v3271 = vsel %vm412, %v3267, %v3269
    %v3275 = vadd.f32 %v3253, %v3270
    %v3276 = vadd.f32 %v3254, %v3271
    %v3277 = vadd.f32 %v3255, %v3269
    %s3278 = sld [smem:[#allocation6 + $0x31]]
    %v3279 = vstv %s3278
    %v3280 = vmul.f32 %v343, %v3279
    %v3281 = vmul.f32 %v344, %v3279
    %v3282 = vmul.f32 %v345, %v3279
    %3286 = vrot.lane.b32.xlu0 %v3280, 107
    %v3287 = vpop.permute.xlu0 %3286
    %3288 = vrot.lane.b32.xlu0 %v3281, 107
    %v3289 = vpop.permute.xlu0 %3288
    %3290 = vrot.lane.b32.xlu0 %v3282, 107
    %v3291 = vpop.permute.xlu0 %3290
    %v3292 = vsel %vm435, %v3287, %v3289
    %v3293 = vsel %vm435, %v3289, %v3291
    %v3297 = vadd.f32 %v3275, %v3292
    %v3298 = vadd.f32 %v3276, %v3293
    %v3299 = vadd.f32 %v3277, %v3291
    %s3300 = sld [smem:[#allocation6 + $0x32]]
    %v3301 = vstv %s3300
    %v3302 = vmul.f32 %v343, %v3301
    %v3303 = vmul.f32 %v344, %v3301
    %v3304 = vmul.f32 %v345, %v3301
    %3308 = vrot.lane.b32.xlu0 %v3302, 106
    %v3309 = vpop.permute.xlu0 %3308
    %3310 = vrot.lane.b32.xlu0 %v3303, 106
    %v3311 = vpop.permute.xlu0 %3310
    %3312 = vrot.lane.b32.xlu0 %v3304, 106
    %v3313 = vpop.permute.xlu0 %3312
    %v3314 = vsel %vm458, %v3309, %v3311
    %v3315 = vsel %vm458, %v3311, %v3313
    %v3319 = vadd.f32 %v3297, %v3314
    %v3320 = vadd.f32 %v3298, %v3315
    %v3321 = vadd.f32 %v3299, %v3313
    %s3322 = sld [smem:[#allocation6 + $0x33]]
    %v3323 = vstv %s3322
    %v3324 = vmul.f32 %v343, %v3323
    %v3325 = vmul.f32 %v344, %v3323
    %v3326 = vmul.f32 %v345, %v3323
    %v3327 = vmul.f32 %v346, %v3323
    %3332 = vrot.lane.b32.xlu0 %v3324, 88
    %v3333 = vpop.permute.xlu0 %3332
    %3334 = vrot.lane.b32.xlu0 %v3325, 88
    %v3335 = vpop.permute.xlu0 %3334
    %3336 = vrot.lane.b32.xlu0 %v3326, 88
    %v3337 = vpop.permute.xlu0 %3336
    %3338 = vrot.lane.b32.xlu0 %v3327, 88
    %v3339 = vpop.permute.xlu0 %3338
    %v3340 = vsel %vm485, %v3333, %v3335
    %v3341 = vsel %vm485, %v3335, %v3337
    %v3342 = vsel %vm485, %v3337, %v3339
    %v3346 = vadd.f32 %v3319, %v3340
    %v3347 = vadd.f32 %v3320, %v3341
    %v3348 = vadd.f32 %v3321, %v3342
    %s3349 = sld [smem:[#allocation6 + $0x34]]
    %v3350 = vstv %s3349
    %v3351 = vmul.f32 %v343, %v3350
    %v3352 = vmul.f32 %v344, %v3350
    %v3353 = vmul.f32 %v345, %v3350
    %v3354 = vmul.f32 %v346, %v3350
    %3359 = vrot.lane.b32.xlu0 %v3351, 87
    %v3360 = vpop.permute.xlu0 %3359
    %3361 = vrot.lane.b32.xlu0 %v3352, 87
    %v3362 = vpop.permute.xlu0 %3361
    %3363 = vrot.lane.b32.xlu0 %v3353, 87
    %v3364 = vpop.permute.xlu0 %3363
    %3365 = vrot.lane.b32.xlu0 %v3354, 87
    %v3366 = vpop.permute.xlu0 %3365
    %v3367 = vsel %vm513, %v3360, %v3362
    %v3368 = vsel %vm513, %v3362, %v3364
    %v3369 = vsel %vm513, %v3364, %v3366
    %v3373 = vadd.f32 %v3346, %v3367
    %v3374 = vadd.f32 %v3347, %v3368
    %v3375 = vadd.f32 %v3348, %v3369
    %s3376 = sld [smem:[#allocation6 + $0x35]]
    %v3377 = vstv %s3376
    %v3378 = vmul.f32 %v343, %v3377
    %v3379 = vmul.f32 %v344, %v3377
    %v3380 = vmul.f32 %v345, %v3377
    %v3381 = vmul.f32 %v346, %v3377
    %3386 = vrot.lane.b32.xlu0 %v3378, 86
    %v3387 = vpop.permute.xlu0 %3386
    %3388 = vrot.lane.b32.xlu0 %v3379, 86
    %v3389 = vpop.permute.xlu0 %3388
    %3390 = vrot.lane.b32.xlu0 %v3380, 86
    %v3391 = vpop.permute.xlu0 %3390
    %3392 = vrot.lane.b32.xlu0 %v3381, 86
    %v3393 = vpop.permute.xlu0 %3392
    %v3394 = vsel %vm541, %v3387, %v3389
    %v3395 = vsel %vm541, %v3389, %v3391
    %v3396 = vsel %vm541, %v3391, %v3393
    %v3400 = vadd.f32 %v3373, %v3394
    %v3401 = vadd.f32 %v3374, %v3395
    %v3402 = vadd.f32 %v3375, %v3396
    %s3403 = sld [smem:[#allocation6 + $0x4d]]
    %v3404 = vstv %s3403
    %v3405 = vadd.f32 %v3400, %v3404
    %v3406 = vadd.f32 %v3401, %v3404
    %v3407 = vadd.f32 %v3402, %v3404
    %v3408 = vmax.f32 %v3405, 0.0
    %v3409 = vmax.f32 %v3406, 0.0
    %v3410 = vmax.f32 %v3407, 0.0
    %v3411 = vpack.c.bf16 %v3408, %v3408
    %v3412 = vpack.c.bf16 %v3409, %v3409
    %v3413 = vpack.c.bf16 %v3410, %v3410
    %s3414 = scalar_lea.vmem %s5, 1800
    %v3415 = vld [vmem:[%s3414] sm:$0xff]
    %v3416 = vld [vmem:[%s3414 + $0x8] sm:$0xff]
    %v3417 = vld [vmem:[%s3414 + $0x10] sm:$0xff]
    %v3418 = vld [vmem:[%s3414 + $0x18] sm:$0xff]
    %v3419 = vld [vmem:[%s3414 + $0x20] sm:$0xff]
    %v3420 = vld [vmem:[%s3414 + $0x28] sm:$0xff]
    %v3421 = vld [vmem:[%s3414 + $0x30] sm:$0xff]
    %v3422 = vld [vmem:[%s3414 + $0x38] sm:$0xff]
    %v3423 = vld [vmem:[%s3414 + $0x40] sm:$0xff]
    %v3424 = vld [vmem:[%s3414 + $0x48] sm:$0xff]
    %v3425 = vld [vmem:[%s3414 + $0x50] sm:$0xff]
    %v3426 = vld [vmem:[%s3414 + $0x58] sm:$0xff]
    %v3427 = vld [vmem:[%s3414 + $0x60] sm:$0xff]
    %v3428 = vld [vmem:[%s3414 + $0x68] sm:$0xff]
    %v3429 = vld [vmem:[%s3414 + $0x70] sm:$0xff]
    %v3430 = vld [vmem:[%s3414 + $0x78] sm:$0xff]
    %v3431 = vld [vmem:[%s3414 + $0x80] sm:$0xff]
    %v3432 = vld [vmem:[%s3414 + $0x88] sm:$0xff]
    %v3433 = vld [vmem:[%s3414 + $0x90] sm:$0xff]
    %v3434 = vld [vmem:[%s3414 + $0x98] sm:$0xff]
    %v3435 = vld [vmem:[%s3414 + $0xa0] sm:$0xff]
    %v3436 = vld [vmem:[%s3414 + $0xa8] sm:$0xff]
    %v3437 = vld [vmem:[%s3414 + $0xb0] sm:$0xff]
    %v3438 = vld [vmem:[%s3414 + $0xb8] sm:$0xff]
    %v3439 = vld [vmem:[%s3414 + $0xc0] sm:$0xff]
    %v3440 = vld [vmem:[%s3414 + $0xc8] sm:$0xff]
    %v3441 = vld [vmem:[%s3414 + $0xd0] sm:$0xff]
    %v3442 = vld [vmem:[%s3414 + $0xd8] sm:$0xff]
    %v3443 = vld [vmem:[%s3414 + $0xe0] sm:$0xff]
    %v3444 = vld [vmem:[%s3414 + $0xe8] sm:$0xff]
    %v3445 = vld [vmem:[%s3414 + $0xf0] sm:$0xff]
    %v3446 = vld [vmem:[%s3414 + $0xf8] sm:$0xff]
    %v3447 = vld [vmem:[%s3414 + $0x100] sm:$0xff]
    %v3448 = vld [vmem:[%s3414 + $0x108] sm:$0xff]
    %v3449 = vld [vmem:[%s3414 + $0x110] sm:$0xff]
    %v3450 = vld [vmem:[%s3414 + $0x118] sm:$0xff]
    %v3451 = vld [vmem:[%s3414 + $0x120] sm:$0xff]
    %v3452 = vld [vmem:[%s3414 + $0x128] sm:$0xff]
    %v3453 = vld [vmem:[%s3414 + $0x130] sm:$0xff]
    %v3454 = vld [vmem:[%s3414 + $0x138] sm:$0xff]
    %v3455 = vld [vmem:[%s3414 + $0x140] sm:$0xff]
    %v3456 = vld [vmem:[%s3414 + $0x148] sm:$0xff]
    %v3457 = vld [vmem:[%s3414 + $0x150] sm:$0xff]
    %v3458 = vld [vmem:[%s3414 + $0x158] sm:$0xff]
    %v3459 = vld [vmem:[%s3414 + $0x160] sm:$0xff]
    %v3505 = vunpack.c.l.b16 %v3415
    %v3506 = vunpack.c.h.b16 %v3415
    %v3507 = vunpack.c.l.b16 %v3416
    %v3508 = vunpack.c.h.b16 %v3416
    %v3509 = vunpack.c.l.b16 %v3417
    %v3510 = vunpack.c.h.b16 %v3417
    %v3511 = vunpack.c.l.b16 %v3418
    %v3512 = vunpack.c.h.b16 %v3418
    %v3513 = vunpack.c.l.b16 %v3419
    %v3514 = vunpack.c.h.b16 %v3419
    %v3515 = vunpack.c.l.b16 %v3420
    %v3516 = vunpack.c.h.b16 %v3420
    %v3517 = vunpack.c.l.b16 %v3421
    %v3518 = vunpack.c.h.b16 %v3421
    %v3519 = vunpack.c.l.b16 %v3422
    %v3520 = vunpack.c.h.b16 %v3422
    %v3521 = vunpack.c.l.b16 %v3423
    %v3522 = vunpack.c.h.b16 %v3423
    %v3523 = vunpack.c.l.b16 %v3424
    %v3524 = vunpack.c.h.b16 %v3424
    %v3525 = vunpack.c.l.b16 %v3425
    %v3526 = vunpack.c.h.b16 %v3425
    %v3527 = vunpack.c.l.b16 %v3426
    %v3528 = vunpack.c.h.b16 %v3426
    %v3529 = vunpack.c.l.b16 %v3427
    %v3530 = vunpack.c.h.b16 %v3427
    %v3531 = vunpack.c.l.b16 %v3428
    %v3532 = vunpack.c.h.b16 %v3428
    %v3533 = vunpack.c.l.b16 %v3429
    %v3534 = vunpack.c.h.b16 %v3429
    %v3535 = vunpack.c.l.b16 %v3430
    %v3536 = vunpack.c.h.b16 %v3430
    %v3537 = vunpack.c.l.b16 %v3431
    %v3538 = vunpack.c.h.b16 %v3431
    %v3539 = vunpack.c.l.b16 %v3432
    %v3540 = vunpack.c.h.b16 %v3432
    %v3541 = vunpack.c.l.b16 %v3433
    %v3542 = vunpack.c.h.b16 %v3433
    %v3543 = vunpack.c.l.b16 %v3434
    %v3544 = vunpack.c.h.b16 %v3434
    %v3545 = vunpack.c.l.b16 %v3435
    %v3546 = vunpack.c.h.b16 %v3435
    %v3547 = vunpack.c.l.b16 %v3436
    %v3548 = vunpack.c.h.b16 %v3436
    %v3549 = vunpack.c.l.b16 %v3437
    %v3550 = vunpack.c.h.b16 %v3437
    %v3551 = vunpack.c.l.b16 %v3438
    %v3552 = vunpack.c.h.b16 %v3438
    %v3553 = vunpack.c.l.b16 %v3439
    %v3554 = vunpack.c.h.b16 %v3439
    %v3555 = vunpack.c.l.b16 %v3440
    %v3556 = vunpack.c.h.b16 %v3440
    %v3557 = vunpack.c.l.b16 %v3441
    %v3558 = vunpack.c.h.b16 %v3441
    %v3559 = vunpack.c.l.b16 %v3442
    %v3560 = vunpack.c.h.b16 %v3442
    %v3561 = vunpack.c.l.b16 %v3443
    %v3562 = vunpack.c.h.b16 %v3443
    %v3563 = vunpack.c.l.b16 %v3444
    %v3564 = vunpack.c.h.b16 %v3444
    %v3565 = vunpack.c.l.b16 %v3445
    %v3566 = vunpack.c.h.b16 %v3445
    %v3567 = vunpack.c.l.b16 %v3446
    %v3568 = vunpack.c.h.b16 %v3446
    %v3569 = vunpack.c.l.b16 %v3447
    %v3570 = vunpack.c.h.b16 %v3447
    %v3571 = vunpack.c.l.b16 %v3448
    %v3572 = vunpack.c.h.b16 %v3448
    %v3573 = vunpack.c.l.b16 %v3449
    %v3574 = vunpack.c.h.b16 %v3449
    %v3575 = vunpack.c.l.b16 %v3450
    %v3576 = vunpack.c.h.b16 %v3450
    %v3577 = vunpack.c.l.b16 %v3451
    %v3578 = vunpack.c.h.b16 %v3451
    %v3579 = vunpack.c.l.b16 %v3452
    %v3580 = vunpack.c.h.b16 %v3452
    %v3581 = vunpack.c.l.b16 %v3453
    %v3582 = vunpack.c.h.b16 %v3453
    %v3583 = vunpack.c.l.b16 %v3454
    %v3584 = vunpack.c.h.b16 %v3454
    %v3585 = vunpack.c.l.b16 %v3455
    %v3586 = vunpack.c.h.b16 %v3455
    %v3587 = vunpack.c.l.b16 %v3456
    %v3588 = vunpack.c.h.b16 %v3456
    %v3589 = vunpack.c.l.b16 %v3457
    %v3590 = vunpack.c.h.b16 %v3457
    %v3591 = vunpack.c.l.b16 %v3458
    %v3592 = vunpack.c.h.b16 %v3458
    %v3593 = vunpack.c.l.b16 %v3459
    %v3594 = vunpack.c.h.b16 %v3459
    %v3595 = vpack.c.b16 %v3507, %v3505
    %v3596 = vpack.c.b16 %v3508, %v3506
    %v3597 = vpack.c.b16 %v3511, %v3509
    %v3598 = vpack.c.b16 %v3512, %v3510
    %v3599 = vpack.c.b16 %v3515, %v3513
    %v3600 = vpack.c.b16 %v3516, %v3514
    %v3601 = vpack.c.b16 %v3519, %v3517
    %v3602 = vpack.c.b16 %v3520, %v3518
    %v3603 = vpack.c.b16 %v3523, %v3521
    %v3604 = vpack.c.b16 %v3524, %v3522
    %v3605 = vpack.c.b16 %v3527, %v3525
    %v3606 = vpack.c.b16 %v3528, %v3526
    %v3607 = vpack.c.b16 %v3531, %v3529
    %v3608 = vpack.c.b16 %v3532, %v3530
    %v3609 = vpack.c.b16 %v3535, %v3533
    %v3610 = vpack.c.b16 %v3536, %v3534
    %v3611 = vpack.c.b16 %v3539, %v3537
    %v3612 = vpack.c.b16 %v3540, %v3538
    %v3613 = vpack.c.b16 %v3543, %v3541
    %v3614 = vpack.c.b16 %v3544, %v3542
    %v3615 = vpack.c.b16 %v3547, %v3545
    %v3616 = vpack.c.b16 %v3548, %v3546
    %v3617 = vpack.c.b16 %v3551, %v3549
    %v3618 = vpack.c.b16 %v3552, %v3550
    %v3619 = vpack.c.b16 %v3555, %v3553
    %v3620 = vpack.c.b16 %v3556, %v3554
    %v3621 = vpack.c.b16 %v3559, %v3557
    %v3622 = vpack.c.b16 %v3560, %v3558
    %v3623 = vpack.c.b16 %v3563, %v3561
    %v3624 = vpack.c.b16 %v3564, %v3562
    %v3625 = vpack.c.b16 %v3567, %v3565
    %v3626 = vpack.c.b16 %v3568, %v3566
    %v3627 = vpack.c.b16 %v3571, %v3569
    %v3628 = vpack.c.b16 %v3572, %v3570
    %v3629 = vpack.c.b16 %v3575, %v3573
    %v3630 = vpack.c.b16 %v3576, %v3574
    %v3631 = vpack.c.b16 %v3579, %v3577
    %v3632 = vpack.c.b16 %v3580, %v3578
    %v3633 = vpack.c.b16 %v3583, %v3581
    %v3634 = vpack.c.b16 %v3584, %v3582
    %v3635 = vpack.c.b16 %v3587, %v3585
    %v3636 = vpack.c.b16 %v3588, %v3586
    %v3637 = vpack.c.b16 %v3591, %v3589
    %v3638 = vpack.c.b16 %v3592, %v3590
    %v3639 = vpack.c.b16 %v3593, %v3593
    %v3640 = vpack.c.b16 %v3594, %v3594
    %v3686 = vsel %vm1085, %v3413, 0
    %v3689 = vsel %vm1089, %v3639, 0
    %v3692 = vsel %vm1089, %v3640, 0
    %3694 = vmatprep.subr.bf16.mxu0 %v3596
    %3695 = vmatpush1.bf16.msra.mxu0 %v3595
    %3696 = vmatprep.subr.bf16.mxu0 %v3598
    %3697 = vmatpush1.bf16.msra.mxu0 %v3597
    %3698 = vmatprep.subr.bf16.mxu0 %v3600
    %3699 = vmatpush1.bf16.msra.mxu0 %v3599
    %3700 = vmatprep.subr.bf16.mxu0 %v3602
    %3701 = vmatpush1.bf16.msra.mxu0 %v3601
    %3702 = vmatprep.subr.bf16.mxu0 %v3604
    %3703 = vmatpush1.bf16.msra.mxu0 %v3603
    %3704 = vmatprep.subr.bf16.mxu0 %v3606
    %3705 = vmatpush1.bf16.msra.mxu0 %v3605
    %3706 = vmatprep.subr.bf16.mxu0 %v3608
    %3707 = vmatpush1.bf16.msra.mxu0 %v3607
    %3708 = vmatprep.subr.bf16.mxu0 %v3610
    %3709 = vmatpush1.bf16.msra.mxu0 %v3609
    %3710 = vmatprep.subr.bf16.mxu0 %v3612
    %3711 = vmatpush1.bf16.msra.mxu0 %v3611
    %3712 = vmatprep.subr.bf16.mxu0 %v3614
    %3713 = vmatpush1.bf16.msra.mxu0 %v3613
    %3714 = vmatprep.subr.bf16.mxu0 %v3616
    %3715 = vmatpush1.bf16.msra.mxu0 %v3615
    %3716 = vmatprep.subr.bf16.mxu0 %v3618
    %3717 = vmatpush1.bf16.msra.mxu0 %v3617
    %3718 = vmatprep.subr.bf16.mxu0 %v3620
    %3719 = vmatpush1.bf16.msra.mxu0 %v3619
    %3720 = vmatprep.subr.bf16.mxu0 %v3622
    %3721 = vmatpush1.bf16.msra.mxu0 %v3621
    %3722 = vmatprep.subr.bf16.mxu0 %v3624
    %3723 = vmatpush1.bf16.msra.mxu0 %v3623
    %3724 = vmatprep.subr.bf16.mxu0 %v3626
    %3725 = vmatpush1.bf16.msra.mxu0 %v3625
    %3726 = vmatprep.mubr.bf16.mxu0 %v3412
    %3727 = vmatmul.mubr.bf16.gmra.mrb[0].mxu0 %v3411
    %v3728 = vpop.f32.mrb[0].mxu0
    %v3729 = vadd.f32 0.0, %v3728
    %v3730 = vpop.f32.mrb[0].mxu0
    %v3731 = vadd.f32 0.0, %v3730
    %v3732 = vpop.f32.mrb[0].mxu0
    %v3733 = vpop.f32.mrb[0].mxu0
    %3734 = vdwg.mxu0
    %3735 = vmatprep.subr.bf16.mxu0 %v3628
    %3736 = vmatpush1.bf16.msra.mxu0 %v3627
    %3737 = vmatprep.subr.bf16.mxu0 %v3630
    %3738 = vmatpush1.bf16.msra.mxu0 %v3629
    %3739 = vmatprep.subr.bf16.mxu0 %v3632
    %3740 = vmatpush1.bf16.msra.mxu0 %v3631
    %3741 = vmatprep.subr.bf16.mxu0 %v3634
    %3742 = vmatpush1.bf16.msra.mxu0 %v3633
    %3743 = vmatprep.subr.bf16.mxu0 %v3636
    %3744 = vmatpush1.bf16.msra.mxu0 %v3635
    %3745 = vmatprep.subr.bf16.mxu0 %v3638
    %3746 = vmatpush1.bf16.msra.mxu0 %v3637
    %3747 = vmatprep.subr.bf16.mxu0 %v3692
    %3748 = vmatpush1.bf16.msra.mxu0 %v3689
    %3749 = vmatprep.subr.bf16.mxu0 0
    %3750 = vmatpush1.bf16.msra.mxu0 0
    %3751 = vmatprep.subr.bf16.mxu0 0
    %3752 = vmatpush1.bf16.msra.mxu0 0
    %3753 = vmatprep.subr.bf16.mxu0 0
    %3754 = vmatpush1.bf16.msra.mxu0 0
    %3755 = vmatprep.subr.bf16.mxu0 0
    %3756 = vmatpush1.bf16.msra.mxu0 0
    %3757 = vmatprep.subr.bf16.mxu0 0
    %3758 = vmatpush1.bf16.msra.mxu0 0
    %3759 = vmatprep.subr.bf16.mxu0 0
    %3760 = vmatpush1.bf16.msra.mxu0 0
    %3761 = vmatprep.subr.bf16.mxu0 0
    %3762 = vmatpush1.bf16.msra.mxu0 0
    %3763 = vmatprep.subr.bf16.mxu0 0
    %3764 = vmatpush1.bf16.msra.mxu0 0
    %3765 = vmatprep.subr.bf16.mxu0 0
    %3766 = vmatpush1.bf16.msra.mxu0 0
    %3767 = vmatprep.mubr.bf16.mxu0 0
    %3768 = vmatmul.mubr.bf16.gmra.mrb[0].mxu0 %v3686
    %v3769 = vpop.f32.mrb[0].mxu0
    %v3770 = vadd.f32 %v3729, %v3769
    %v3771 = vpop.f32.mrb[0].mxu0
    %v3772 = vadd.f32 %v3731, %v3771
    %v3773 = vpop.f32.mrb[0].mxu0
    %v3774 = vpop.f32.mrb[0].mxu0
    %3775 = vdwg.mxu0
    %v3776 = vadd.f32 %v3205, %v3770
    %v3777 = vadd.f32 %v3206, %v3772
    %s3778 = sld [smem:[#allocation6 + $0x36]]
    %v3779 = vstv %s3778
    %v3780 = vmul.f32 %v343, %v3779
    %v3781 = vmul.f32 %v344, %v3779
    %v3782 = vmul.f32 %v345, %v3779
    %s3783 = sld [smem:[#allocation6 + $0x37]]
    %v3784 = vstv %s3783
    %v3785 = vmul.f32 %v343, %v3784
    %v3786 = vmul.f32 %v344, %v3784
    %v3787 = vmul.f32 %v345, %v3784
    %3791 = vrot.lane.b32.xlu0 %v3785, 127
    %v3792 = vpop.permute.xlu0 %3791
    %3793 = vrot.lane.b32.xlu0 %v3786, 127
    %v3794 = vpop.permute.xlu0 %3793
    %3795 = vrot.lane.b32.xlu0 %v3787, 127
    %v3796 = vpop.permute.xlu0 %3795
    %v3797 = vsel %vm366, %v3792, %v3794
    %v3798 = vsel %vm366, %v3794, %v3796
    %v3802 = vadd.f32 %v3780, %v3797
    %v3803 = vadd.f32 %v3781, %v3798
    %v3804 = vadd.f32 %v3782, %v3796
    %s3805 = sld [smem:[#allocation6 + $0x38]]
    %v3806 = vstv %s3805
    %v3807 = vmul.f32 %v343, %v3806
    %v3808 = vmul.f32 %v344, %v3806
    %v3809 = vmul.f32 %v345, %v3806
    %3813 = vrot.lane.b32.xlu0 %v3807, 126
    %v3814 = vpop.permute.xlu0 %3813
    %3815 = vrot.lane.b32.xlu0 %v3808, 126
    %v3816 = vpop.permute.xlu0 %3815
    %3817 = vrot.lane.b32.xlu0 %v3809, 126
    %v3818 = vpop.permute.xlu0 %3817
    %v3819 = vsel %vm389, %v3814, %v3816
    %v3820 = vsel %vm389, %v3816, %v3818
    %v3824 = vadd.f32 %v3802, %v3819
    %v3825 = vadd.f32 %v3803, %v3820
    %v3826 = vadd.f32 %v3804, %v3818
    %s3827 = sld [smem:[#allocation6 + $0x39]]
    %v3828 = vstv %s3827
    %v3829 = vmul.f32 %v343, %v3828
    %v3830 = vmul.f32 %v344, %v3828
    %v3831 = vmul.f32 %v345, %v3828
    %3835 = vrot.lane.b32.xlu0 %v3829, 108
    %v3836 = vpop.permute.xlu0 %3835
    %3837 = vrot.lane.b32.xlu0 %v3830, 108
    %v3838 = vpop.permute.xlu0 %3837
    %3839 = vrot.lane.b32.xlu0 %v3831, 108
    %v3840 = vpop.permute.xlu0 %3839
    %v3841 = vsel %vm412, %v3836, %v3838
    %v3842 = vsel %vm412, %v3838, %v3840
    %v3846 = vadd.f32 %v3824, %v3841
    %v3847 = vadd.f32 %v3825, %v3842
    %v3848 = vadd.f32 %v3826, %v3840
    %s3849 = sld [smem:[#allocation6 + $0x3a]]
    %v3850 = vstv %s3849
    %v3851 = vmul.f32 %v343, %v3850
    %v3852 = vmul.f32 %v344, %v3850
    %v3853 = vmul.f32 %v345, %v3850
    %3857 = vrot.lane.b32.xlu0 %v3851, 107
    %v3858 = vpop.permute.xlu0 %3857
    %3859 = vrot.lane.b32.xlu0 %v3852, 107
    %v3860 = vpop.permute.xlu0 %3859
    %3861 = vrot.lane.b32.xlu0 %v3853, 107
    %v3862 = vpop.permute.xlu0 %3861
    %v3863 = vsel %vm435, %v3858, %v3860
    %v3864 = vsel %vm435, %v3860, %v3862
    %v3868 = vadd.f32 %v3846, %v3863
    %v3869 = vadd.f32 %v3847, %v3864
    %v3870 = vadd.f32 %v3848, %v3862
    %s3871 = sld [smem:[#allocation6 + $0x3b]]
    %v3872 = vstv %s3871
    %v3873 = vmul.f32 %v343, %v3872
    %v3874 = vmul.f32 %v344, %v3872
    %v3875 = vmul.f32 %v345, %v3872
    %3879 = vrot.lane.b32.xlu0 %v3873, 106
    %v3880 = vpop.permute.xlu0 %3879
    %3881 = vrot.lane.b32.xlu0 %v3874, 106
    %v3882 = vpop.permute.xlu0 %3881
    %3883 = vrot.lane.b32.xlu0 %v3875, 106
    %v3884 = vpop.permute.xlu0 %3883
    %v3885 = vsel %vm458, %v3880, %v3882
    %v3886 = vsel %vm458, %v3882, %v3884
    %v3890 = vadd.f32 %v3868, %v3885
    %v3891 = vadd.f32 %v3869, %v3886
    %v3892 = vadd.f32 %v3870, %v3884
    %s3893 = sld [smem:[#allocation6 + $0x3c]]
    %v3894 = vstv %s3893
    %v3895 = vmul.f32 %v343, %v3894
    %v3896 = vmul.f32 %v344, %v3894
    %v3897 = vmul.f32 %v345, %v3894
    %v3898 = vmul.f32 %v346, %v3894
    %3903 = vrot.lane.b32.xlu0 %v3895, 88
    %v3904 = vpop.permute.xlu0 %3903
    %3905 = vrot.lane.b32.xlu0 %v3896, 88
    %v3906 = vpop.permute.xlu0 %3905
    %3907 = vrot.lane.b32.xlu0 %v3897, 88
    %v3908 = vpop.permute.xlu0 %3907
    %3909 = vrot.lane.b32.xlu0 %v3898, 88
    %v3910 = vpop.permute.xlu0 %3909
    %v3911 = vsel %vm485, %v3904, %v3906
    %v3912 = vsel %vm485, %v3906, %v3908
    %v3913 = vsel %vm485, %v3908, %v3910
    %v3917 = vadd.f32 %v3890, %v3911
    %v3918 = vadd.f32 %v3891, %v3912
    %v3919 = vadd.f32 %v3892, %v3913
    %s3920 = sld [smem:[#allocation6 + $0x3d]]
    %v3921 = vstv %s3920
    %v3922 = vmul.f32 %v343, %v3921
    %v3923 = vmul.f32 %v344, %v3921
    %v3924 = vmul.f32 %v345, %v3921
    %v3925 = vmul.f32 %v346, %v3921
    %3930 = vrot.lane.b32.xlu0 %v3922, 87
    %v3931 = vpop.permute.xlu0 %3930
    %3932 = vrot.lane.b32.xlu0 %v3923, 87
    %v3933 = vpop.permute.xlu0 %3932
    %3934 = vrot.lane.b32.xlu0 %v3924, 87
    %v3935 = vpop.permute.xlu0 %3934
    %3936 = vrot.lane.b32.xlu0 %v3925, 87
    %v3937 = vpop.permute.xlu0 %3936
    %v3938 = vsel %vm513, %v3931, %v3933
    %v3939 = vsel %vm513, %v3933, %v3935
    %v3940 = vsel %vm513, %v3935, %v3937
    %v3944 = vadd.f32 %v3917, %v3938
    %v3945 = vadd.f32 %v3918, %v3939
    %v3946 = vadd.f32 %v3919, %v3940
    %s3947 = sld [smem:[#allocation6 + $0x3e]]
    %v3948 = vstv %s3947
    %v3949 = vmul.f32 %v343, %v3948
    %v3950 = vmul.f32 %v344, %v3948
    %v3951 = vmul.f32 %v345, %v3948
    %v3952 = vmul.f32 %v346, %v3948
    %3957 = vrot.lane.b32.xlu0 %v3949, 86
    %v3958 = vpop.permute.xlu0 %3957
    %3959 = vrot.lane.b32.xlu0 %v3950, 86
    %v3960 = vpop.permute.xlu0 %3959
    %3961 = vrot.lane.b32.xlu0 %v3951, 86
    %v3962 = vpop.permute.xlu0 %3961
    %3963 = vrot.lane.b32.xlu0 %v3952, 86
    %v3964 = vpop.permute.xlu0 %3963
    %v3965 = vsel %vm541, %v3958, %v3960
    %v3966 = vsel %vm541, %v3960, %v3962
    %v3967 = vsel %vm541, %v3962, %v3964
    %v3971 = vadd.f32 %v3944, %v3965
    %v3972 = vadd.f32 %v3945, %v3966
    %v3973 = vadd.f32 %v3946, %v3967
    %s3974 = sld [smem:[#allocation6 + $0x4e]]
    %v3975 = vstv %s3974
    %v3976 = vadd.f32 %v3971, %v3975
    %v3977 = vadd.f32 %v3972, %v3975
    %v3978 = vadd.f32 %v3973, %v3975
    %v3979 = vmax.f32 %v3976, 0.0
    %v3980 = vmax.f32 %v3977, 0.0
    %v3981 = vmax.f32 %v3978, 0.0
    %v3982 = vpack.c.bf16 %v3979, %v3979
    %v3983 = vpack.c.bf16 %v3980, %v3980
    %v3984 = vpack.c.bf16 %v3981, %v3981
    %s3985 = scalar_lea.vmem %s5, 2160
    %v3986 = vld [vmem:[%s3985] sm:$0xff]
    %v3987 = vld [vmem:[%s3985 + $0x8] sm:$0xff]
    %v3988 = vld [vmem:[%s3985 + $0x10] sm:$0xff]
    %v3989 = vld [vmem:[%s3985 + $0x18] sm:$0xff]
    %v3990 = vld [vmem:[%s3985 + $0x20] sm:$0xff]
    %v3991 = vld [vmem:[%s3985 + $0x28] sm:$0xff]
    %v3992 = vld [vmem:[%s3985 + $0x30] sm:$0xff]
    %v3993 = vld [vmem:[%s3985 + $0x38] sm:$0xff]
    %v3994 = vld [vmem:[%s3985 + $0x40] sm:$0xff]
    %v3995 = vld [vmem:[%s3985 + $0x48] sm:$0xff]
    %v3996 = vld [vmem:[%s3985 + $0x50] sm:$0xff]
    %v3997 = vld [vmem:[%s3985 + $0x58] sm:$0xff]
    %v3998 = vld [vmem:[%s3985 + $0x60] sm:$0xff]
    %v3999 = vld [vmem:[%s3985 + $0x68] sm:$0xff]
    %v4000 = vld [vmem:[%s3985 + $0x70] sm:$0xff]
    %v4001 = vld [vmem:[%s3985 + $0x78] sm:$0xff]
    %v4002 = vld [vmem:[%s3985 + $0x80] sm:$0xff]
    %v4003 = vld [vmem:[%s3985 + $0x88] sm:$0xff]
    %v4004 = vld [vmem:[%s3985 + $0x90] sm:$0xff]
    %v4005 = vld [vmem:[%s3985 + $0x98] sm:$0xff]
    %v4006 = vld [vmem:[%s3985 + $0xa0] sm:$0xff]
    %v4007 = vld [vmem:[%s3985 + $0xa8] sm:$0xff]
    %v4008 = vld [vmem:[%s3985 + $0xb0] sm:$0xff]
    %v4009 = vld [vmem:[%s3985 + $0xb8] sm:$0xff]
    %v4010 = vld [vmem:[%s3985 + $0xc0] sm:$0xff]
    %v4011 = vld [vmem:[%s3985 + $0xc8] sm:$0xff]
    %v4012 = vld [vmem:[%s3985 + $0xd0] sm:$0xff]
    %v4013 = vld [vmem:[%s3985 + $0xd8] sm:$0xff]
    %v4014 = vld [vmem:[%s3985 + $0xe0] sm:$0xff]
    %v4015 = vld [vmem:[%s3985 + $0xe8] sm:$0xff]
    %v4016 = vld [vmem:[%s3985 + $0xf0] sm:$0xff]
    %v4017 = vld [vmem:[%s3985 + $0xf8] sm:$0xff]
    %v4018 = vld [vmem:[%s3985 + $0x100] sm:$0xff]
    %v4019 = vld [vmem:[%s3985 + $0x108] sm:$0xff]
    %v4020 = vld [vmem:[%s3985 + $0x110] sm:$0xff]
    %v4021 = vld [vmem:[%s3985 + $0x118] sm:$0xff]
    %v4022 = vld [vmem:[%s3985 + $0x120] sm:$0xff]
    %v4023 = vld [vmem:[%s3985 + $0x128] sm:$0xff]
    %v4024 = vld [vmem:[%s3985 + $0x130] sm:$0xff]
    %v4025 = vld [vmem:[%s3985 + $0x138] sm:$0xff]
    %v4026 = vld [vmem:[%s3985 + $0x140] sm:$0xff]
    %v4027 = vld [vmem:[%s3985 + $0x148] sm:$0xff]
    %v4028 = vld [vmem:[%s3985 + $0x150] sm:$0xff]
    %v4029 = vld [vmem:[%s3985 + $0x158] sm:$0xff]
    %v4030 = vld [vmem:[%s3985 + $0x160] sm:$0xff]
    %v4076 = vunpack.c.l.b16 %v3986
    %v4077 = vunpack.c.h.b16 %v3986
    %v4078 = vunpack.c.l.b16 %v3987
    %v4079 = vunpack.c.h.b16 %v3987
    %v4080 = vunpack.c.l.b16 %v3988
    %v4081 = vunpack.c.h.b16 %v3988
    %v4082 = vunpack.c.l.b16 %v3989
    %v4083 = vunpack.c.h.b16 %v3989
    %v4084 = vunpack.c.l.b16 %v3990
    %v4085 = vunpack.c.h.b16 %v3990
    %v4086 = vunpack.c.l.b16 %v3991
    %v4087 = vunpack.c.h.b16 %v3991
    %v4088 = vunpack.c.l.b16 %v3992
    %v4089 = vunpack.c.h.b16 %v3992
    %v4090 = vunpack.c.l.b16 %v3993
    %v4091 = vunpack.c.h.b16 %v3993
    %v4092 = vunpack.c.l.b16 %v3994
    %v4093 = vunpack.c.h.b16 %v3994
    %v4094 = vunpack.c.l.b16 %v3995
    %v4095 = vunpack.c.h.b16 %v3995
    %v4096 = vunpack.c.l.b16 %v3996
    %v4097 = vunpack.c.h.b16 %v3996
    %v4098 = vunpack.c.l.b16 %v3997
    %v4099 = vunpack.c.h.b16 %v3997
    %v4100 = vunpack.c.l.b16 %v3998
    %v4101 = vunpack.c.h.b16 %v3998
    %v4102 = vunpack.c.l.b16 %v3999
    %v4103 = vunpack.c.h.b16 %v3999
    %v4104 = vunpack.c.l.b16 %v4000
    %v4105 = vunpack.c.h.b16 %v4000
    %v4106 = vunpack.c.l.b16 %v4001
    %v4107 = vunpack.c.h.b16 %v4001
    %v4108 = vunpack.c.l.b16 %v4002
    %v4109 = vunpack.c.h.b16 %v4002
    %v4110 = vunpack.c.l.b16 %v4003
    %v4111 = vunpack.c.h.b16 %v4003
    %v4112 = vunpack.c.l.b16 %v4004
    %v4113 = vunpack.c.h.b16 %v4004
    %v4114 = vunpack.c.l.b16 %v4005
    %v4115 = vunpack.c.h.b16 %v4005
    %v4116 = vunpack.c.l.b16 %v4006
    %v4117 = vunpack.c.h.b16 %v4006
    %v4118 = vunpack.c.l.b16 %v4007
    %v4119 = vunpack.c.h.b16 %v4007
    %v4120 = vunpack.c.l.b16 %v4008
    %v4121 = vunpack.c.h.b16 %v4008
    %v4122 = vunpack.c.l.b16 %v4009
    %v4123 = vunpack.c.h.b16 %v4009
    %v4124 = vunpack.c.l.b16 %v4010
    %v4125 = vunpack.c.h.b16 %v4010
    %v4126 = vunpack.c.l.b16 %v4011
    %v4127 = vunpack.c.h.b16 %v4011
    %v4128 = vunpack.c.l.b16 %v4012
    %v4129 = vunpack.c.h.b16 %v4012
    %v4130 = vunpack.c.l.b16 %v4013
    %v4131 = vunpack.c.h.b16 %v4013
    %v4132 = vunpack.c.l.b16 %v4014
    %v4133 = vunpack.c.h.b16 %v4014
    %v4134 = vunpack.c.l.b16 %v4015
    %v4135 = vunpack.c.h.b16 %v4015
    %v4136 = vunpack.c.l.b16 %v4016
    %v4137 = vunpack.c.h.b16 %v4016
    %v4138 = vunpack.c.l.b16 %v4017
    %v4139 = vunpack.c.h.b16 %v4017
    %v4140 = vunpack.c.l.b16 %v4018
    %v4141 = vunpack.c.h.b16 %v4018
    %v4142 = vunpack.c.l.b16 %v4019
    %v4143 = vunpack.c.h.b16 %v4019
    %v4144 = vunpack.c.l.b16 %v4020
    %v4145 = vunpack.c.h.b16 %v4020
    %v4146 = vunpack.c.l.b16 %v4021
    %v4147 = vunpack.c.h.b16 %v4021
    %v4148 = vunpack.c.l.b16 %v4022
    %v4149 = vunpack.c.h.b16 %v4022
    %v4150 = vunpack.c.l.b16 %v4023
    %v4151 = vunpack.c.h.b16 %v4023
    %v4152 = vunpack.c.l.b16 %v4024
    %v4153 = vunpack.c.h.b16 %v4024
    %v4154 = vunpack.c.l.b16 %v4025
    %v4155 = vunpack.c.h.b16 %v4025
    %v4156 = vunpack.c.l.b16 %v4026
    %v4157 = vunpack.c.h.b16 %v4026
    %v4158 = vunpack.c.l.b16 %v4027
    %v4159 = vunpack.c.h.b16 %v4027
    %v4160 = vunpack.c.l.b16 %v4028
    %v4161 = vunpack.c.h.b16 %v4028
    %v4162 = vunpack.c.l.b16 %v4029
    %v4163 = vunpack.c.h.b16 %v4029
    %v4164 = vunpack.c.l.b16 %v4030
    %v4165 = vunpack.c.h.b16 %v4030
    %v4166 = vpack.c.b16 %v4078, %v4076
    %v4167 = vpack.c.b16 %v4079, %v4077
    %v4168 = vpack.c.b16 %v4082, %v4080
    %v4169 = vpack.c.b16 %v4083, %v4081
    %v4170 = vpack.c.b16 %v4086, %v4084
    %v4171 = vpack.c.b16 %v4087, %v4085
    %v4172 = vpack.c.b16 %v4090, %v4088
    %v4173 = vpack.c.b16 %v4091, %v4089
    %v4174 = vpack.c.b16 %v4094, %v4092
    %v4175 = vpack.c.b16 %v4095, %v4093
    %v4176 = vpack.c.b16 %v4098, %v4096
    %v4177 = vpack.c.b16 %v4099, %v4097
    %v4178 = vpack.c.b16 %v4102, %v4100
    %v4179 = vpack.c.b16 %v4103, %v4101
    %v4180 = vpack.c.b16 %v4106, %v4104
    %v4181 = vpack.c.b16 %v4107, %v4105
    %v4182 = vpack.c.b16 %v4110, %v4108
    %v4183 = vpack.c.b16 %v4111, %v4109
    %v4184 = vpack.c.b16 %v4114, %v4112
    %v4185 = vpack.c.b16 %v4115, %v4113
    %v4186 = vpack.c.b16 %v4118, %v4116
    %v4187 = vpack.c.b16 %v4119, %v4117
    %v4188 = vpack.c.b16 %v4122, %v4120
    %v4189 = vpack.c.b16 %v4123, %v4121
    %v4190 = vpack.c.b16 %v4126, %v4124
    %v4191 = vpack.c.b16 %v4127, %v4125
    %v4192 = vpack.c.b16 %v4130, %v4128
    %v4193 = vpack.c.b16 %v4131, %v4129
    %v4194 = vpack.c.b16 %v4134, %v4132
    %v4195 = vpack.c.b16 %v4135, %v4133
    %v4196 = vpack.c.b16 %v4138, %v4136
    %v4197 = vpack.c.b16 %v4139, %v4137
    %v4198 = vpack.c.b16 %v4142, %v4140
    %v4199 = vpack.c.b16 %v4143, %v4141
    %v4200 = vpack.c.b16 %v4146, %v4144
    %v4201 = vpack.c.b16 %v4147, %v4145
    %v4202 = vpack.c.b16 %v4150, %v4148
    %v4203 = vpack.c.b16 %v4151, %v4149
    %v4204 = vpack.c.b16 %v4154, %v4152
    %v4205 = vpack.c.b16 %v4155, %v4153
    %v4206 = vpack.c.b16 %v4158, %v4156
    %v4207 = vpack.c.b16 %v4159, %v4157
    %v4208 = vpack.c.b16 %v4162, %v4160
    %v4209 = vpack.c.b16 %v4163, %v4161
    %v4210 = vpack.c.b16 %v4164, %v4164
    %v4211 = vpack.c.b16 %v4165, %v4165
    %v4257 = vsel %vm1085, %v3984, 0
    %v4260 = vsel %vm1089, %v4210, 0
    %v4263 = vsel %vm1089, %v4211, 0
    %4265 = vmatprep.subr.bf16.mxu0 %v4167
    %4266 = vmatpush1.bf16.msra.mxu0 %v4166
    %4267 = vmatprep.subr.bf16.mxu0 %v4169
    %4268 = vmatpush1.bf16.msra.mxu0 %v4168
    %4269 = vmatprep.subr.bf16.mxu0 %v4171
    %4270 = vmatpush1.bf16.msra.mxu0 %v4170
    %4271 = vmatprep.subr.bf16.mxu0 %v4173
    %4272 = vmatpush1.bf16.msra.mxu0 %v4172
    %4273 = vmatprep.subr.bf16.mxu0 %v4175
    %4274 = vmatpush1.bf16.msra.mxu0 %v4174
    %4275 = vmatprep.subr.bf16.mxu0 %v4177
    %4276 = vmatpush1.bf16.msra.mxu0 %v4176
    %4277 = vmatprep.subr.bf16.mxu0 %v4179
    %4278 = vmatpush1.bf16.msra.mxu0 %v4178
    %4279 = vmatprep.subr.bf16.mxu0 %v4181
    %4280 = vmatpush1.bf16.msra.mxu0 %v4180
    %4281 = vmatprep.subr.bf16.mxu0 %v4183
    %4282 = vmatpush1.bf16.msra.mxu0 %v4182
    %4283 = vmatprep.subr.bf16.mxu0 %v4185
    %4284 = vmatpush1.bf16.msra.mxu0 %v4184
    %4285 = vmatprep.subr.bf16.mxu0 %v4187
    %4286 = vmatpush1.bf16.msra.mxu0 %v4186
    %4287 = vmatprep.subr.bf16.mxu0 %v4189
    %4288 = vmatpush1.bf16.msra.mxu0 %v4188
    %4289 = vmatprep.subr.bf16.mxu0 %v4191
    %4290 = vmatpush1.bf16.msra.mxu0 %v4190
    %4291 = vmatprep.subr.bf16.mxu0 %v4193
    %4292 = vmatpush1.bf16.msra.mxu0 %v4192
    %4293 = vmatprep.subr.bf16.mxu0 %v4195
    %4294 = vmatpush1.bf16.msra.mxu0 %v4194
    %4295 = vmatprep.subr.bf16.mxu0 %v4197
    %4296 = vmatpush1.bf16.msra.mxu0 %v4196
    %4297 = vmatprep.mubr.bf16.mxu0 %v3983
    %4298 = vmatmul.mubr.bf16.gmra.mrb[0].mxu0 %v3982
    %v4299 = vpop.f32.mrb[0].mxu0
    %v4300 = vadd.f32 0.0, %v4299
    %v4301 = vpop.f32.mrb[0].mxu0
    %v4302 = vadd.f32 0.0, %v4301
    %v4303 = vpop.f32.mrb[0].mxu0
    %v4304 = vpop.f32.mrb[0].mxu0
    %4305 = vdwg.mxu0
    %4306 = vmatprep.subr.bf16.mxu0 %v4199
    %4307 = vmatpush1.bf16.msra.mxu0 %v4198
    %4308 = vmatprep.subr.bf16.mxu0 %v4201
    %4309 = vmatpush1.bf16.msra.mxu0 %v4200
    %4310 = vmatprep.subr.bf16.mxu0 %v4203
    %4311 = vmatpush1.bf16.msra.mxu0 %v4202
    %4312 = vmatprep.subr.bf16.mxu0 %v4205
    %4313 = vmatpush1.bf16.msra.mxu0 %v4204
    %4314 = vmatprep.subr.bf16.mxu0 %v4207
    %4315 = vmatpush1.bf16.msra.mxu0 %v4206
    %4316 = vmatprep.subr.bf16.mxu0 %v4209
    %4317 = vmatpush1.bf16.msra.mxu0 %v4208
    %4318 = vmatprep.subr.bf16.mxu0 %v4263
    %4319 = vmatpush1.bf16.msra.mxu0 %v4260
    %4320 = vmatprep.subr.bf16.mxu0 0
    %4321 = vmatpush1.bf16.msra.mxu0 0
    %4322 = vmatprep.subr.bf16.mxu0 0
    %4323 = vmatpush1.bf16.msra.mxu0 0
    %4324 = vmatprep.subr.bf16.mxu0 0
    %4325 = vmatpush1.bf16.msra.mxu0 0
    %4326 = vmatprep.subr.bf16.mxu0 0
    %4327 = vmatpush1.bf16.msra.mxu0 0
    %4328 = vmatprep.subr.bf16.mxu0 0
    %4329 = vmatpush1.bf16.msra.mxu0 0
    %4330 = vmatprep.subr.bf16.mxu0 0
    %4331 = vmatpush1.bf16.msra.mxu0 0
    %4332 = vmatprep.subr.bf16.mxu0 0
    %4333 = vmatpush1.bf16.msra.mxu0 0
    %4334 = vmatprep.subr.bf16.mxu0 0
    %4335 = vmatpush1.bf16.msra.mxu0 0
    %4336 = vmatprep.subr.bf16.mxu0 0
    %4337 = vmatpush1.bf16.msra.mxu0 0
    %4338 = vmatprep.mubr.bf16.mxu0 0
    %4339 = vmatmul.mubr.bf16.gmra.mrb[0].mxu0 %v4257
    %v4340 = vpop.f32.mrb[0].mxu0
    %v4341 = vadd.f32 %v4300, %v4340
    %v4342 = vpop.f32.mrb[0].mxu0
    %v4343 = vadd.f32 %v4302, %v4342
    %v4344 = vpop.f32.mrb[0].mxu0
    %v4345 = vpop.f32.mrb[0].mxu0
    %4346 = vdwg.mxu0
    %v4347 = vadd.f32 %v3776, %v4341
    %v4348 = vadd.f32 %v3777, %v4343
    %s4349 = sld [smem:[#allocation6 + $0x3f]]
    %v4350 = vstv %s4349
    %v4351 = vmul.f32 %v343, %v4350
    %v4352 = vmul.f32 %v344, %v4350
    %v4353 = vmul.f32 %v345, %v4350
    %s4354 = sld [smem:[#allocation6 + $0x40]]
    %v4355 = vstv %s4354
    %v4356 = vmul.f32 %v343, %v4355
    %v4357 = vmul.f32 %v344, %v4355
    %v4358 = vmul.f32 %v345, %v4355
    %4362 = vrot.lane.b32.xlu0 %v4356, 127
    %v4363 = vpop.permute.xlu0 %4362
    %4364 = vrot.lane.b32.xlu0 %v4357, 127
    %v4365 = vpop.permute.xlu0 %4364
    %4366 = vrot.lane.b32.xlu0 %v4358, 127
    %v4367 = vpop.permute.xlu0 %4366
    %v4368 = vsel %vm366, %v4363, %v4365
    %v4369 = vsel %vm366, %v4365, %v4367
    %v4373 = vadd.f32 %v4351, %v4368
    %v4374 = vadd.f32 %v4352, %v4369
    %v4375 = vadd.f32 %v4353, %v4367
    %s4376 = sld [smem:[#allocation6 + $0x41]]
    %v4377 = vstv %s4376
    %v4378 = vmul.f32 %v343, %v4377
    %v4379 = vmul.f32 %v344, %v4377
    %v4380 = vmul.f32 %v345, %v4377
    %4384 = vrot.lane.b32.xlu0 %v4378, 126
    %v4385 = vpop.permute.xlu0 %4384
    %4386 = vrot.lane.b32.xlu0 %v4379, 126
    %v4387 = vpop.permute.xlu0 %4386
    %4388 = vrot.lane.b32.xlu0 %v4380, 126
    %v4389 = vpop.permute.xlu0 %4388
    %v4390 = vsel %vm389, %v4385, %v4387
    %v4391 = vsel %vm389, %v4387, %v4389
    %v4395 = vadd.f32 %v4373, %v4390
    %v4396 = vadd.f32 %v4374, %v4391
    %v4397 = vadd.f32 %v4375, %v4389
    %s4398 = sld [smem:[#allocation6 + $0x42]]
    %v4399 = vstv %s4398
    %v4400 = vmul.f32 %v343, %v4399
    %v4401 = vmul.f32 %v344, %v4399
    %v4402 = vmul.f32 %v345, %v4399
    %4406 = vrot.lane.b32.xlu0 %v4400, 108
    %v4407 = vpop.permute.xlu0 %4406
    %4408 = vrot.lane.b32.xlu0 %v4401, 108
    %v4409 = vpop.permute.xlu0 %4408
    %4410 = vrot.lane.b32.xlu0 %v4402, 108
    %v4411 = vpop.permute.xlu0 %4410
    %v4412 = vsel %vm412, %v4407, %v4409
    %v4413 = vsel %vm412, %v4409, %v4411
    %v4417 = vadd.f32 %v4395, %v4412
    %v4418 = vadd.f32 %v4396, %v4413
    %v4419 = vadd.f32 %v4397, %v4411
    %s4420 = sld [smem:[#allocation6 + $0x43]]
    %v4421 = vstv %s4420
    %v4422 = vmul.f32 %v343, %v4421
    %v4423 = vmul.f32 %v344, %v4421
    %v4424 = vmul.f32 %v345, %v4421
    %4428 = vrot.lane.b32.xlu0 %v4422, 107
    %v4429 = vpop.permute.xlu0 %4428
    %4430 = vrot.lane.b32.xlu0 %v4423, 107
    %v4431 = vpop.permute.xlu0 %4430
    %4432 = vrot.lane.b32.xlu0 %v4424, 107
    %v4433 = vpop.permute.xlu0 %4432
    %v4434 = vsel %vm435, %v4429, %v4431
    %v4435 = vsel %vm435, %v4431, %v4433
    %v4439 = vadd.f32 %v4417, %v4434
    %v4440 = vadd.f32 %v4418, %v4435
    %v4441 = vadd.f32 %v4419, %v4433
    %s4442 = sld [smem:[#allocation6 + $0x44]]
    %v4443 = vstv %s4442
    %v4444 = vmul.f32 %v343, %v4443
    %v4445 = vmul.f32 %v344, %v4443
    %v4446 = vmul.f32 %v345, %v4443
    %4450 = vrot.lane.b32.xlu0 %v4444, 106
    %v4451 = vpop.permute.xlu0 %4450
    %4452 = vrot.lane.b32.xlu0 %v4445, 106
    %v4453 = vpop.permute.xlu0 %4452
    %4454 = vrot.lane.b32.xlu0 %v4446, 106
    %v4455 = vpop.permute.xlu0 %4454
    %v4456 = vsel %vm458, %v4451, %v4453
    %v4457 = vsel %vm458, %v4453, %v4455
    %v4461 = vadd.f32 %v4439, %v4456
    %v4462 = vadd.f32 %v4440, %v4457
    %v4463 = vadd.f32 %v4441, %v4455
    %s4464 = sld [smem:[#allocation6 + $0x45]]
    %v4465 = vstv %s4464
    %v4466 = vmul.f32 %v343, %v4465
    %v4467 = vmul.f32 %v344, %v4465
    %v4468 = vmul.f32 %v345, %v4465
    %v4469 = vmul.f32 %v346, %v4465
    %4474 = vrot.lane.b32.xlu0 %v4466, 88
    %v4475 = vpop.permute.xlu0 %4474
    %4476 = vrot.lane.b32.xlu0 %v4467, 88
    %v4477 = vpop.permute.xlu0 %4476
    %4478 = vrot.lane.b32.xlu0 %v4468, 88
    %v4479 = vpop.permute.xlu0 %4478
    %4480 = vrot.lane.b32.xlu0 %v4469, 88
    %v4481 = vpop.permute.xlu0 %4480
    %v4482 = vsel %vm485, %v4475, %v4477
    %v4483 = vsel %vm485, %v4477, %v4479
    %v4484 = vsel %vm485, %v4479, %v4481
    %v4488 = vadd.f32 %v4461, %v4482
    %v4489 = vadd.f32 %v4462, %v4483
    %v4490 = vadd.f32 %v4463, %v4484
    %s4491 = sld [smem:[#allocation6 + $0x46]]
    %v4492 = vstv %s4491
    %v4493 = vmul.f32 %v343, %v4492
    %v4494 = vmul.f32 %v344, %v4492
    %v4495 = vmul.f32 %v345, %v4492
    %v4496 = vmul.f32 %v346, %v4492
    %4501 = vrot.lane.b32.xlu0 %v4493, 87
    %v4502 = vpop.permute.xlu0 %4501
    %4503 = vrot.lane.b32.xlu0 %v4494, 87
    %v4504 = vpop.permute.xlu0 %4503
    %4505 = vrot.lane.b32.xlu0 %v4495, 87
    %v4506 = vpop.permute.xlu0 %4505
    %4507 = vrot.lane.b32.xlu0 %v4496, 87
    %v4508 = vpop.permute.xlu0 %4507
    %v4509 = vsel %vm513, %v4502, %v4504
    %v4510 = vsel %vm513, %v4504, %v4506
    %v4511 = vsel %vm513, %v4506, %v4508
    %v4515 = vadd.f32 %v4488, %v4509
    %v4516 = vadd.f32 %v4489, %v4510
    %v4517 = vadd.f32 %v4490, %v4511
    %s4518 = sld [smem:[#allocation6 + $0x47]]
    %v4519 = vstv %s4518
    %v4520 = vmul.f32 %v343, %v4519
    %v4521 = vmul.f32 %v344, %v4519
    %v4522 = vmul.f32 %v345, %v4519
    %v4523 = vmul.f32 %v346, %v4519
    %4528 = vrot.lane.b32.xlu0 %v4520, 86
    %v4529 = vpop.permute.xlu0 %4528
    %4530 = vrot.lane.b32.xlu0 %v4521, 86
    %v4531 = vpop.permute.xlu0 %4530
    %4532 = vrot.lane.b32.xlu0 %v4522, 86
    %v4533 = vpop.permute.xlu0 %4532
    %4534 = vrot.lane.b32.xlu0 %v4523, 86
    %v4535 = vpop.permute.xlu0 %4534
    %v4536 = vsel %vm541, %v4529, %v4531
    %v4537 = vsel %vm541, %v4531, %v4533
    %v4538 = vsel %vm541, %v4533, %v4535
    %v4542 = vadd.f32 %v4515, %v4536
    %v4543 = vadd.f32 %v4516, %v4537
    %v4544 = vadd.f32 %v4517, %v4538
    %s4545 = sld [smem:[#allocation6 + $0x4f]]
    %v4546 = vstv %s4545
    %v4547 = vadd.f32 %v4542, %v4546
    %v4548 = vadd.f32 %v4543, %v4546
    %v4549 = vadd.f32 %v4544, %v4546
    %v4550 = vmax.f32 %v4547, 0.0
    %v4551 = vmax.f32 %v4548, 0.0
    %v4552 = vmax.f32 %v4549, 0.0
    %v4553 = vpack.c.bf16 %v4550, %v4550
    %v4554 = vpack.c.bf16 %v4551, %v4551
    %v4555 = vpack.c.bf16 %v4552, %v4552
    %s4556 = scalar_lea.vmem %s5, 2520
    %v4557 = vld [vmem:[%s4556] sm:$0xff]
    %v4558 = vld [vmem:[%s4556 + $0x8] sm:$0xff]
    %v4559 = vld [vmem:[%s4556 + $0x10] sm:$0xff]
    %v4560 = vld [vmem:[%s4556 + $0x18] sm:$0xff]
    %v4561 = vld [vmem:[%s4556 + $0x20] sm:$0xff]
    %v4562 = vld [vmem:[%s4556 + $0x28] sm:$0xff]
    %v4563 = vld [vmem:[%s4556 + $0x30] sm:$0xff]
    %v4564 = vld [vmem:[%s4556 + $0x38] sm:$0xff]
    %v4565 = vld [vmem:[%s4556 + $0x40] sm:$0xff]
    %v4566 = vld [vmem:[%s4556 + $0x48] sm:$0xff]
    %v4567 = vld [vmem:[%s4556 + $0x50] sm:$0xff]
    %v4568 = vld [vmem:[%s4556 + $0x58] sm:$0xff]
    %v4569 = vld [vmem:[%s4556 + $0x60] sm:$0xff]
    %v4570 = vld [vmem:[%s4556 + $0x68] sm:$0xff]
    %v4571 = vld [vmem:[%s4556 + $0x70] sm:$0xff]
    %v4572 = vld [vmem:[%s4556 + $0x78] sm:$0xff]
    %v4573 = vld [vmem:[%s4556 + $0x80] sm:$0xff]
    %v4574 = vld [vmem:[%s4556 + $0x88] sm:$0xff]
    %v4575 = vld [vmem:[%s4556 + $0x90] sm:$0xff]
    %v4576 = vld [vmem:[%s4556 + $0x98] sm:$0xff]
    %v4577 = vld [vmem:[%s4556 + $0xa0] sm:$0xff]
    %v4578 = vld [vmem:[%s4556 + $0xa8] sm:$0xff]
    %v4579 = vld [vmem:[%s4556 + $0xb0] sm:$0xff]
    %v4580 = vld [vmem:[%s4556 + $0xb8] sm:$0xff]
    %v4581 = vld [vmem:[%s4556 + $0xc0] sm:$0xff]
    %v4582 = vld [vmem:[%s4556 + $0xc8] sm:$0xff]
    %v4583 = vld [vmem:[%s4556 + $0xd0] sm:$0xff]
    %v4584 = vld [vmem:[%s4556 + $0xd8] sm:$0xff]
    %v4585 = vld [vmem:[%s4556 + $0xe0] sm:$0xff]
    %v4586 = vld [vmem:[%s4556 + $0xe8] sm:$0xff]
    %v4587 = vld [vmem:[%s4556 + $0xf0] sm:$0xff]
    %v4588 = vld [vmem:[%s4556 + $0xf8] sm:$0xff]
    %v4589 = vld [vmem:[%s4556 + $0x100] sm:$0xff]
    %v4590 = vld [vmem:[%s4556 + $0x108] sm:$0xff]
    %v4591 = vld [vmem:[%s4556 + $0x110] sm:$0xff]
    %v4592 = vld [vmem:[%s4556 + $0x118] sm:$0xff]
    %v4593 = vld [vmem:[%s4556 + $0x120] sm:$0xff]
    %v4594 = vld [vmem:[%s4556 + $0x128] sm:$0xff]
    %v4595 = vld [vmem:[%s4556 + $0x130] sm:$0xff]
    %v4596 = vld [vmem:[%s4556 + $0x138] sm:$0xff]
    %v4597 = vld [vmem:[%s4556 + $0x140] sm:$0xff]
    %v4598 = vld [vmem:[%s4556 + $0x148] sm:$0xff]
    %v4599 = vld [vmem:[%s4556 + $0x150] sm:$0xff]
    %v4600 = vld [vmem:[%s4556 + $0x158] sm:$0xff]
    %v4601 = vld [vmem:[%s4556 + $0x160] sm:$0xff]
    %v4647 = vunpack.c.l.b16 %v4557
    %v4648 = vunpack.c.h.b16 %v4557
    %v4649 = vunpack.c.l.b16 %v4558
    %v4650 = vunpack.c.h.b16 %v4558
    %v4651 = vunpack.c.l.b16 %v4559
    %v4652 = vunpack.c.h.b16 %v4559
    %v4653 = vunpack.c.l.b16 %v4560
    %v4654 = vunpack.c.h.b16 %v4560
    %v4655 = vunpack.c.l.b16 %v4561
    %v4656 = vunpack.c.h.b16 %v4561
    %v4657 = vunpack.c.l.b16 %v4562
    %v4658 = vunpack.c.h.b16 %v4562
    %v4659 = vunpack.c.l.b16 %v4563
    %v4660 = vunpack.c.h.b16 %v4563
    %v4661 = vunpack.c.l.b16 %v4564
    %v4662 = vunpack.c.h.b16 %v4564
    %v4663 = vunpack.c.l.b16 %v4565
    %v4664 = vunpack.c.h.b16 %v4565
    %v4665 = vunpack.c.l.b16 %v4566
    %v4666 = vunpack.c.h.b16 %v4566
    %v4667 = vunpack.c.l.b16 %v4567
    %v4668 = vunpack.c.h.b16 %v4567
    %v4669 = vunpack.c.l.b16 %v4568
    %v4670 = vunpack.c.h.b16 %v4568
    %v4671 = vunpack.c.l.b16 %v4569
    %v4672 = vunpack.c.h.b16 %v4569
    %v4673 = vunpack.c.l.b16 %v4570
    %v4674 = vunpack.c.h.b16 %v4570
    %v4675 = vunpack.c.l.b16 %v4571
    %v4676 = vunpack.c.h.b16 %v4571
    %v4677 = vunpack.c.l.b16 %v4572
    %v4678 = vunpack.c.h.b16 %v4572
    %v4679 = vunpack.c.l.b16 %v4573
    %v4680 = vunpack.c.h.b16 %v4573
    %v4681 = vunpack.c.l.b16 %v4574
    %v4682 = vunpack.c.h.b16 %v4574
    %v4683 = vunpack.c.l.b16 %v4575
    %v4684 = vunpack.c.h.b16 %v4575
    %v4685 = vunpack.c.l.b16 %v4576
    %v4686 = vunpack.c.h.b16 %v4576
    %v4687 = vunpack.c.l.b16 %v4577
    %v4688 = vunpack.c.h.b16 %v4577
    %v4689 = vunpack.c.l.b16 %v4578
    %v4690 = vunpack.c.h.b16 %v4578
    %v4691 = vunpack.c.l.b16 %v4579
    %v4692 = vunpack.c.h.b16 %v4579
    %v4693 = vunpack.c.l.b16 %v4580
    %v4694 = vunpack.c.h.b16 %v4580
    %v4695 = vunpack.c.l.b16 %v4581
    %v4696 = vunpack.c.h.b16 %v4581
    %v4697 = vunpack.c.l.b16 %v4582
    %v4698 = vunpack.c.h.b16 %v4582
    %v4699 = vunpack.c.l.b16 %v4583
    %v4700 = vunpack.c.h.b16 %v4583
    %v4701 = vunpack.c.l.b16 %v4584
    %v4702 = vunpack.c.h.b16 %v4584
    %v4703 = vunpack.c.l.b16 %v4585
    %v4704 = vunpack.c.h.b16 %v4585
    %v4705 = vunpack.c.l.b16 %v4586
    %v4706 = vunpack.c.h.b16 %v4586
    %v4707 = vunpack.c.l.b16 %v4587
    %v4708 = vunpack.c.h.b16 %v4587
    %v4709 = vunpack.c.l.b16 %v4588
    %v4710 = vunpack.c.h.b16 %v4588
    %v4711 = vunpack.c.l.b16 %v4589
    %v4712 = vunpack.c.h.b16 %v4589
    %v4713 = vunpack.c.l.b16 %v4590
    %v4714 = vunpack.c.h.b16 %v4590
    %v4715 = vunpack.c.l.b16 %v4591
    %v4716 = vunpack.c.h.b16 %v4591
    %v4717 = vunpack.c.l.b16 %v4592
    %v4718 = vunpack.c.h.b16 %v4592
    %v4719 = vunpack.c.l.b16 %v4593
    %v4720 = vunpack.c.h.b16 %v4593
    %v4721 = vunpack.c.l.b16 %v4594
    %v4722 = vunpack.c.h.b16 %v4594
    %v4723 = vunpack.c.l.b16 %v4595
    %v4724 = vunpack.c.h.b16 %v4595
    %v4725 = vunpack.c.l.b16 %v4596
    %v4726 = vunpack.c.h.b16 %v4596
    %v4727 = vunpack.c.l.b16 %v4597
    %v4728 = vunpack.c.h.b16 %v4597
    %v4729 = vunpack.c.l.b16 %v4598
    %v4730 = vunpack.c.h.b16 %v4598
    %v4731 = vunpack.c.l.b16 %v4599
    %v4732 = vunpack.c.h.b16 %v4599
    %v4733 = vunpack.c.l.b16 %v4600
    %v4734 = vunpack.c.h.b16 %v4600
    %v4735 = vunpack.c.l.b16 %v4601
    %v4736 = vunpack.c.h.b16 %v4601
    %v4737 = vpack.c.b16 %v4649, %v4647
    %v4738 = vpack.c.b16 %v4650, %v4648
    %v4739 = vpack.c.b16 %v4653, %v4651
    %v4740 = vpack.c.b16 %v4654, %v4652
    %v4741 = vpack.c.b16 %v4657, %v4655
    %v4742 = vpack.c.b16 %v4658, %v4656
    %v4743 = vpack.c.b16 %v4661, %v4659
    %v4744 = vpack.c.b16 %v4662, %v4660
    %v4745 = vpack.c.b16 %v4665, %v4663
    %v4746 = vpack.c.b16 %v4666, %v4664
    %v4747 = vpack.c.b16 %v4669, %v4667
    %v4748 = vpack.c.b16 %v4670, %v4668
    %v4749 = vpack.c.b16 %v4673, %v4671
    %v4750 = vpack.c.b16 %v4674, %v4672
    %v4751 = vpack.c.b16 %v4677, %v4675
    %v4752 = vpack.c.b16 %v4678, %v4676
    %v4753 = vpack.c.b16 %v4681, %v4679
    %v4754 = vpack.c.b16 %v4682, %v4680
    %v4755 = vpack.c.b16 %v4685, %v4683
    %v4756 = vpack.c.b16 %v4686, %v4684
    %v4757 = vpack.c.b16 %v4689, %v4687
    %v4758 = vpack.c.b16 %v4690, %v4688
    %v4759 = vpack.c.b16 %v4693, %v4691
    %v4760 = vpack.c.b16 %v4694, %v4692
    %v4761 = vpack.c.b16 %v4697, %v4695
    %v4762 = vpack.c.b16 %v4698, %v4696
    %v4763 = vpack.c.b16 %v4701, %v4699
    %v4764 = vpack.c.b16 %v4702, %v4700
    %v4765 = vpack.c.b16 %v4705, %v4703
    %v4766 = vpack.c.b16 %v4706, %v4704
    %v4767 = vpack.c.b16 %v4709, %v4707
    %v4768 = vpack.c.b16 %v4710, %v4708
    %v4769 = vpack.c.b16 %v4713, %v4711
    %v4770 = vpack.c.b16 %v4714, %v4712
    %v4771 = vpack.c.b16 %v4717, %v4715
    %v4772 = vpack.c.b16 %v4718, %v4716
    %v4773 = vpack.c.b16 %v4721, %v4719
    %v4774 = vpack.c.b16 %v4722, %v4720
    %v4775 = vpack.c.b16 %v4725, %v4723
    %v4776 = vpack.c.b16 %v4726, %v4724
    %v4777 = vpack.c.b16 %v4729, %v4727
    %v4778 = vpack.c.b16 %v4730, %v4728
    %v4779 = vpack.c.b16 %v4733, %v4731
    %v4780 = vpack.c.b16 %v4734, %v4732
    %v4781 = vpack.c.b16 %v4735, %v4735
    %v4782 = vpack.c.b16 %v4736, %v4736
    %v4828 = vsel %vm1085, %v4555, 0
    %v4831 = vsel %vm1089, %v4781, 0
    %v4834 = vsel %vm1089, %v4782, 0
    %4836 = vmatprep.subr.bf16.mxu0 %v4738
    %4837 = vmatpush1.bf16.msra.mxu0 %v4737
    %4838 = vmatprep.subr.bf16.mxu0 %v4740
    %4839 = vmatpush1.bf16.msra.mxu0 %v4739
    %4840 = vmatprep.subr.bf16.mxu0 %v4742
    %4841 = vmatpush1.bf16.msra.mxu0 %v4741
    %4842 = vmatprep.subr.bf16.mxu0 %v4744
    %4843 = vmatpush1.bf16.msra.mxu0 %v4743
    %4844 = vmatprep.subr.bf16.mxu0 %v4746
    %4845 = vmatpush1.bf16.msra.mxu0 %v4745
    %4846 = vmatprep.subr.bf16.mxu0 %v4748
    %4847 = vmatpush1.bf16.msra.mxu0 %v4747
    %4848 = vmatprep.subr.bf16.mxu0 %v4750
    %4849 = vmatpush1.bf16.msra.mxu0 %v4749
    %4850 = vmatprep.subr.bf16.mxu0 %v4752
    %4851 = vmatpush1.bf16.msra.mxu0 %v4751
    %4852 = vmatprep.subr.bf16.mxu0 %v4754
    %4853 = vmatpush1.bf16.msra.mxu0 %v4753
    %4854 = vmatprep.subr.bf16.mxu0 %v4756
    %4855 = vmatpush1.bf16.msra.mxu0 %v4755
    %4856 = vmatprep.subr.bf16.mxu0 %v4758
    %4857 = vmatpush1.bf16.msra.mxu0 %v4757
    %4858 = vmatprep.subr.bf16.mxu0 %v4760
    %4859 = vmatpush1.bf16.msra.mxu0 %v4759
    %4860 = vmatprep.subr.bf16.mxu0 %v4762
    %4861 = vmatpush1.bf16.msra.mxu0 %v4761
    %4862 = vmatprep.subr.bf16.mxu0 %v4764
    %4863 = vmatpush1.bf16.msra.mxu0 %v4763
    %4864 = vmatprep.subr.bf16.mxu0 %v4766
    %4865 = vmatpush1.bf16.msra.mxu0 %v4765
    %4866 = vmatprep.subr.bf16.mxu0 %v4768
    %4867 = vmatpush1.bf16.msra.mxu0 %v4767
    %4868 = vmatprep.mubr.bf16.mxu0 %v4554
    %4869 = vmatmul.mubr.bf16.gmra.mrb[0].mxu0 %v4553
    %v4870 = vpop.f32.mrb[0].mxu0
    %v4871 = vadd.f32 0.0, %v4870
    %v4872 = vpop.f32.mrb[0].mxu0
    %v4873 = vadd.f32 0.0, %v4872
    %v4874 = vpop.f32.mrb[0].mxu0
    %v4875 = vpop.f32.mrb[0].mxu0
    %4876 = vdwg.mxu0
    %4877 = vmatprep.subr.bf16.mxu0 %v4770
    %4878 = vmatpush1.bf16.msra.mxu0 %v4769
    %4879 = vmatprep.subr.bf16.mxu0 %v4772
    %4880 = vmatpush1.bf16.msra.mxu0 %v4771
    %4881 = vmatprep.subr.bf16.mxu0 %v4774
    %4882 = vmatpush1.bf16.msra.mxu0 %v4773
    %4883 = vmatprep.subr.bf16.mxu0 %v4776
    %4884 = vmatpush1.bf16.msra.mxu0 %v4775
    %4885 = vmatprep.subr.bf16.mxu0 %v4778
    %4886 = vmatpush1.bf16.msra.mxu0 %v4777
    %4887 = vmatprep.subr.bf16.mxu0 %v4780
    %4888 = vmatpush1.bf16.msra.mxu0 %v4779
    %4889 = vmatprep.subr.bf16.mxu0 %v4834
    %4890 = vmatpush1.bf16.msra.mxu0 %v4831
    %4891 = vmatprep.subr.bf16.mxu0 0
    %4892 = vmatpush1.bf16.msra.mxu0 0
    %4893 = vmatprep.subr.bf16.mxu0 0
    %4894 = vmatpush1.bf16.msra.mxu0 0
    %4895 = vmatprep.subr.bf16.mxu0 0
    %4896 = vmatpush1.bf16.msra.mxu0 0
    %4897 = vmatprep.subr.bf16.mxu0 0
    %4898 = vmatpush1.bf16.msra.mxu0 0
    %4899 = vmatprep.subr.bf16.mxu0 0
    %4900 = vmatpush1.bf16.msra.mxu0 0
    %4901 = vmatprep.subr.bf16.mxu0 0
    %4902 = vmatpush1.bf16.msra.mxu0 0
    %4903 = vmatprep.subr.bf16.mxu0 0
    %4904 = vmatpush1.bf16.msra.mxu0 0
    %4905 = vmatprep.subr.bf16.mxu0 0
    %4906 = vmatpush1.bf16.msra.mxu0 0
    %4907 = vmatprep.subr.bf16.mxu0 0
    %4908 = vmatpush1.bf16.msra.mxu0 0
    %4909 = vmatprep.mubr.bf16.mxu0 0
    %4910 = vmatmul.mubr.bf16.gmra.mrb[0].mxu0 %v4828
    %v4911 = vpop.f32.mrb[0].mxu0
    %v4912 = vadd.f32 %v4871, %v4911
    %v4913 = vpop.f32.mrb[0].mxu0
    %v4914 = vadd.f32 %v4873, %v4913
    %v4915 = vpop.f32.mrb[0].mxu0
    %v4916 = vpop.f32.mrb[0].mxu0
    %4917 = vdwg.mxu0
    %v4918 = vadd.f32 %v4347, %v4912
    %v4919 = vadd.f32 %v4348, %v4914
    %v4920 = vld [vmem:[%s6] sm:$0x3]
    %v4922 = vlaneseq
    %v4923 = vshrl.u32 %v4922, 7
    %v4924 = vsub.s32 0, %v4923
    %v4925 = vrot.slane %v4920, %v4924
    %v4926 = vlaneseq
    %v4927 = vshrl.u32 %v4926, 7
    %v4928 = vsub.s32 1, %v4927
    %v4929 = vrot.slane %v4920, %v4928
    %v4932 = vadd.f32 %v4918, %v4925
    %v4933 = vadd.f32 %v4919, %v4929
    %v4934 = vmax.f32 %v4932, 0.0
    %v4935 = vmax.f32 %v4933, 0.0
    %v4936 = vpack.c.bf16 %v4934, %v4934
    %v4937 = vpack.c.bf16 %v4935, %v4935
    %v4938 = vld [vmem:[%s7] sm:$0xf]
    %v4939 = vld [vmem:[%s7 + $0x4] sm:$0xf]
    %v4940 = vld [vmem:[%s7 + $0x8] sm:$0xf]
    %v4941 = vld [vmem:[%s7 + $0xc] sm:$0xf]
    %v4942 = vld [vmem:[%s7 + $0x10] sm:$0xf]
    %v4943 = vld [vmem:[%s7 + $0x14] sm:$0xf]
    %v4944 = vld [vmem:[%s7 + $0x18] sm:$0xf]
    %v4945 = vld [vmem:[%s7 + $0x1c] sm:$0xf]
    %v4946 = vld [vmem:[%s7 + $0x20] sm:$0xf]
    %v4947 = vld [vmem:[%s7 + $0x24] sm:$0xf]
    %v4948 = vld [vmem:[%s7 + $0x28] sm:$0xf]
    %v4949 = vld [vmem:[%s7 + $0x2c] sm:$0xf]
    %v4950 = vld [vmem:[%s7 + $0x30] sm:$0xf]
    %v4951 = vld [vmem:[%s7 + $0x34] sm:$0xf]
    %v4952 = vld [vmem:[%s7 + $0x38] sm:$0xf]
    %v4953 = vld [vmem:[%s7 + $0x3c] sm:$0xf]
    %v4954 = vld [vmem:[%s7 + $0x40] sm:$0xf]
    %v4955 = vld [vmem:[%s7 + $0x44] sm:$0xf]
    %v4956 = vld [vmem:[%s7 + $0x48] sm:$0xf]
    %v4957 = vld [vmem:[%s7 + $0x4c] sm:$0xf]
    %v4958 = vld [vmem:[%s7 + $0x50] sm:$0xf]
    %v4959 = vld [vmem:[%s7 + $0x54] sm:$0xf]
    %v4960 = vld [vmem:[%s7 + $0x58] sm:$0xf]
    %v4961 = vld [vmem:[%s7 + $0x5c] sm:$0xf]
    %v4962 = vld [vmem:[%s7 + $0x60] sm:$0xf]
    %v4963 = vld [vmem:[%s8] sm:$0x1]
    %v4965 = vlaneseq
    %v4966 = vshrl.u32 %v4965, 7
    %v4967 = vsub.s32 0, %v4966
    %v4968 = vrot.slane %v4963, %v4967
    %v4995 = vunpack.c.l.b16 %v4938
    %v4996 = vunpack.c.l.b16 %v4939
    %v4997 = vunpack.c.l.b16 %v4940
    %v4998 = vunpack.c.l.b16 %v4941
    %v4999 = vunpack.c.l.b16 %v4942
    %v5000 = vunpack.c.l.b16 %v4943
    %v5001 = vunpack.c.l.b16 %v4944
    %v5002 = vunpack.c.l.b16 %v4945
    %v5003 = vunpack.c.l.b16 %v4946
    %v5004 = vunpack.c.l.b16 %v4947
    %v5005 = vunpack.c.l.b16 %v4948
    %v5006 = vunpack.c.l.b16 %v4949
    %v5007 = vunpack.c.l.b16 %v4950
    %v5008 = vunpack.c.l.b16 %v4951
    %v5009 = vunpack.c.l.b16 %v4952
    %v5010 = vunpack.c.l.b16 %v4953
    %v5011 = vunpack.c.l.b16 %v4954
    %v5012 = vunpack.c.l.b16 %v4955
    %v5013 = vunpack.c.l.b16 %v4956
    %v5014 = vunpack.c.l.b16 %v4957
    %v5015 = vunpack.c.l.b16 %v4958
    %v5016 = vunpack.c.l.b16 %v4959
    %v5017 = vunpack.c.l.b16 %v4960
    %v5018 = vunpack.c.l.b16 %v4961
    %v5019 = vunpack.c.l.b16 %v4962
    %v5020 = vpack.c.b16 %v4996, %v4995
    %v5021 = vpack.c.b16 %v4998, %v4997
    %v5022 = vpack.c.b16 %v5000, %v4999
    %v5023 = vpack.c.b16 %v5002, %v5001
    %v5024 = vpack.c.b16 %v5004, %v5003
    %v5025 = vpack.c.b16 %v5006, %v5005
    %v5026 = vpack.c.b16 %v5008, %v5007
    %v5027 = vpack.c.b16 %v5010, %v5009
    %v5028 = vpack.c.b16 %v5012, %v5011
    %v5029 = vpack.c.b16 %v5014, %v5013
    %v5030 = vpack.c.b16 %v5016, %v5015
    %v5031 = vpack.c.b16 %v5018, %v5017
    %v5032 = vpack.c.b16 %v5019, %v5019
    %v5046 = vsel %vm327, %v4937, 0
    %v5049 = vsel %vm1089, %v5032, 0
    %5051 = vmatprep.subr.bf16.mxu0 0
    %5052 = vmatpush1.bf16.msra.mxu0 %v5020
    %5053 = vmatprep.subr.bf16.mxu0 0
    %5054 = vmatpush1.bf16.msra.mxu0 %v5021
    %5055 = vmatprep.subr.bf16.mxu0 0
    %5056 = vmatpush1.bf16.msra.mxu0 %v5022
    %5057 = vmatprep.subr.bf16.mxu0 0
    %5058 = vmatpush1.bf16.msra.mxu0 %v5023
    %5059 = vmatprep.subr.bf16.mxu0 0
    %5060 = vmatpush1.bf16.msra.mxu0 %v5024
    %5061 = vmatprep.subr.bf16.mxu0 0
    %5062 = vmatpush1.bf16.msra.mxu0 %v5025
    %5063 = vmatprep.subr.bf16.mxu0 0
    %5064 = vmatpush1.bf16.msra.mxu0 %v5026
    %5065 = vmatprep.subr.bf16.mxu0 0
    %5066 = vmatpush1.bf16.msra.mxu0 %v5027
    %5067 = vmatprep.subr.bf16.mxu0 0
    %5068 = vmatpush1.bf16.msra.mxu0 %v5028
    %5069 = vmatprep.subr.bf16.mxu0 0
    %5070 = vmatpush1.bf16.msra.mxu0 %v5029
    %5071 = vmatprep.subr.bf16.mxu0 0
    %5072 = vmatpush1.bf16.msra.mxu0 %v5030
    %5073 = vmatprep.subr.bf16.mxu0 0
    %5074 = vmatpush1.bf16.msra.mxu0 %v5031
    %5075 = vmatprep.subr.bf16.mxu0 0
    %5076 = vmatpush1.bf16.msra.mxu0 %v5049
    %5077 = vmatprep.subr.bf16.mxu0 0
    %5078 = vmatpush1.bf16.msra.mxu0 0
    %5079 = vmatprep.subr.bf16.mxu0 0
    %5080 = vmatpush1.bf16.msra.mxu0 0
    %5081 = vmatprep.subr.bf16.mxu0 0
    %5082 = vmatpush1.bf16.msra.mxu0 0
    %5083 = vmatprep.mubr.bf16.mxu0 %v5046
    %5084 = vmatmul.mubr.bf16.gmra.mrb[0].mxu0 %v4936
    %v5085 = vpop.f32.mrb[0].mxu0
    %v5086 = vadd.f32 %v4968, %v5085
    %v5087 = vpop.f32.mrb[0].mxu0
    %v5088 = vpop.f32.mrb[0].mxu0
    %v5089 = vpop.f32.mrb[0].mxu0
    %5090 = vdwg.mxu0
    %v5091 = vxor.u32 %v5086, 2147483648
    %v5092 = vmul.f32 %v5091, 1.442695
    %v5093 = vpow.pop %v5092
    %v5094 = vadd.f32 %v5093, 1.0
    %v5095 = vrcp.pop %v5094
    %v5096 = vmul.f32 1.0, %v5095
    %5097 = vst.msk [vmem:[%s9] sm:$0xff] %vm168, %v5096
    // Predicated region
    $region34: #{conve_forward.1} parent=1 // pred_check
      _
    $region35: #{conve_forward.1} parent=1 // pred_check_branch
      %5099 = sbr.rel (0) target = $region37
    $region36: #{conve_forward.1} parent=1 // pred_region
      _
    $region37: #{conve_forward.1} parent=1 // pred_fallthru
      _
    // Predicated region
    $region38: #{conve_forward.1} parent=1 // pred_check
      _
    $region39: #{conve_forward.1} parent=1 // pred_check_branch
      %5101 = sbr.rel (0) target = $region41
    $region40: #{conve_forward.1} parent=1 // pred_region
      _
    $region41: #{conve_forward.1} parent=1 // pred_fallthru
      _
    %5102 = vsyncpa [#allocation7], 1

</llo_original>
